<compile_context>
chip_gen: v7x
topology: tpu7x:2x2x1
jax: 0.10.0
libtpu: 0.0.40
codegen_flags: <defaults>
</compile_context>

<pallas_src>
import functools

import jax
import jax.numpy as jnp
from jax.experimental import pallas as pl
from jax.experimental.pallas import tpu as pltpu


# --------------------------------------------------------------------------- helpers
def _round_up(n, m):
    return (n + m - 1) // m * m


def _largest_divisor_leq(n, cap):
    cap = max(1, min(cap, n))
    for d in range(cap, 0, -1):
        if n % d == 0:
            return d
    return 1


def _pick_h_tile(h, cap):
    """Largest tile of H that divides H and is a multiple of 8 (or the full H)."""
    if h <= cap:
        return h
    for d in range(min(cap, h), 0, -1):
        if h % d == 0 and d % 8 == 0:
            return d
    return h  # no aligned divisor fits: fall back to the full extent


def _block_bytes_target():
    """Per-step padded x-block byte target, per TPU generation."""
    try:
        kind = jax.devices()[0].device_kind.lower()
    except Exception:
        return 4 << 20
    if "v5 lite" in kind or "v5e" in kind or "v5litepod" in kind:
        return 2 << 20          # v5e: ~820 GB/s HBM, small scoped-VMEM default
    if "v6" in kind:
        return 4 << 20          # v6e: ~1.4 TB/s HBM
    if "7" in kind:
        return 8 << 20          # v7x: 3.2 TB/s HBM -> bigger steps (64 MiB VMEM)
    return 4 << 20


# --------------------------------------------------------------------------- kernels
def _pool_kernel(x_ref, avg_ref, max_ref, sum_scr, max_scr, *, inv_hw):
    """Per-channel sum & max over H*W.  Per step: pure elementwise accumulation into
    full-width VMEM scratch; all reductions + narrow stores happen at the last step."""
    h = pl.program_id(2)

    @pl.when(h == 0)
    def _init():
        sum_scr[...] = jnp.zeros_like(sum_scr)
        max_scr[...] = jnp.full_like(max_scr, -jnp.inf)

    x = x_ref[...].astype(jnp.float32)              # (1, tc, th, W)
    sum_scr[...] += x                               # pure VPU, no cross-lane work
    max_scr[...] = jnp.maximum(max_scr[...], x)

    @pl.when(h == pl.num_programs(2) - 1)
    def _finalize():
        # lane reduce (W) then sublane reduce (th), keepdims all the way.
        s = jnp.sum(sum_scr[...], axis=3, keepdims=True)     # (1, tc, th, 1)
        s = jnp.sum(s, axis=2, keepdims=True)                # (1, tc, 1, 1)
        avg_ref[...] = (s * inv_hw).astype(avg_ref.dtype)
        m = jnp.max(max_scr[...], axis=3, keepdims=True)
        m = jnp.max(m, axis=2, keepdims=True)
        max_ref[...] = m.astype(max_ref.dtype)


def _mlp_kernel(avg_ref, max_ref, w1_ref, w2_ref, gate_ref):
    """gate = sigmoid(fc(avg) + fc(max)); the second matmul distributes over '+' and
    is therefore shared between the two branches (one MXU sequence fewer)."""
    dn = (((1,), (1,)), ((), ()))  # contract last axes: v @ w.T without a transpose op
    w1 = w1_ref[...]
    h = jnp.maximum(
        jax.lax.dot_general(avg_ref[...], w1, dn, preferred_element_type=jnp.float32),
        0.0)
    h = h + jnp.maximum(
        jax.lax.dot_general(max_ref[...], w1, dn, preferred_element_type=jnp.float32),
        0.0)
    y = jax.lax.dot_general(h, w2_ref[...], dn, preferred_element_type=jnp.float32)
    gate_ref[...] = (1.0 / (1.0 + jnp.exp(-y))).astype(gate_ref.dtype)   # EUP exp


def _apply_kernel(x_ref, gate_ref, o_ref):
    # gate block is (1, tc, 1, W): only a sublane (H) broadcast is needed in-kernel.
    o_ref[...] = (x_ref[...] * gate_ref[...].astype(x_ref.dtype)).astype(o_ref.dtype)


# --------------------------------------------------------------------------- wrapper
def channel_attention(x, w1, w2, *, block_bytes=None):
    """x: [B, C, H, W].  w1: [C//r, C], w2: [C, C//r] (1x1 conv weights, no bias)."""
    B, C, H, W = x.shape
    Cr = w1.shape[0]
    assert w1.shape == (Cr, C) and w2.shape == (C, Cr)

    if block_bytes is None:
        block_bytes = _block_bytes_target()
    itemsize = x.dtype.itemsize
    wp = _round_up(W, 128)                          # lane-padded width of a spatial row
    chan_slab = _round_up(H, 8) * wp * itemsize     # one channel, full spatial, padded

    if chan_slab <= block_bytes:
        tc = _largest_divisor_leq(C, block_bytes // chan_slab)
        th = H
    else:                                           # very large images: tile H instead
        tc = 1
        th = _pick_h_tile(H, max(8, block_bytes // (wp * itemsize)))

    # Megacore: keep >= 2 blocks on the parallel (B, C) axes when possible.
    if B * (C // tc) < 2 and tc > 1:
        tc = _largest_divisor_leq(C, max(1, tc // 2))

    n_c, n_h = C // tc, H // th
    grid = (B, n_c, n_h)

    blk = tc * _round_up(th, 8) * wp * itemsize     # padded bytes of one x block
    vmem_limit = int(min(56 << 20, max(32 << 20, 5 * blk)))

    # ---- 1) Pool: per-channel avg & max over H*W (divisor tiles -> no masking). ----
    avg4, max4 = pl.pallas_call(
        functools.partial(_pool_kernel, inv_hw=1.0 / (H * W)),
        out_shape=(jax.ShapeDtypeStruct((B, C, 1, 1), jnp.float32),
                   jax.ShapeDtypeStruct((B, C, 1, 1), jnp.float32)),
        grid=grid,
        in_specs=[pl.BlockSpec((1, tc, th, W), lambda b, c, h: (b, c, h, 0))],
        out_specs=(pl.BlockSpec((1, tc, 1, 1), lambda b, c, h: (b, c, 0, 0)),
                   pl.BlockSpec((1, tc, 1, 1), lambda b, c, h: (b, c, 0, 0))),
        scratch_shapes=[pltpu.VMEM((1, tc, th, W), jnp.float32),
                        pltpu.VMEM((1, tc, th, W), jnp.float32)],
        compiler_params=pltpu.CompilerParams(
            dimension_semantics=("parallel", "parallel", "arbitrary"),
            vmem_limit_bytes=vmem_limit),
        cost_estimate=pl.CostEstimate(
            flops=2 * B * C * H * W, transcendentals=0,
            bytes_accessed=itemsize * B * C * H * W + 8 * B * C),
    )(x)

    # ---- 2) Tiny shared MLP + sigmoid on the pooled stats (single grid step). ------
    gate = pl.pallas_call(
        _mlp_kernel,
        out_shape=jax.ShapeDtypeStruct((B, C), jnp.float32),
        grid=(1,),
        in_specs=[pl.BlockSpec((B, C), lambda i: (0, 0)),
                  pl.BlockSpec((B, C), lambda i: (0, 0)),
                  pl.BlockSpec((Cr, C), lambda i: (0, 0)),
                  pl.BlockSpec((C, Cr), lambda i: (0, 0))],
        out_specs=pl.BlockSpec((B, C), lambda i: (0, 0)),
        compiler_params=pltpu.CompilerParams(dimension_semantics=("arbitrary",)),
        cost_estimate=pl.CostEstimate(
            flops=6 * B * C * Cr, transcendentals=B * C,
            bytes_accessed=4 * (4 * B * C + 2 * C * Cr)),
    )(avg4.reshape(B, C), max4.reshape(B, C), w1, w2)

    # Pre-broadcast the (tiny) per-channel gate over W so the apply kernel only needs
    # a sublane broadcast; all shapes here are O(B*C) -- negligible traffic.
    gate4 = jnp.broadcast_to(gate[:, :, None, None], (B, C, 1, W))

    # ---- 3) Apply: out = gate * x, lane-dense 4-D blocks, fully parallel grid. -----
    out = pl.pallas_call(
        _apply_kernel,
        out_shape=jax.ShapeDtypeStruct((B, C, H, W), x.dtype),
        grid=grid,
        in_specs=[pl.BlockSpec((1, tc, th, W), lambda b, c, h: (b, c, h, 0)),
                  pl.BlockSpec((1, tc, 1, W), lambda b, c, h: (b, c, 0, 0))],
        out_specs=pl.BlockSpec((1, tc, th, W), lambda b, c, h: (b, c, h, 0)),
        compiler_params=pltpu.CompilerParams(
            dimension_semantics=("parallel", "parallel", "parallel"),
            vmem_limit_bytes=vmem_limit),
        cost_estimate=pl.CostEstimate(
            flops=B * C * H * W, transcendentals=0,
            bytes_accessed=2 * itemsize * B * C * H * W + 4 * B * C * W),
    )(x, gate4)

    return out


# ------------------------------------------------------------------------------ main
if __name__ == "__main__":
    # Small shapes consistent with the module (reduction=16 needs C >= 16).
    B, C, H, W, reduction = 2, 64, 16, 16, 16
    Cr = C // reduction

    key = jax.random.PRNGKey(0)
    k_x, k_w1, k_w2 = jax.random.split(key, 3)

    # 1x1 conv weights (no bias), PyTorch-like uniform init bounds.
    b1 = 1.0 / (C ** 0.5)
    b2 = 1.0 / (Cr ** 0.5)
    w1 = jax.random.uniform(k_w1, (Cr, C), jnp.float32, -b1, b1)
    w2 = jax.random.uniform(k_w2, (C, Cr), jnp.float32, -b2, b2)
    x = jax.random.normal(k_x, (B, C, H, W), jnp.float32)

    out = channel_attention(x, w1, w2)
    out = jax.block_until_ready(out)

    # Pure-JAX reference of the PyTorch forward.
    avg = x.mean(axis=(2, 3))
    mx = x.max(axis=(2, 3))

    def fc(v):
        return jnp.maximum(v @ w1.T, 0.0) @ w2.T

    s = 1.0 / (1.0 + jnp.exp(-(fc(avg) + fc(mx))))
    ref = s[:, :, None, None] * x

    assert out.shape == x.shape
    assert jnp.allclose(out, ref, atol=2e-5, rtol=2e-5), \
        float(jnp.max(jnp.abs(out - ref)))

    print("KERNEL_OK")
</pallas_src>

<mosaic_0001>
module attributes {stable_mosaic.version = 11 : i64} {
  func.func @_pool_kernel(%arg0: i32, %arg1: i32, %arg2: i32, %arg3: memref<1x64x16x16xf32, #tpu.memory_space<vmem>>, %arg4: memref<1x64x1x1xf32, #tpu.memory_space<vmem>>, %arg5: memref<1x64x1x1xf32, #tpu.memory_space<vmem>>, %arg6: memref<1x64x16x16xf32, #tpu.memory_space<vmem>>, %arg7: memref<1x64x16x16xf32, #tpu.memory_space<vmem>>) attributes {dimension_semantics = [#tpu.dimension_semantics<parallel>, #tpu.dimension_semantics<parallel>, #tpu.dimension_semantics<arbitrary>], iteration_bounds = array<i64: 2, 1, 1>, scalar_prefetch = 0 : i64, scratch_operands = 2 : i64, tpu.core_type = #tpu.core_type<tc>, window_params = [{transform_indices = @transform_0, window_bounds = array<i64: 1, 64, 16, 16>}, {transform_indices = @transform_1, window_bounds = array<i64: 1, 64, 1, 1>}, {transform_indices = @transform_2, window_bounds = array<i64: 1, 64, 1, 1>}]} {
    %c0_i32 = arith.constant 0 : i32
    %0 = arith.cmpi eq, %arg2, %c0_i32 : i32
    %1 = arith.extui %0 : i1 to i32
    %c0_i32_0 = arith.constant 0 : i32
    %2 = arith.cmpi ne, %1, %c0_i32_0 : i32
    scf.if %2 {
      %cst = arith.constant 0.000000e+00 : f32
      %13 = vector.broadcast %cst : f32 to vector<1x64x16x16xf32>
      %c0_22 = arith.constant 0 : index
      %c0_23 = arith.constant 0 : index
      %c0_24 = arith.constant 0 : index
      %c0_25 = arith.constant 0 : index
      %14 = vector.load %arg6[%c0_22, %c0_23, %c0_24, %c0_25] : memref<1x64x16x16xf32, #tpu.memory_space<vmem>>, vector<1x64x16x16xf32>
      tpu.vector_store %arg6[%c0_22, %c0_23, %c0_24, %c0_25], %13 {strides = array<i32>} : memref<1x64x16x16xf32, #tpu.memory_space<vmem>>, vector<1x64x16x16xf32>,
      %cst_26 = arith.constant 0xFF800000 : f32
      %15 = vector.broadcast %cst_26 : f32 to vector<1x64x16x16xf32>
      %c0_27 = arith.constant 0 : index
      %c0_28 = arith.constant 0 : index
      %c0_29 = arith.constant 0 : index
      %c0_30 = arith.constant 0 : index
      %16 = vector.load %arg7[%c0_27, %c0_28, %c0_29, %c0_30] : memref<1x64x16x16xf32, #tpu.memory_space<vmem>>, vector<1x64x16x16xf32>
      tpu.vector_store %arg7[%c0_27, %c0_28, %c0_29, %c0_30], %15 {strides = array<i32>} : memref<1x64x16x16xf32, #tpu.memory_space<vmem>>, vector<1x64x16x16xf32>,
    } else {
    }
    %c0 = arith.constant 0 : index
    %c0_1 = arith.constant 0 : index
    %c0_2 = arith.constant 0 : index
    %c0_3 = arith.constant 0 : index
    %3 = vector.load %arg3[%c0, %c0_1, %c0_2, %c0_3] : memref<1x64x16x16xf32, #tpu.memory_space<vmem>>, vector<1x64x16x16xf32>
    %c0_4 = arith.constant 0 : index
    %c0_5 = arith.constant 0 : index
    %c0_6 = arith.constant 0 : index
    %c0_7 = arith.constant 0 : index
    %4 = vector.load %arg6[%c0_4, %c0_5, %c0_6, %c0_7] : memref<1x64x16x16xf32, #tpu.memory_space<vmem>>, vector<1x64x16x16xf32>
    %5 = arith.addf %4, %3 : vector<1x64x16x16xf32>
    %c0_8 = arith.constant 0 : index
    %c0_9 = arith.constant 0 : index
    %c0_10 = arith.constant 0 : index
    %c0_11 = arith.constant 0 : index
    %6 = vector.load %arg6[%c0_8, %c0_9, %c0_10, %c0_11] : memref<1x64x16x16xf32, #tpu.memory_space<vmem>>, vector<1x64x16x16xf32>
    tpu.vector_store %arg6[%c0_8, %c0_9, %c0_10, %c0_11], %5 {strides = array<i32>} : memref<1x64x16x16xf32, #tpu.memory_space<vmem>>, vector<1x64x16x16xf32>,
    %c0_12 = arith.constant 0 : index
    %c0_13 = arith.constant 0 : index
    %c0_14 = arith.constant 0 : index
    %c0_15 = arith.constant 0 : index
    %7 = vector.load %arg7[%c0_12, %c0_13, %c0_14, %c0_15] : memref<1x64x16x16xf32, #tpu.memory_space<vmem>>, vector<1x64x16x16xf32>
    %8 = arith.maximumf %7, %3 : vector<1x64x16x16xf32>
    %c0_16 = arith.constant 0 : index
    %c0_17 = arith.constant 0 : index
    %c0_18 = arith.constant 0 : index
    %c0_19 = arith.constant 0 : index
    %9 = vector.load %arg7[%c0_16, %c0_17, %c0_18, %c0_19] : memref<1x64x16x16xf32, #tpu.memory_space<vmem>>, vector<1x64x16x16xf32>
    tpu.vector_store %arg7[%c0_16, %c0_17, %c0_18, %c0_19], %8 {strides = array<i32>} : memref<1x64x16x16xf32, #tpu.memory_space<vmem>>, vector<1x64x16x16xf32>,
    %c0_i32_20 = arith.constant 0 : i32
    %10 = arith.cmpi eq, %arg2, %c0_i32_20 : i32
    %11 = arith.extui %10 : i1 to i32
    %c0_i32_21 = arith.constant 0 : i32
    %12 = arith.cmpi ne, %11, %c0_i32_21 : i32
    scf.if %12 {
      %c0_22 = arith.constant 0 : index
      %c0_23 = arith.constant 0 : index
      %c0_24 = arith.constant 0 : index
      %c0_25 = arith.constant 0 : index
      %13 = vector.load %arg6[%c0_22, %c0_23, %c0_24, %c0_25] : memref<1x64x16x16xf32, #tpu.memory_space<vmem>>, vector<1x64x16x16xf32>
      %cst = arith.constant dense<0.000000e+00> : vector<1x64x16xf32>
      %14 = vector.multi_reduction <add>, %13, %cst [3] : vector<1x64x16x16xf32> to vector<1x64x16xf32>
      %15 = vector.shape_cast %14 : vector<1x64x16xf32> to vector<1x64x16x1xf32>
      %cst_26 = arith.constant dense<0.000000e+00> : vector<1x64x1xf32>
      %16 = vector.multi_reduction <add>, %15, %cst_26 [2] : vector<1x64x16x1xf32> to vector<1x64x1xf32>
      %17 = vector.shape_cast %16 : vector<1x64x1xf32> to vector<1x64x1x1xf32>
      %cst_27 = arith.constant 3.906250e-03 : f32
      %18 = vector.broadcast %cst_27 : f32 to vector<1x64x1x1xf32>
      %19 = arith.mulf %17, %18 : vector<1x64x1x1xf32>
      %c0_28 = arith.constant 0 : index
      %c0_29 = arith.constant 0 : index
      %c0_30 = arith.constant 0 : index
      %c0_31 = arith.constant 0 : index
      %20 = vector.load %arg4[%c0_28, %c0_29, %c0_30, %c0_31] : memref<1x64x1x1xf32, #tpu.memory_space<vmem>>, vector<1x64x1x1xf32>
      tpu.vector_store %arg4[%c0_28, %c0_29, %c0_30, %c0_31], %19 {strides = array<i32>} : memref<1x64x1x1xf32, #tpu.memory_space<vmem>>, vector<1x64x1x1xf32>,
      %c0_32 = arith.constant 0 : index
      %c0_33 = arith.constant 0 : index
      %c0_34 = arith.constant 0 : index
      %c0_35 = arith.constant 0 : index
      %21 = vector.load %arg7[%c0_32, %c0_33, %c0_34, %c0_35] : memref<1x64x16x16xf32, #tpu.memory_space<vmem>>, vector<1x64x16x16xf32>
      %cst_36 = arith.constant dense<0xFF800000> : vector<1x64x16xf32>
      %22 = vector.multi_reduction <maximumf>, %21, %cst_36 [3] : vector<1x64x16x16xf32> to vector<1x64x16xf32>
      %23 = vector.shape_cast %22 : vector<1x64x16xf32> to vector<1x64x16x1xf32>
      %cst_37 = arith.constant dense<0xFF800000> : vector<1x64x1xf32>
      %24 = vector.multi_reduction <maximumf>, %23, %cst_37 [2] : vector<1x64x16x1xf32> to vector<1x64x1xf32>
      %25 = vector.shape_cast %24 : vector<1x64x1xf32> to vector<1x64x1x1xf32>
      %c0_38 = arith.constant 0 : index
      %c0_39 = arith.constant 0 : index
      %c0_40 = arith.constant 0 : index
      %c0_41 = arith.constant 0 : index
      %26 = vector.load %arg5[%c0_38, %c0_39, %c0_40, %c0_41] : memref<1x64x1x1xf32, #tpu.memory_space<vmem>>, vector<1x64x1x1xf32>
      tpu.vector_store %arg5[%c0_38, %c0_39, %c0_40, %c0_41], %25 {strides = array<i32>} : memref<1x64x1x1xf32, #tpu.memory_space<vmem>>, vector<1x64x1x1xf32>,
    } else {
    }
    return
  }
  func.func @transform_0(%arg0: i32, %arg1: i32, %arg2: i32) -> (i32, i32, i32, i32) {
    %c0_i32 = arith.constant 0 : i32
    %c0_i32_0 = arith.constant 0 : i32
    return %arg0, %arg1, %arg2, %c0_i32 : i32, i32, i32, i32
  }
  func.func @transform_1(%arg0: i32, %arg1: i32, %arg2: i32) -> (i32, i32, i32, i32) {
    %c0_i32 = arith.constant 0 : i32
    %c0_i32_0 = arith.constant 0 : i32
    %c0_i32_1 = arith.constant 0 : i32
    return %arg0, %arg1, %c0_i32, %c0_i32_0 : i32, i32, i32, i32
  }
  func.func @transform_2(%arg0: i32, %arg1: i32, %arg2: i32) -> (i32, i32, i32, i32) {
    %c0_i32 = arith.constant 0 : i32
    %c0_i32_0 = arith.constant 0 : i32
    %c0_i32_1 = arith.constant 0 : i32
    return %arg0, %arg1, %c0_i32, %c0_i32_0 : i32, i32, i32, i32
  }
}

</mosaic_0001>

<llo_original>
// kernel: tpu_custom_call.1
$region0: #{tpu_custom_call.1}
  #allocation0 [shape = 'u32[]', space=smem, size = 0x4, offset = 0x4, fixed_abs, tag = 'smem constant byte address 0x4 - core index']
  #allocation1 [shape = 'u32[144,128]{1,0:T(1,128)}', space=vmem, size = 0x12000, scoped, tag = 'internal scratch']
  #allocation2 [shape = 'f32[1,64,16,16]{3,2,1,0:T(8,128)}', space=vmem, size = 0x80000, scoped, tag = 'scratch operand']
  #allocation3 [shape = 'f32[1,64,16,16]{3,2,1,0:T(8,128)}', space=vmem, size = 0x80000, scoped, tag = 'scratch operand']
  %s0 = inlined_call_operand.vmem [shape: f32[2,64,16,16], index: 0, kind: input, shape index: {}]
  %s1 = inlined_call_operand.vmem [shape: f32[2,64,1,1], index: 1, kind: output, shape index: {0}]
  %s2 = inlined_call_operand.vmem [shape: f32[2,64,1,1], index: 2, kind: output, shape index: {1}]
  %3 = xla_tuple %s1, %s2
  %s4 = sld [smem:[#allocation0]]
  $region53: #{tpu_custom_call.1} parent=0
    _
  %s6 = ssub.s32 1, %s4
  %s7 = scalar_select 0, %s6, %s4
  loop: start=0, step=1, limit=4
  $region2: #{tpu_custom_call.1} parent=0 // loop_pre_header
    _
  $region3: #{tpu_custom_call.1} parent=0 // loop_header
    %s9 = sphi 0, %s13
    %p10 = scmp.ge.s32.totalorder %s9, 4
    %s16 = sphi 0, %s35
    %s17 = sphi 0, %s31
    %s18 = sphi 0, %s27
    %s19 = sphi 0, %s16
    %s20 = sphi 0, %s17
    %s21 = sphi 0, %s18
    %s22 = sphi 0, %s19
    %s23 = sphi 0, %s20
    %s24 = sphi 0, %s21
    %s42 = sphi 0, %s44
    %s45 = sphi 0, %s42
    %s46 = sphi 0, %s45
    %s62 = sphi 0, %s46
    %s70 = sphi 0, %s72
    %s73 = sphi 0, %s70
    %s74 = sphi 0, %s73
    %s90 = sphi 0, %s74
    %s98 = sphi 0, %s100
    %s101 = sphi 0, %s98
    %s102 = sphi 0, %s101
    %s118 = sphi 0, %s102
  $region4: #{tpu_custom_call.1} parent=0 // loop_header_branch
    %12 = sbr.rel (%p10) target = $region8
  $region5: #{tpu_custom_call.1} parent=0 // loop_body
    %s14 = ssub.s32 %s9, 1
    %s15 = ssub.s32 %s9, 2
    %s25 = sadd.s32 1, %s18
    %p26 = scmp.ge.s32.totalorder %s25, 1
    %s27 = scalar_select %p26, 0, %s25
    %s28 = sadd.s32 1, %s17
    %s29 = scalar_select %p26, %s28, %s17
    %p30 = scmp.ge.s32.totalorder %s29, 1
    %s31 = scalar_select %p30, 0, %s29
    %s32 = sadd.s32 1, %s16
    %s33 = scalar_select %p30, %s32, %s16
    %p34 = scmp.ge.s32.totalorder %s33, 2
    %s35 = scalar_select %p34, 0, %s33
    %s36 = ssub.s32 %s16, %s35
    %s37 = ssub.s32 %s17, %s31
    %s38 = sor.u32 %s36, %s37
    %s39 = ssub.s32 %s18, %s27
    %s40 = sor.u32 %s38, %s39
    %p41 = scmp.eq.s32.totalorder %s40, 0
    %s43 = sadd.s32 %s42, 1
    %s44 = scalar_select %p41, %s42, %s43
    %p47 = pneg %p41
    %p48 = scmp.eq.s32.totalorder %s9, 1
    %p49 = por %p47, %p48
    %p50 = scmp.ne.s32.totalorder %s42, %s45
    %p51 = scmp.eq.s32.totalorder %s9, 0
    %p52 = por %p50, %p51
    %p53 = scmp.ne.s32.totalorder %s42, %s45
    %p54 = scmp.eq.s32.totalorder %s14, 1
    %p55 = por %p53, %p54
    %p56 = scmp.ne.s32.totalorder %s45, %s46
    %p57 = scmp.eq.s32.totalorder %s14, 0
    %p58 = por %p56, %p57
    %p59 = scmp.ne.s32.totalorder %s45, %s46
    %p60 = scmp.eq.s32.totalorder %s15, 1
    %p61 = por %p59, %p60
    %p63 = scmp.ne.s32.totalorder %s46, %s62
    %p64 = scmp.eq.s32.totalorder %s15, 0
    %p65 = por %p63, %p64
    %s66 = ssub.s32 %s16, %s35
    %s67 = ssub.s32 %s17, %s31
    %s68 = sor.u32 %s66, %s67
    %p69 = scmp.eq.s32.totalorder %s68, 0
    %s71 = sadd.s32 %s70, 1
    %s72 = scalar_select %p69, %s70, %s71
    %p75 = pneg %p69
    %p76 = scmp.eq.s32.totalorder %s9, 1
    %p77 = por %p75, %p76
    %p78 = scmp.ne.s32.totalorder %s70, %s73
    %p79 = scmp.eq.s32.totalorder %s9, 0
    %p80 = por %p78, %p79
    %p81 = scmp.ne.s32.totalorder %s70, %s73
    %p82 = scmp.eq.s32.totalorder %s14, 1
    %p83 = por %p81, %p82
    %p84 = scmp.ne.s32.totalorder %s73, %s74
    %p85 = scmp.eq.s32.totalorder %s14, 0
    %p86 = por %p84, %p85
    %p87 = scmp.ne.s32.totalorder %s73, %s74
    %p88 = scmp.eq.s32.totalorder %s15, 1
    %p89 = por %p87, %p88
    %p91 = scmp.ne.s32.totalorder %s74, %s90
    %p92 = scmp.eq.s32.totalorder %s15, 0
    %p93 = por %p91, %p92
    %s94 = ssub.s32 %s16, %s35
    %s95 = ssub.s32 %s17, %s31
    %s96 = sor.u32 %s94, %s95
    %p97 = scmp.eq.s32.totalorder %s96, 0
    %s99 = sadd.s32 %s98, 1
    %s100 = scalar_select %p97, %s98, %s99
    %p103 = pneg %p97
    %p104 = scmp.eq.s32.totalorder %s9, 1
    %p105 = por %p103, %p104
    %p106 = scmp.ne.s32.totalorder %s98, %s101
    %p107 = scmp.eq.s32.totalorder %s9, 0
    %p108 = por %p106, %p107
    %p109 = scmp.ne.s32.totalorder %s98, %s101
    %p110 = scmp.eq.s32.totalorder %s14, 1
    %p111 = por %p109, %p110
    %p112 = scmp.ne.s32.totalorder %s101, %s102
    %p113 = scmp.eq.s32.totalorder %s14, 0
    %p114 = por %p112, %p113
    %p115 = scmp.ne.s32.totalorder %s101, %s102
    %p116 = scmp.eq.s32.totalorder %s15, 1
    %p117 = por %p115, %p116
    %p119 = scmp.ne.s32.totalorder %s102, %s118
    %p120 = scmp.eq.s32.totalorder %s15, 0
    %p121 = por %p119, %p120
    %p122 = scmp.le.s32.totalorder 1, %s9
    %p123 = scmp.lt.s32.totalorder %s9, 3
    %p124 = pnand %p122, %p123
    %p125 = pneg %p124
    // Predicated region
    $region9: #{tpu_custom_call.1} parent=5 // pred_check
      _
    $region10: #{tpu_custom_call.1} parent=5 // pred_check_branch
      %127 = sbr.rel (%p124) target = $region12
    $region11: #{tpu_custom_call.1} parent=5 // pred_region
      %s128 = ssub.s32 %s9, 1
    $region12: #{tpu_custom_call.1} parent=5 // pred_fallthru
      _
    %p129 = scmp.lt.s32.totalorder %s9, 2
    // Predicated region
    $region13: #{tpu_custom_call.1} parent=5 // pred_check
      %p130 = pneg %p129
    $region14: #{tpu_custom_call.1} parent=5 // pred_check_branch
      %132 = sbr.rel (%p130) target = $region16
    $region15: #{tpu_custom_call.1} parent=5 // pred_region
      // Predicated region
      $region17: #{tpu_custom_call.1} parent=15 // pred_check
        %p133 = pneg %p52
      $region18: #{tpu_custom_call.1} parent=15 // pred_check_branch
        %135 = sbr.rel (%p133) target = $region20
      $region19: #{tpu_custom_call.1} parent=15 // pred_region
        %s136 = smul.u32 64, %s17
        %s137 = smul.u32 2, %s18
        %p138 = scmp.lt.s32.totalorder %s16, 1
        %s139 = scalar_select %p138, %s16, 1
        %p140 = scmp.lt.s32.totalorder %s136, 63
        %s141 = scalar_select %p140, %s136, 63
        %p142 = scmp.lt.s32.totalorder %s137, 1
        %s143 = scalar_select %p142, %s137, 1
        %s144 = smul.addr %s141, 2
        %s145 = sadd.s32 %s143, %s144
        %s146 = smul.addr %s139, 128
        %s147 = sadd.s32 %s145, %s146
        %s148 = smul.addr %s147, 8
        %s149 = scalar_lea.vmem %s0, %s148
        %s150 = smul.u32 64, %s17
        %s151 = smul.u32 2, %s18
      $region20: #{tpu_custom_call.1} parent=15 // pred_fallthru
        _
    $region16: #{tpu_custom_call.1} parent=5 // pred_fallthru
      _
    %p152 = scmp.le.s32.totalorder 1, %s9
    %p153 = scmp.lt.s32.totalorder %s9, 3
    %p154 = pnand %p152, %p153
    %p155 = pneg %p154
    // Predicated region
    $region21: #{tpu_custom_call.1} parent=5 // pred_check
      _
    $region22: #{tpu_custom_call.1} parent=5 // pred_check_branch
      %157 = sbr.rel (%p154) target = $region24
    $region23: #{tpu_custom_call.1} parent=5 // pred_region
      %s158 = ssub.s32 %s9, 1
      %s159 = smul.u32 64, %s20
      %s160 = smul.u32 2, %s21
      %p161 = scmp.lt.s32.totalorder %s19, 1
      %s162 = scalar_select %p161, %s19, 1
      %p163 = scmp.lt.s32.totalorder %s159, 63
      %s164 = scalar_select %p163, %s159, 63
      %p165 = scmp.lt.s32.totalorder %s160, 1
      %s166 = scalar_select %p165, %s160, 1
      %s167 = smul.addr %s164, 2
      %s168 = sadd.s32 %s166, %s167
      %s169 = smul.addr %s162, 128
      %s170 = sadd.s32 %s168, %s169
      %s171 = smul.addr %s170, 8
      %s172 = scalar_lea.vmem %s0, %s171
      %p173 = pneg %p58
      %p174 = pneg %p55
      %p175 = pneg %p86
      %p176 = pneg %p83
      %s177 = smul.u32 64, %s20
      %p178 = scmp.lt.s32.totalorder %s19, 1
      %s179 = scalar_select %p178, %s19, 1
      %p180 = scmp.lt.s32.totalorder %s177, 63
      %s181 = scalar_select %p180, %s177, 63
      %s182 = smul.addr %s179, 64
      %s183 = sadd.s32 %s181, %s182
      %s184 = scalar_lea.vmem %s1, %s183
      %p185 = pneg %p114
      %p186 = pneg %p111
      %s187 = smul.u32 64, %s20
      %p188 = scmp.lt.s32.totalorder %s19, 1
      %s189 = scalar_select %p188, %s19, 1
      %p190 = scmp.lt.s32.totalorder %s187, 63
      %s191 = scalar_select %p190, %s187, 63
      %s192 = smul.addr %s189, 64
      %s193 = sadd.s32 %s191, %s192
      %s194 = scalar_lea.vmem %s2, %s193
      %s195 = smul.u32 64, %s20
      %s196 = smul.u32 2, %s21
      %p197 = scmp.lt.s32.totalorder %s19, 1
      %s198 = scalar_select %p197, %s19, 1
      %p199 = scmp.lt.s32.totalorder %s195, 63
      %s200 = scalar_select %p199, %s195, 63
      %p201 = scmp.lt.s32.totalorder %s196, 1
      %s202 = scalar_select %p201, %s196, 1
      %s203 = smul.addr %s200, 2
      %s204 = sadd.s32 %s202, %s203
      %s205 = smul.addr %s198, 128
      %s206 = sadd.s32 %s204, %s205
      %s207 = smul.addr %s206, 8
      %s208 = scalar_lea.vmem %s0, %s207
      %s209 = smul.u32 64, %s20
      %s210 = smul.u32 2, %s21
      %s211 = smul.u32 64, %s20
      %p212 = scmp.lt.s32.totalorder %s19, 1
      %s213 = scalar_select %p212, %s19, 1
      %p214 = scmp.lt.s32.totalorder %s211, 63
      %s215 = scalar_select %p214, %s211, 63
      %s216 = smul.addr %s213, 64
      %s217 = sadd.s32 %s215, %s216
      %s218 = scalar_lea.vmem %s1, %s217
      %s219 = smul.u32 64, %s20
      %s220 = smul.u32 64, %s20
      %p221 = scmp.lt.s32.totalorder %s19, 1
      %s222 = scalar_select %p221, %s19, 1
      %p223 = scmp.lt.s32.totalorder %s220, 63
      %s224 = scalar_select %p223, %s220, 63
      %s225 = smul.addr %s222, 64
      %s226 = sadd.s32 %s224, %s225
      %s227 = scalar_lea.vmem %s2, %s226
      %s228 = smul.u32 64, %s20
      %p229 = scmp.eq.s32.totalorder %s21, 0
      // Predicated region
      $region25: #{tpu_custom_call.1} parent=23 // pred_check
        %p230 = pneg %p229
      $region26: #{tpu_custom_call.1} parent=23 // pred_check_branch
        %232 = sbr.rel (%p230) target = $region28
      $region27: #{tpu_custom_call.1} parent=23 // pred_region
        %vm233 = vcmask 130048
        %234 = vst.msk [vmem:[#allocation2] sm:$0xff] %vm233, 0.0
        %235 = vst.msk [vmem:[#allocation2 + $0x8] sm:$0xff] %vm233, 0.0
        %236 = vst.msk [vmem:[#allocation2 + $0x10] sm:$0xff] %vm233, 0.0
        %237 = vst.msk [vmem:[#allocation2 + $0x18] sm:$0xff] %vm233, 0.0
        %238 = vst.msk [vmem:[#allocation2 + $0x20] sm:$0xff] %vm233, 0.0
        %239 = vst.msk [vmem:[#allocation2 + $0x28] sm:$0xff] %vm233, 0.0
        %240 = vst.msk [vmem:[#allocation2 + $0x30] sm:$0xff] %vm233, 0.0
        %241 = vst.msk [vmem:[#allocation2 + $0x38] sm:$0xff] %vm233, 0.0
        %242 = vst.msk [vmem:[#allocation2 + $0x40] sm:$0xff] %vm233, 0.0
        %243 = vst.msk [vmem:[#allocation2 + $0x48] sm:$0xff] %vm233, 0.0
        %244 = vst.msk [vmem:[#allocation2 + $0x50] sm:$0xff] %vm233, 0.0
        %245 = vst.msk [vmem:[#allocation2 + $0x58] sm:$0xff] %vm233, 0.0
        %246 = vst.msk [vmem:[#allocation2 + $0x60] sm:$0xff] %vm233, 0.0
        %247 = vst.msk [vmem:[#allocation2 + $0x68] sm:$0xff] %vm233, 0.0
        %248 = vst.msk [vmem:[#allocation2 + $0x70] sm:$0xff] %vm233, 0.0
        %249 = vst.msk [vmem:[#allocation2 + $0x78] sm:$0xff] %vm233, 0.0
        %250 = vst.msk [vmem:[#allocation2 + $0x80] sm:$0xff] %vm233, 0.0
        %251 = vst.msk [vmem:[#allocation2 + $0x88] sm:$0xff] %vm233, 0.0
        %252 = vst.msk [vmem:[#allocation2 + $0x90] sm:$0xff] %vm233, 0.0
        %253 = vst.msk [vmem:[#allocation2 + $0x98] sm:$0xff] %vm233, 0.0
        %254 = vst.msk [vmem:[#allocation2 + $0xa0] sm:$0xff] %vm233, 0.0
        %255 = vst.msk [vmem:[#allocation2 + $0xa8] sm:$0xff] %vm233, 0.0
        %256 = vst.msk [vmem:[#allocation2 + $0xb0] sm:$0xff] %vm233, 0.0
        %257 = vst.msk [vmem:[#allocation2 + $0xb8] sm:$0xff] %vm233, 0.0
        %258 = vst.msk [vmem:[#allocation2 + $0xc0] sm:$0xff] %vm233, 0.0
        %259 = vst.msk [vmem:[#allocation2 + $0xc8] sm:$0xff] %vm233, 0.0
        %260 = vst.msk [vmem:[#allocation2 + $0xd0] sm:$0xff] %vm233, 0.0
        %261 = vst.msk [vmem:[#allocation2 + $0xd8] sm:$0xff] %vm233, 0.0
        %262 = vst.msk [vmem:[#allocation2 + $0xe0] sm:$0xff] %vm233, 0.0
        %263 = vst.msk [vmem:[#allocation2 + $0xe8] sm:$0xff] %vm233, 0.0
        %264 = vst.msk [vmem:[#allocation2 + $0xf0] sm:$0xff] %vm233, 0.0
        %265 = vst.msk [vmem:[#allocation2 + $0xf8] sm:$0xff] %vm233, 0.0
        %266 = vst.msk [vmem:[#allocation2 + $0x100] sm:$0xff] %vm233, 0.0
        %267 = vst.msk [vmem:[#allocation2 + $0x108] sm:$0xff] %vm233, 0.0
        %268 = vst.msk [vmem:[#allocation2 + $0x110] sm:$0xff] %vm233, 0.0
        %269 = vst.msk [vmem:[#allocation2 + $0x118] sm:$0xff] %vm233, 0.0
        %270 = vst.msk [vmem:[#allocation2 + $0x120] sm:$0xff] %vm233, 0.0
        %271 = vst.msk [vmem:[#allocation2 + $0x128] sm:$0xff] %vm233, 0.0
        %272 = vst.msk [vmem:[#allocation2 + $0x130] sm:$0xff] %vm233, 0.0
        %273 = vst.msk [vmem:[#allocation2 + $0x138] sm:$0xff] %vm233, 0.0
        %274 = vst.msk [vmem:[#allocation2 + $0x140] sm:$0xff] %vm233, 0.0
        %275 = vst.msk [vmem:[#allocation2 + $0x148] sm:$0xff] %vm233, 0.0
        %276 = vst.msk [vmem:[#allocation2 + $0x150] sm:$0xff] %vm233, 0.0
        %277 = vst.msk [vmem:[#allocation2 + $0x158] sm:$0xff] %vm233, 0.0
        %278 = vst.msk [vmem:[#allocation2 + $0x160] sm:$0xff] %vm233, 0.0
        %279 = vst.msk [vmem:[#allocation2 + $0x168] sm:$0xff] %vm233, 0.0
        %280 = vst.msk [vmem:[#allocation2 + $0x170] sm:$0xff] %vm233, 0.0
        %281 = vst.msk [vmem:[#allocation2 + $0x178] sm:$0xff] %vm233, 0.0
        %282 = vst.msk [vmem:[#allocation2 + $0x180] sm:$0xff] %vm233, 0.0
        %283 = vst.msk [vmem:[#allocation2 + $0x188] sm:$0xff] %vm233, 0.0
        %284 = vst.msk [vmem:[#allocation2 + $0x190] sm:$0xff] %vm233, 0.0
        %285 = vst.msk [vmem:[#allocation2 + $0x198] sm:$0xff] %vm233, 0.0
        %286 = vst.msk [vmem:[#allocation2 + $0x1a0] sm:$0xff] %vm233, 0.0
        %287 = vst.msk [vmem:[#allocation2 + $0x1a8] sm:$0xff] %vm233, 0.0
        %288 = vst.msk [vmem:[#allocation2 + $0x1b0] sm:$0xff] %vm233, 0.0
        %289 = vst.msk [vmem:[#allocation2 + $0x1b8] sm:$0xff] %vm233, 0.0
        %290 = vst.msk [vmem:[#allocation2 + $0x1c0] sm:$0xff] %vm233, 0.0
        %291 = vst.msk [vmem:[#allocation2 + $0x1c8] sm:$0xff] %vm233, 0.0
        %292 = vst.msk [vmem:[#allocation2 + $0x1d0] sm:$0xff] %vm233, 0.0
        %293 = vst.msk [vmem:[#allocation2 + $0x1d8] sm:$0xff] %vm233, 0.0
        %294 = vst.msk [vmem:[#allocation2 + $0x1e0] sm:$0xff] %vm233, 0.0
        %295 = vst.msk [vmem:[#allocation2 + $0x1e8] sm:$0xff] %vm233, 0.0
        %296 = vst.msk [vmem:[#allocation2 + $0x1f0] sm:$0xff] %vm233, 0.0
        %297 = vst.msk [vmem:[#allocation2 + $0x1f8] sm:$0xff] %vm233, 0.0
        %298 = vst.msk [vmem:[#allocation2 + $0x200] sm:$0xff] %vm233, 0.0
        %299 = vst.msk [vmem:[#allocation2 + $0x208] sm:$0xff] %vm233, 0.0
        %300 = vst.msk [vmem:[#allocation2 + $0x210] sm:$0xff] %vm233, 0.0
        %301 = vst.msk [vmem:[#allocation2 + $0x218] sm:$0xff] %vm233, 0.0
        %302 = vst.msk [vmem:[#allocation2 + $0x220] sm:$0xff] %vm233, 0.0
        %303 = vst.msk [vmem:[#allocation2 + $0x228] sm:$0xff] %vm233, 0.0
        %304 = vst.msk [vmem:[#allocation2 + $0x230] sm:$0xff] %vm233, 0.0
        %305 = vst.msk [vmem:[#allocation2 + $0x238] sm:$0xff] %vm233, 0.0
        %306 = vst.msk [vmem:[#allocation2 + $0x240] sm:$0xff] %vm233, 0.0
        %307 = vst.msk [vmem:[#allocation2 + $0x248] sm:$0xff] %vm233, 0.0
        %308 = vst.msk [vmem:[#allocation2 + $0x250] sm:$0xff] %vm233, 0.0
        %309 = vst.msk [vmem:[#allocation2 + $0x258] sm:$0xff] %vm233, 0.0
        %310 = vst.msk [vmem:[#allocation2 + $0x260] sm:$0xff] %vm233, 0.0
        %311 = vst.msk [vmem:[#allocation2 + $0x268] sm:$0xff] %vm233, 0.0
        %312 = vst.msk [vmem:[#allocation2 + $0x270] sm:$0xff] %vm233, 0.0
        %313 = vst.msk [vmem:[#allocation2 + $0x278] sm:$0xff] %vm233, 0.0
        %314 = vst.msk [vmem:[#allocation2 + $0x280] sm:$0xff] %vm233, 0.0
        %315 = vst.msk [vmem:[#allocation2 + $0x288] sm:$0xff] %vm233, 0.0
        %316 = vst.msk [vmem:[#allocation2 + $0x290] sm:$0xff] %vm233, 0.0
        %317 = vst.msk [vmem:[#allocation2 + $0x298] sm:$0xff] %vm233, 0.0
        %318 = vst.msk [vmem:[#allocation2 + $0x2a0] sm:$0xff] %vm233, 0.0
        %319 = vst.msk [vmem:[#allocation2 + $0x2a8] sm:$0xff] %vm233, 0.0
        %320 = vst.msk [vmem:[#allocation2 + $0x2b0] sm:$0xff] %vm233, 0.0
        %321 = vst.msk [vmem:[#allocation2 + $0x2b8] sm:$0xff] %vm233, 0.0
        %322 = vst.msk [vmem:[#allocation2 + $0x2c0] sm:$0xff] %vm233, 0.0
        %323 = vst.msk [vmem:[#allocation2 + $0x2c8] sm:$0xff] %vm233, 0.0
        %324 = vst.msk [vmem:[#allocation2 + $0x2d0] sm:$0xff] %vm233, 0.0
        %325 = vst.msk [vmem:[#allocation2 + $0x2d8] sm:$0xff] %vm233, 0.0
        %326 = vst.msk [vmem:[#allocation2 + $0x2e0] sm:$0xff] %vm233, 0.0
        %327 = vst.msk [vmem:[#allocation2 + $0x2e8] sm:$0xff] %vm233, 0.0
        %328 = vst.msk [vmem:[#allocation2 + $0x2f0] sm:$0xff] %vm233, 0.0
        %329 = vst.msk [vmem:[#allocation2 + $0x2f8] sm:$0xff] %vm233, 0.0
        %330 = vst.msk [vmem:[#allocation2 + $0x300] sm:$0xff] %vm233, 0.0
        %331 = vst.msk [vmem:[#allocation2 + $0x308] sm:$0xff] %vm233, 0.0
        %332 = vst.msk [vmem:[#allocation2 + $0x310] sm:$0xff] %vm233, 0.0
        %333 = vst.msk [vmem:[#allocation2 + $0x318] sm:$0xff] %vm233, 0.0
        %334 = vst.msk [vmem:[#allocation2 + $0x320] sm:$0xff] %vm233, 0.0
        %335 = vst.msk [vmem:[#allocation2 + $0x328] sm:$0xff] %vm233, 0.0
        %336 = vst.msk [vmem:[#allocation2 + $0x330] sm:$0xff] %vm233, 0.0
        %337 = vst.msk [vmem:[#allocation2 + $0x338] sm:$0xff] %vm233, 0.0
        %338 = vst.msk [vmem:[#allocation2 + $0x340] sm:$0xff] %vm233, 0.0
        %339 = vst.msk [vmem:[#allocation2 + $0x348] sm:$0xff] %vm233, 0.0
        %340 = vst.msk [vmem:[#allocation2 + $0x350] sm:$0xff] %vm233, 0.0
        %341 = vst.msk [vmem:[#allocation2 + $0x358] sm:$0xff] %vm233, 0.0
        %342 = vst.msk [vmem:[#allocation2 + $0x360] sm:$0xff] %vm233, 0.0
        %343 = vst.msk [vmem:[#allocation2 + $0x368] sm:$0xff] %vm233, 0.0
        %344 = vst.msk [vmem:[#allocation2 + $0x370] sm:$0xff] %vm233, 0.0
        %345 = vst.msk [vmem:[#allocation2 + $0x378] sm:$0xff] %vm233, 0.0
        %346 = vst.msk [vmem:[#allocation2 + $0x380] sm:$0xff] %vm233, 0.0
        %347 = vst.msk [vmem:[#allocation2 + $0x388] sm:$0xff] %vm233, 0.0
        %348 = vst.msk [vmem:[#allocation2 + $0x390] sm:$0xff] %vm233, 0.0
        %349 = vst.msk [vmem:[#allocation2 + $0x398] sm:$0xff] %vm233, 0.0
        %350 = vst.msk [vmem:[#allocation2 + $0x3a0] sm:$0xff] %vm233, 0.0
        %351 = vst.msk [vmem:[#allocation2 + $0x3a8] sm:$0xff] %vm233, 0.0
        %352 = vst.msk [vmem:[#allocation2 + $0x3b0] sm:$0xff] %vm233, 0.0
        %353 = vst.msk [vmem:[#allocation2 + $0x3b8] sm:$0xff] %vm233, 0.0
        %354 = vst.msk [vmem:[#allocation2 + $0x3c0] sm:$0xff] %vm233, 0.0
        %355 = vst.msk [vmem:[#allocation2 + $0x3c8] sm:$0xff] %vm233, 0.0
        %356 = vst.msk [vmem:[#allocation2 + $0x3d0] sm:$0xff] %vm233, 0.0
        %357 = vst.msk [vmem:[#allocation2 + $0x3d8] sm:$0xff] %vm233, 0.0
        %358 = vst.msk [vmem:[#allocation2 + $0x3e0] sm:$0xff] %vm233, 0.0
        %359 = vst.msk [vmem:[#allocation2 + $0x3e8] sm:$0xff] %vm233, 0.0
        %360 = vst.msk [vmem:[#allocation2 + $0x3f0] sm:$0xff] %vm233, 0.0
        %361 = vst.msk [vmem:[#allocation2 + $0x3f8] sm:$0xff] %vm233, 0.0
        %362 = vst.msk [vmem:[#allocation3] sm:$0xff] %vm233, -inf
        %363 = vst.msk [vmem:[#allocation3 + $0x8] sm:$0xff] %vm233, -inf
        %364 = vst.msk [vmem:[#allocation3 + $0x10] sm:$0xff] %vm233, -inf
        %365 = vst.msk [vmem:[#allocation3 + $0x18] sm:$0xff] %vm233, -inf
        %366 = vst.msk [vmem:[#allocation3 + $0x20] sm:$0xff] %vm233, -inf
        %367 = vst.msk [vmem:[#allocation3 + $0x28] sm:$0xff] %vm233, -inf
        %368 = vst.msk [vmem:[#allocation3 + $0x30] sm:$0xff] %vm233, -inf
        %369 = vst.msk [vmem:[#allocation3 + $0x38] sm:$0xff] %vm233, -inf
        %370 = vst.msk [vmem:[#allocation3 + $0x40] sm:$0xff] %vm233, -inf
        %371 = vst.msk [vmem:[#allocation3 + $0x48] sm:$0xff] %vm233, -inf
        %372 = vst.msk [vmem:[#allocation3 + $0x50] sm:$0xff] %vm233, -inf
        %373 = vst.msk [vmem:[#allocation3 + $0x58] sm:$0xff] %vm233, -inf
        %374 = vst.msk [vmem:[#allocation3 + $0x60] sm:$0xff] %vm233, -inf
        %375 = vst.msk [vmem:[#allocation3 + $0x68] sm:$0xff] %vm233, -inf
        %376 = vst.msk [vmem:[#allocation3 + $0x70] sm:$0xff] %vm233, -inf
        %377 = vst.msk [vmem:[#allocation3 + $0x78] sm:$0xff] %vm233, -inf
        %378 = vst.msk [vmem:[#allocation3 + $0x80] sm:$0xff] %vm233, -inf
        %379 = vst.msk [vmem:[#allocation3 + $0x88] sm:$0xff] %vm233, -inf
        %380 = vst.msk [vmem:[#allocation3 + $0x90] sm:$0xff] %vm233, -inf
        %381 = vst.msk [vmem:[#allocation3 + $0x98] sm:$0xff] %vm233, -inf
        %382 = vst.msk [vmem:[#allocation3 + $0xa0] sm:$0xff] %vm233, -inf
        %383 = vst.msk [vmem:[#allocation3 + $0xa8] sm:$0xff] %vm233, -inf
        %384 = vst.msk [vmem:[#allocation3 + $0xb0] sm:$0xff] %vm233, -inf
        %385 = vst.msk [vmem:[#allocation3 + $0xb8] sm:$0xff] %vm233, -inf
        %386 = vst.msk [vmem:[#allocation3 + $0xc0] sm:$0xff] %vm233, -inf
        %387 = vst.msk [vmem:[#allocation3 + $0xc8] sm:$0xff] %vm233, -inf
        %388 = vst.msk [vmem:[#allocation3 + $0xd0] sm:$0xff] %vm233, -inf
        %389 = vst.msk [vmem:[#allocation3 + $0xd8] sm:$0xff] %vm233, -inf
        %390 = vst.msk [vmem:[#allocation3 + $0xe0] sm:$0xff] %vm233, -inf
        %391 = vst.msk [vmem:[#allocation3 + $0xe8] sm:$0xff] %vm233, -inf
        %392 = vst.msk [vmem:[#allocation3 + $0xf0] sm:$0xff] %vm233, -inf
        %393 = vst.msk [vmem:[#allocation3 + $0xf8] sm:$0xff] %vm233, -inf
        %394 = vst.msk [vmem:[#allocation3 + $0x100] sm:$0xff] %vm233, -inf
        %395 = vst.msk [vmem:[#allocation3 + $0x108] sm:$0xff] %vm233, -inf
        %396 = vst.msk [vmem:[#allocation3 + $0x110] sm:$0xff] %vm233, -inf
        %397 = vst.msk [vmem:[#allocation3 + $0x118] sm:$0xff] %vm233, -inf
        %398 = vst.msk [vmem:[#allocation3 + $0x120] sm:$0xff] %vm233, -inf
        %399 = vst.msk [vmem:[#allocation3 + $0x128] sm:$0xff] %vm233, -inf
        %400 = vst.msk [vmem:[#allocation3 + $0x130] sm:$0xff] %vm233, -inf
        %401 = vst.msk [vmem:[#allocation3 + $0x138] sm:$0xff] %vm233, -inf
        %402 = vst.msk [vmem:[#allocation3 + $0x140] sm:$0xff] %vm233, -inf
        %403 = vst.msk [vmem:[#allocation3 + $0x148] sm:$0xff] %vm233, -inf
        %404 = vst.msk [vmem:[#allocation3 + $0x150] sm:$0xff] %vm233, -inf
        %405 = vst.msk [vmem:[#allocation3 + $0x158] sm:$0xff] %vm233, -inf
        %406 = vst.msk [vmem:[#allocation3 + $0x160] sm:$0xff] %vm233, -inf
        %407 = vst.msk [vmem:[#allocation3 + $0x168] sm:$0xff] %vm233, -inf
        %408 = vst.msk [vmem:[#allocation3 + $0x170] sm:$0xff] %vm233, -inf
        %409 = vst.msk [vmem:[#allocation3 + $0x178] sm:$0xff] %vm233, -inf
        %410 = vst.msk [vmem:[#allocation3 + $0x180] sm:$0xff] %vm233, -inf
        %411 = vst.msk [vmem:[#allocation3 + $0x188] sm:$0xff] %vm233, -inf
        %412 = vst.msk [vmem:[#allocation3 + $0x190] sm:$0xff] %vm233, -inf
        %413 = vst.msk [vmem:[#allocation3 + $0x198] sm:$0xff] %vm233, -inf
        %414 = vst.msk [vmem:[#allocation3 + $0x1a0] sm:$0xff] %vm233, -inf
        %415 = vst.msk [vmem:[#allocation3 + $0x1a8] sm:$0xff] %vm233, -inf
        %416 = vst.msk [vmem:[#allocation3 + $0x1b0] sm:$0xff] %vm233, -inf
        %417 = vst.msk [vmem:[#allocation3 + $0x1b8] sm:$0xff] %vm233, -inf
        %418 = vst.msk [vmem:[#allocation3 + $0x1c0] sm:$0xff] %vm233, -inf
        %419 = vst.msk [vmem:[#allocation3 + $0x1c8] sm:$0xff] %vm233, -inf
        %420 = vst.msk [vmem:[#allocation3 + $0x1d0] sm:$0xff] %vm233, -inf
        %421 = vst.msk [vmem:[#allocation3 + $0x1d8] sm:$0xff] %vm233, -inf
        %422 = vst.msk [vmem:[#allocation3 + $0x1e0] sm:$0xff] %vm233, -inf
        %423 = vst.msk [vmem:[#allocation3 + $0x1e8] sm:$0xff] %vm233, -inf
        %424 = vst.msk [vmem:[#allocation3 + $0x1f0] sm:$0xff] %vm233, -inf
        %425 = vst.msk [vmem:[#allocation3 + $0x1f8] sm:$0xff] %vm233, -inf
        %426 = vst.msk [vmem:[#allocation3 + $0x200] sm:$0xff] %vm233, -inf
        %427 = vst.msk [vmem:[#allocation3 + $0x208] sm:$0xff] %vm233, -inf
        %428 = vst.msk [vmem:[#allocation3 + $0x210] sm:$0xff] %vm233, -inf
        %429 = vst.msk [vmem:[#allocation3 + $0x218] sm:$0xff] %vm233, -inf
        %430 = vst.msk [vmem:[#allocation3 + $0x220] sm:$0xff] %vm233, -inf
        %431 = vst.msk [vmem:[#allocation3 + $0x228] sm:$0xff] %vm233, -inf
        %432 = vst.msk [vmem:[#allocation3 + $0x230] sm:$0xff] %vm233, -inf
        %433 = vst.msk [vmem:[#allocation3 + $0x238] sm:$0xff] %vm233, -inf
        %434 = vst.msk [vmem:[#allocation3 + $0x240] sm:$0xff] %vm233, -inf
        %435 = vst.msk [vmem:[#allocation3 + $0x248] sm:$0xff] %vm233, -inf
        %436 = vst.msk [vmem:[#allocation3 + $0x250] sm:$0xff] %vm233, -inf
        %437 = vst.msk [vmem:[#allocation3 + $0x258] sm:$0xff] %vm233, -inf
        %438 = vst.msk [vmem:[#allocation3 + $0x260] sm:$0xff] %vm233, -inf
        %439 = vst.msk [vmem:[#allocation3 + $0x268] sm:$0xff] %vm233, -inf
        %440 = vst.msk [vmem:[#allocation3 + $0x270] sm:$0xff] %vm233, -inf
        %441 = vst.msk [vmem:[#allocation3 + $0x278] sm:$0xff] %vm233, -inf
        %442 = vst.msk [vmem:[#allocation3 + $0x280] sm:$0xff] %vm233, -inf
        %443 = vst.msk [vmem:[#allocation3 + $0x288] sm:$0xff] %vm233, -inf
        %444 = vst.msk [vmem:[#allocation3 + $0x290] sm:$0xff] %vm233, -inf
        %445 = vst.msk [vmem:[#allocation3 + $0x298] sm:$0xff] %vm233, -inf
        %446 = vst.msk [vmem:[#allocation3 + $0x2a0] sm:$0xff] %vm233, -inf
        %447 = vst.msk [vmem:[#allocation3 + $0x2a8] sm:$0xff] %vm233, -inf
        %448 = vst.msk [vmem:[#allocation3 + $0x2b0] sm:$0xff] %vm233, -inf
        %449 = vst.msk [vmem:[#allocation3 + $0x2b8] sm:$0xff] %vm233, -inf
        %450 = vst.msk [vmem:[#allocation3 + $0x2c0] sm:$0xff] %vm233, -inf
        %451 = vst.msk [vmem:[#allocation3 + $0x2c8] sm:$0xff] %vm233, -inf
        %452 = vst.msk [vmem:[#allocation3 + $0x2d0] sm:$0xff] %vm233, -inf
        %453 = vst.msk [vmem:[#allocation3 + $0x2d8] sm:$0xff] %vm233, -inf
        %454 = vst.msk [vmem:[#allocation3 + $0x2e0] sm:$0xff] %vm233, -inf
        %455 = vst.msk [vmem:[#allocation3 + $0x2e8] sm:$0xff] %vm233, -inf
        %456 = vst.msk [vmem:[#allocation3 + $0x2f0] sm:$0xff] %vm233, -inf
        %457 = vst.msk [vmem:[#allocation3 + $0x2f8] sm:$0xff] %vm233, -inf
        %458 = vst.msk [vmem:[#allocation3 + $0x300] sm:$0xff] %vm233, -inf
        %459 = vst.msk [vmem:[#allocation3 + $0x308] sm:$0xff] %vm233, -inf
        %460 = vst.msk [vmem:[#allocation3 + $0x310] sm:$0xff] %vm233, -inf
        %461 = vst.msk [vmem:[#allocation3 + $0x318] sm:$0xff] %vm233, -inf
        %462 = vst.msk [vmem:[#allocation3 + $0x320] sm:$0xff] %vm233, -inf
        %463 = vst.msk [vmem:[#allocation3 + $0x328] sm:$0xff] %vm233, -inf
        %464 = vst.msk [vmem:[#allocation3 + $0x330] sm:$0xff] %vm233, -inf
        %465 = vst.msk [vmem:[#allocation3 + $0x338] sm:$0xff] %vm233, -inf
        %466 = vst.msk [vmem:[#allocation3 + $0x340] sm:$0xff] %vm233, -inf
        %467 = vst.msk [vmem:[#allocation3 + $0x348] sm:$0xff] %vm233, -inf
        %468 = vst.msk [vmem:[#allocation3 + $0x350] sm:$0xff] %vm233, -inf
        %469 = vst.msk [vmem:[#allocation3 + $0x358] sm:$0xff] %vm233, -inf
        %470 = vst.msk [vmem:[#allocation3 + $0x360] sm:$0xff] %vm233, -inf
        %471 = vst.msk [vmem:[#allocation3 + $0x368] sm:$0xff] %vm233, -inf
        %472 = vst.msk [vmem:[#allocation3 + $0x370] sm:$0xff] %vm233, -inf
        %473 = vst.msk [vmem:[#allocation3 + $0x378] sm:$0xff] %vm233, -inf
        %474 = vst.msk [vmem:[#allocation3 + $0x380] sm:$0xff] %vm233, -inf
        %475 = vst.msk [vmem:[#allocation3 + $0x388] sm:$0xff] %vm233, -inf
        %476 = vst.msk [vmem:[#allocation3 + $0x390] sm:$0xff] %vm233, -inf
        %477 = vst.msk [vmem:[#allocation3 + $0x398] sm:$0xff] %vm233, -inf
        %478 = vst.msk [vmem:[#allocation3 + $0x3a0] sm:$0xff] %vm233, -inf
        %479 = vst.msk [vmem:[#allocation3 + $0x3a8] sm:$0xff] %vm233, -inf
        %480 = vst.msk [vmem:[#allocation3 + $0x3b0] sm:$0xff] %vm233, -inf
        %481 = vst.msk [vmem:[#allocation3 + $0x3b8] sm:$0xff] %vm233, -inf
        %482 = vst.msk [vmem:[#allocation3 + $0x3c0] sm:$0xff] %vm233, -inf
        %483 = vst.msk [vmem:[#allocation3 + $0x3c8] sm:$0xff] %vm233, -inf
        %484 = vst.msk [vmem:[#allocation3 + $0x3d0] sm:$0xff] %vm233, -inf
        %485 = vst.msk [vmem:[#allocation3 + $0x3d8] sm:$0xff] %vm233, -inf
        %486 = vst.msk [vmem:[#allocation3 + $0x3e0] sm:$0xff] %vm233, -inf
        %487 = vst.msk [vmem:[#allocation3 + $0x3e8] sm:$0xff] %vm233, -inf
        %488 = vst.msk [vmem:[#allocation3 + $0x3f0] sm:$0xff] %vm233, -inf
        %489 = vst.msk [vmem:[#allocation3 + $0x3f8] sm:$0xff] %vm233, -inf
      $region28: #{tpu_custom_call.1} parent=23 // pred_fallthru
        _
      %v490 = vld [vmem:[%s208] sm:$0xff]
      %v491 = vld [vmem:[%s208 + $0x8] sm:$0xff]
      %v492 = vld [vmem:[%s208 + $0x10] sm:$0xff]
      %v493 = vld [vmem:[%s208 + $0x18] sm:$0xff]
      %v494 = vld [vmem:[%s208 + $0x20] sm:$0xff]
      %v495 = vld [vmem:[%s208 + $0x28] sm:$0xff]
      %v496 = vld [vmem:[%s208 + $0x30] sm:$0xff]
      %v497 = vld [vmem:[%s208 + $0x38] sm:$0xff]
      %v498 = vld [vmem:[%s208 + $0x40] sm:$0xff]
      %v499 = vld [vmem:[%s208 + $0x48] sm:$0xff]
      %v500 = vld [vmem:[%s208 + $0x50] sm:$0xff]
      %v501 = vld [vmem:[%s208 + $0x58] sm:$0xff]
      %v502 = vld [vmem:[%s208 + $0x60] sm:$0xff]
      %v503 = vld [vmem:[%s208 + $0x68] sm:$0xff]
      %v504 = vld [vmem:[%s208 + $0x70] sm:$0xff]
      %v505 = vld [vmem:[%s208 + $0x78] sm:$0xff]
      %v506 = vld [vmem:[%s208 + $0x80] sm:$0xff]
      %v507 = vld [vmem:[%s208 + $0x88] sm:$0xff]
      %v508 = vld [vmem:[%s208 + $0x90] sm:$0xff]
      %v509 = vld [vmem:[%s208 + $0x98] sm:$0xff]
      %v510 = vld [vmem:[%s208 + $0xa0] sm:$0xff]
      %v511 = vld [vmem:[%s208 + $0xa8] sm:$0xff]
      %v512 = vld [vmem:[%s208 + $0xb0] sm:$0xff]
      %v513 = vld [vmem:[%s208 + $0xb8] sm:$0xff]
      %v514 = vld [vmem:[%s208 + $0xc0] sm:$0xff]
      %v515 = vld [vmem:[%s208 + $0xc8] sm:$0xff]
      %v516 = vld [vmem:[%s208 + $0xd0] sm:$0xff]
      %v517 = vld [vmem:[%s208 + $0xd8] sm:$0xff]
      %v518 = vld [vmem:[%s208 + $0xe0] sm:$0xff]
      %v519 = vld [vmem:[%s208 + $0xe8] sm:$0xff]
      %v520 = vld [vmem:[%s208 + $0xf0] sm:$0xff]
      %v521 = vld [vmem:[%s208 + $0xf8] sm:$0xff]
      %v522 = vld [vmem:[%s208 + $0x100] sm:$0xff]
      %v523 = vld [vmem:[%s208 + $0x108] sm:$0xff]
      %v524 = vld [vmem:[%s208 + $0x110] sm:$0xff]
      %v525 = vld [vmem:[%s208 + $0x118] sm:$0xff]
      %v526 = vld [vmem:[%s208 + $0x120] sm:$0xff]
      %v527 = vld [vmem:[%s208 + $0x128] sm:$0xff]
      %v528 = vld [vmem:[%s208 + $0x130] sm:$0xff]
      %v529 = vld [vmem:[%s208 + $0x138] sm:$0xff]
      %v530 = vld [vmem:[%s208 + $0x140] sm:$0xff]
      %v531 = vld [vmem:[%s208 + $0x148] sm:$0xff]
      %v532 = vld [vmem:[%s208 + $0x150] sm:$0xff]
      %v533 = vld [vmem:[%s208 + $0x158] sm:$0xff]
      %v534 = vld [vmem:[%s208 + $0x160] sm:$0xff]
      %v535 = vld [vmem:[%s208 + $0x168] sm:$0xff]
      %v536 = vld [vmem:[%s208 + $0x170] sm:$0xff]
      %v537 = vld [vmem:[%s208 + $0x178] sm:$0xff]
      %v538 = vld [vmem:[%s208 + $0x180] sm:$0xff]
      %v539 = vld [vmem:[%s208 + $0x188] sm:$0xff]
      %v540 = vld [vmem:[%s208 + $0x190] sm:$0xff]
      %v541 = vld [vmem:[%s208 + $0x198] sm:$0xff]
      %v542 = vld [vmem:[%s208 + $0x1a0] sm:$0xff]
      %v543 = vld [vmem:[%s208 + $0x1a8] sm:$0xff]
      %v544 = vld [vmem:[%s208 + $0x1b0] sm:$0xff]
      %v545 = vld [vmem:[%s208 + $0x1b8] sm:$0xff]
      %v546 = vld [vmem:[%s208 + $0x1c0] sm:$0xff]
      %v547 = vld [vmem:[%s208 + $0x1c8] sm:$0xff]
      %v548 = vld [vmem:[%s208 + $0x1d0] sm:$0xff]
      %v549 = vld [vmem:[%s208 + $0x1d8] sm:$0xff]
      %v550 = vld [vmem:[%s208 + $0x1e0] sm:$0xff]
      %v551 = vld [vmem:[%s208 + $0x1e8] sm:$0xff]
      %v552 = vld [vmem:[%s208 + $0x1f0] sm:$0xff]
      %v553 = vld [vmem:[%s208 + $0x1f8] sm:$0xff]
      %v554 = vld [vmem:[%s208 + $0x200] sm:$0xff]
      %v555 = vld [vmem:[%s208 + $0x208] sm:$0xff]
      %v556 = vld [vmem:[%s208 + $0x210] sm:$0xff]
      %v557 = vld [vmem:[%s208 + $0x218] sm:$0xff]
      %v558 = vld [vmem:[%s208 + $0x220] sm:$0xff]
      %v559 = vld [vmem:[%s208 + $0x228] sm:$0xff]
      %v560 = vld [vmem:[%s208 + $0x230] sm:$0xff]
      %v561 = vld [vmem:[%s208 + $0x238] sm:$0xff]
      %v562 = vld [vmem:[%s208 + $0x240] sm:$0xff]
      %v563 = vld [vmem:[%s208 + $0x248] sm:$0xff]
      %v564 = vld [vmem:[%s208 + $0x250] sm:$0xff]
      %v565 = vld [vmem:[%s208 + $0x258] sm:$0xff]
      %v566 = vld [vmem:[%s208 + $0x260] sm:$0xff]
      %v567 = vld [vmem:[%s208 + $0x268] sm:$0xff]
      %v568 = vld [vmem:[%s208 + $0x270] sm:$0xff]
      %v569 = vld [vmem:[%s208 + $0x278] sm:$0xff]
      %v570 = vld [vmem:[%s208 + $0x280] sm:$0xff]
      %v571 = vld [vmem:[%s208 + $0x288] sm:$0xff]
      %v572 = vld [vmem:[%s208 + $0x290] sm:$0xff]
      %v573 = vld [vmem:[%s208 + $0x298] sm:$0xff]
      %v574 = vld [vmem:[%s208 + $0x2a0] sm:$0xff]
      %v575 = vld [vmem:[%s208 + $0x2a8] sm:$0xff]
      %v576 = vld [vmem:[%s208 + $0x2b0] sm:$0xff]
      %v577 = vld [vmem:[%s208 + $0x2b8] sm:$0xff]
      %v578 = vld [vmem:[%s208 + $0x2c0] sm:$0xff]
      %v579 = vld [vmem:[%s208 + $0x2c8] sm:$0xff]
      %v580 = vld [vmem:[%s208 + $0x2d0] sm:$0xff]
      %v581 = vld [vmem:[%s208 + $0x2d8] sm:$0xff]
      %v582 = vld [vmem:[%s208 + $0x2e0] sm:$0xff]
      %v583 = vld [vmem:[%s208 + $0x2e8] sm:$0xff]
      %v584 = vld [vmem:[%s208 + $0x2f0] sm:$0xff]
      %v585 = vld [vmem:[%s208 + $0x2f8] sm:$0xff]
      %v586 = vld [vmem:[%s208 + $0x300] sm:$0xff]
      %v587 = vld [vmem:[%s208 + $0x308] sm:$0xff]
      %v588 = vld [vmem:[%s208 + $0x310] sm:$0xff]
      %v589 = vld [vmem:[%s208 + $0x318] sm:$0xff]
      %v590 = vld [vmem:[%s208 + $0x320] sm:$0xff]
      %v591 = vld [vmem:[%s208 + $0x328] sm:$0xff]
      %v592 = vld [vmem:[%s208 + $0x330] sm:$0xff]
      %v593 = vld [vmem:[%s208 + $0x338] sm:$0xff]
      %v594 = vld [vmem:[%s208 + $0x340] sm:$0xff]
      %v595 = vld [vmem:[%s208 + $0x348] sm:$0xff]
      %v596 = vld [vmem:[%s208 + $0x350] sm:$0xff]
      %v597 = vld [vmem:[%s208 + $0x358] sm:$0xff]
      %v598 = vld [vmem:[%s208 + $0x360] sm:$0xff]
      %v599 = vld [vmem:[%s208 + $0x368] sm:$0xff]
      %v600 = vld [vmem:[%s208 + $0x370] sm:$0xff]
      %v601 = vld [vmem:[%s208 + $0x378] sm:$0xff]
      %v602 = vld [vmem:[%s208 + $0x380] sm:$0xff]
      %v603 = vld [vmem:[%s208 + $0x388] sm:$0xff]
      %v604 = vld [vmem:[%s208 + $0x390] sm:$0xff]
      %v605 = vld [vmem:[%s208 + $0x398] sm:$0xff]
      %v606 = vld [vmem:[%s208 + $0x3a0] sm:$0xff]
      %v607 = vld [vmem:[%s208 + $0x3a8] sm:$0xff]
      %v608 = vld [vmem:[%s208 + $0x3b0] sm:$0xff]
      %v609 = vld [vmem:[%s208 + $0x3b8] sm:$0xff]
      %v610 = vld [vmem:[%s208 + $0x3c0] sm:$0xff]
      %v611 = vld [vmem:[%s208 + $0x3c8] sm:$0xff]
      %v612 = vld [vmem:[%s208 + $0x3d0] sm:$0xff]
      %v613 = vld [vmem:[%s208 + $0x3d8] sm:$0xff]
      %v614 = vld [vmem:[%s208 + $0x3e0] sm:$0xff]
      %v615 = vld [vmem:[%s208 + $0x3e8] sm:$0xff]
      %v616 = vld [vmem:[%s208 + $0x3f0] sm:$0xff]
      %v617 = vld [vmem:[%s208 + $0x3f8] sm:$0xff]
      %v618 = vld [vmem:[#allocation2] sm:$0xff]
      %v619 = vld [vmem:[#allocation2 + $0x8] sm:$0xff]
      %v620 = vld [vmem:[#allocation2 + $0x10] sm:$0xff]
      %v621 = vld [vmem:[#allocation2 + $0x18] sm:$0xff]
      %v622 = vld [vmem:[#allocation2 + $0x20] sm:$0xff]
      %v623 = vld [vmem:[#allocation2 + $0x28] sm:$0xff]
      %v624 = vld [vmem:[#allocation2 + $0x30] sm:$0xff]
      %v625 = vld [vmem:[#allocation2 + $0x38] sm:$0xff]
      %v626 = vld [vmem:[#allocation2 + $0x40] sm:$0xff]
      %v627 = vld [vmem:[#allocation2 + $0x48] sm:$0xff]
      %v628 = vld [vmem:[#allocation2 + $0x50] sm:$0xff]
      %v629 = vld [vmem:[#allocation2 + $0x58] sm:$0xff]
      %v630 = vld [vmem:[#allocation2 + $0x60] sm:$0xff]
      %v631 = vld [vmem:[#allocation2 + $0x68] sm:$0xff]
      %v632 = vld [vmem:[#allocation2 + $0x70] sm:$0xff]
      %v633 = vld [vmem:[#allocation2 + $0x78] sm:$0xff]
      %v634 = vld [vmem:[#allocation2 + $0x80] sm:$0xff]
      %v635 = vld [vmem:[#allocation2 + $0x88] sm:$0xff]
      %v636 = vld [vmem:[#allocation2 + $0x90] sm:$0xff]
      %v637 = vld [vmem:[#allocation2 + $0x98] sm:$0xff]
      %v638 = vld [vmem:[#allocation2 + $0xa0] sm:$0xff]
      %v639 = vld [vmem:[#allocation2 + $0xa8] sm:$0xff]
      %v640 = vld [vmem:[#allocation2 + $0xb0] sm:$0xff]
      %v641 = vld [vmem:[#allocation2 + $0xb8] sm:$0xff]
      %v642 = vld [vmem:[#allocation2 + $0xc0] sm:$0xff]
      %v643 = vld [vmem:[#allocation2 + $0xc8] sm:$0xff]
      %v644 = vld [vmem:[#allocation2 + $0xd0] sm:$0xff]
      %v645 = vld [vmem:[#allocation2 + $0xd8] sm:$0xff]
      %v646 = vld [vmem:[#allocation2 + $0xe0] sm:$0xff]
      %v647 = vld [vmem:[#allocation2 + $0xe8] sm:$0xff]
      %v648 = vld [vmem:[#allocation2 + $0xf0] sm:$0xff]
      %v649 = vld [vmem:[#allocation2 + $0xf8] sm:$0xff]
      %v650 = vld [vmem:[#allocation2 + $0x100] sm:$0xff]
      %v651 = vld [vmem:[#allocation2 + $0x108] sm:$0xff]
      %v652 = vld [vmem:[#allocation2 + $0x110] sm:$0xff]
      %v653 = vld [vmem:[#allocation2 + $0x118] sm:$0xff]
      %v654 = vld [vmem:[#allocation2 + $0x120] sm:$0xff]
      %v655 = vld [vmem:[#allocation2 + $0x128] sm:$0xff]
      %v656 = vld [vmem:[#allocation2 + $0x130] sm:$0xff]
      %v657 = vld [vmem:[#allocation2 + $0x138] sm:$0xff]
      %v658 = vld [vmem:[#allocation2 + $0x140] sm:$0xff]
      %v659 = vld [vmem:[#allocation2 + $0x148] sm:$0xff]
      %v660 = vld [vmem:[#allocation2 + $0x150] sm:$0xff]
      %v661 = vld [vmem:[#allocation2 + $0x158] sm:$0xff]
      %v662 = vld [vmem:[#allocation2 + $0x160] sm:$0xff]
      %v663 = vld [vmem:[#allocation2 + $0x168] sm:$0xff]
      %v664 = vld [vmem:[#allocation2 + $0x170] sm:$0xff]
      %v665 = vld [vmem:[#allocation2 + $0x178] sm:$0xff]
      %v666 = vld [vmem:[#allocation2 + $0x180] sm:$0xff]
      %v667 = vld [vmem:[#allocation2 + $0x188] sm:$0xff]
      %v668 = vld [vmem:[#allocation2 + $0x190] sm:$0xff]
      %v669 = vld [vmem:[#allocation2 + $0x198] sm:$0xff]
      %v670 = vld [vmem:[#allocation2 + $0x1a0] sm:$0xff]
      %v671 = vld [vmem:[#allocation2 + $0x1a8] sm:$0xff]
      %v672 = vld [vmem:[#allocation2 + $0x1b0] sm:$0xff]
      %v673 = vld [vmem:[#allocation2 + $0x1b8] sm:$0xff]
      %v674 = vld [vmem:[#allocation2 + $0x1c0] sm:$0xff]
      %v675 = vld [vmem:[#allocation2 + $0x1c8] sm:$0xff]
      %v676 = vld [vmem:[#allocation2 + $0x1d0] sm:$0xff]
      %v677 = vld [vmem:[#allocation2 + $0x1d8] sm:$0xff]
      %v678 = vld [vmem:[#allocation2 + $0x1e0] sm:$0xff]
      %v679 = vld [vmem:[#allocation2 + $0x1e8] sm:$0xff]
      %v680 = vld [vmem:[#allocation2 + $0x1f0] sm:$0xff]
      %v681 = vld [vmem:[#allocation2 + $0x1f8] sm:$0xff]
      %v682 = vld [vmem:[#allocation2 + $0x200] sm:$0xff]
      %v683 = vld [vmem:[#allocation2 + $0x208] sm:$0xff]
      %v684 = vld [vmem:[#allocation2 + $0x210] sm:$0xff]
      %v685 = vld [vmem:[#allocation2 + $0x218] sm:$0xff]
      %v686 = vld [vmem:[#allocation2 + $0x220] sm:$0xff]
      %v687 = vld [vmem:[#allocation2 + $0x228] sm:$0xff]
      %v688 = vld [vmem:[#allocation2 + $0x230] sm:$0xff]
      %v689 = vld [vmem:[#allocation2 + $0x238] sm:$0xff]
      %v690 = vld [vmem:[#allocation2 + $0x240] sm:$0xff]
      %v691 = vld [vmem:[#allocation2 + $0x248] sm:$0xff]
      %v692 = vld [vmem:[#allocation2 + $0x250] sm:$0xff]
      %v693 = vld [vmem:[#allocation2 + $0x258] sm:$0xff]
      %v694 = vld [vmem:[#allocation2 + $0x260] sm:$0xff]
      %v695 = vld [vmem:[#allocation2 + $0x268] sm:$0xff]
      %v696 = vld [vmem:[#allocation2 + $0x270] sm:$0xff]
      %v697 = vld [vmem:[#allocation2 + $0x278] sm:$0xff]
      %v698 = vld [vmem:[#allocation2 + $0x280] sm:$0xff]
      %v699 = vld [vmem:[#allocation2 + $0x288] sm:$0xff]
      %v700 = vld [vmem:[#allocation2 + $0x290] sm:$0xff]
      %v701 = vld [vmem:[#allocation2 + $0x298] sm:$0xff]
      %v702 = vld [vmem:[#allocation2 + $0x2a0] sm:$0xff]
      %v703 = vld [vmem:[#allocation2 + $0x2a8] sm:$0xff]
      %v704 = vld [vmem:[#allocation2 + $0x2b0] sm:$0xff]
      %v705 = vld [vmem:[#allocation2 + $0x2b8] sm:$0xff]
      %v706 = vld [vmem:[#allocation2 + $0x2c0] sm:$0xff]
      %v707 = vld [vmem:[#allocation2 + $0x2c8] sm:$0xff]
      %v708 = vld [vmem:[#allocation2 + $0x2d0] sm:$0xff]
      %v709 = vld [vmem:[#allocation2 + $0x2d8] sm:$0xff]
      %v710 = vld [vmem:[#allocation2 + $0x2e0] sm:$0xff]
      %v711 = vld [vmem:[#allocation2 + $0x2e8] sm:$0xff]
      %v712 = vld [vmem:[#allocation2 + $0x2f0] sm:$0xff]
      %v713 = vld [vmem:[#allocation2 + $0x2f8] sm:$0xff]
      %v714 = vld [vmem:[#allocation2 + $0x300] sm:$0xff]
      %v715 = vld [vmem:[#allocation2 + $0x308] sm:$0xff]
      %v716 = vld [vmem:[#allocation2 + $0x310] sm:$0xff]
      %v717 = vld [vmem:[#allocation2 + $0x318] sm:$0xff]
      %v718 = vld [vmem:[#allocation2 + $0x320] sm:$0xff]
      %v719 = vld [vmem:[#allocation2 + $0x328] sm:$0xff]
      %v720 = vld [vmem:[#allocation2 + $0x330] sm:$0xff]
      %v721 = vld [vmem:[#allocation2 + $0x338] sm:$0xff]
      %v722 = vld [vmem:[#allocation2 + $0x340] sm:$0xff]
      %v723 = vld [vmem:[#allocation2 + $0x348] sm:$0xff]
      %v724 = vld [vmem:[#allocation2 + $0x350] sm:$0xff]
      %v725 = vld [vmem:[#allocation2 + $0x358] sm:$0xff]
      %v726 = vld [vmem:[#allocation2 + $0x360] sm:$0xff]
      %v727 = vld [vmem:[#allocation2 + $0x368] sm:$0xff]
      %v728 = vld [vmem:[#allocation2 + $0x370] sm:$0xff]
      %v729 = vld [vmem:[#allocation2 + $0x378] sm:$0xff]
      %v730 = vld [vmem:[#allocation2 + $0x380] sm:$0xff]
      %v731 = vld [vmem:[#allocation2 + $0x388] sm:$0xff]
      %v732 = vld [vmem:[#allocation2 + $0x390] sm:$0xff]
      %v733 = vld [vmem:[#allocation2 + $0x398] sm:$0xff]
      %v734 = vld [vmem:[#allocation2 + $0x3a0] sm:$0xff]
      %v735 = vld [vmem:[#allocation2 + $0x3a8] sm:$0xff]
      %v736 = vld [vmem:[#allocation2 + $0x3b0] sm:$0xff]
      %v737 = vld [vmem:[#allocation2 + $0x3b8] sm:$0xff]
      %v738 = vld [vmem:[#allocation2 + $0x3c0] sm:$0xff]
      %v739 = vld [vmem:[#allocation2 + $0x3c8] sm:$0xff]
      %v740 = vld [vmem:[#allocation2 + $0x3d0] sm:$0xff]
      %v741 = vld [vmem:[#allocation2 + $0x3d8] sm:$0xff]
      %v742 = vld [vmem:[#allocation2 + $0x3e0] sm:$0xff]
      %v743 = vld [vmem:[#allocation2 + $0x3e8] sm:$0xff]
      %v744 = vld [vmem:[#allocation2 + $0x3f0] sm:$0xff]
      %v745 = vld [vmem:[#allocation2 + $0x3f8] sm:$0xff]
      %v746 = vadd.f32 %v618, %v490
      %v747 = vadd.f32 %v619, %v491
      %v748 = vadd.f32 %v620, %v492
      %v749 = vadd.f32 %v621, %v493
      %v750 = vadd.f32 %v622, %v494
      %v751 = vadd.f32 %v623, %v495
      %v752 = vadd.f32 %v624, %v496
      %v753 = vadd.f32 %v625, %v497
      %v754 = vadd.f32 %v626, %v498
      %v755 = vadd.f32 %v627, %v499
      %v756 = vadd.f32 %v628, %v500
      %v757 = vadd.f32 %v629, %v501
      %v758 = vadd.f32 %v630, %v502
      %v759 = vadd.f32 %v631, %v503
      %v760 = vadd.f32 %v632, %v504
      %v761 = vadd.f32 %v633, %v505
      %v762 = vadd.f32 %v634, %v506
      %v763 = vadd.f32 %v635, %v507
      %v764 = vadd.f32 %v636, %v508
      %v765 = vadd.f32 %v637, %v509
      %v766 = vadd.f32 %v638, %v510
      %v767 = vadd.f32 %v639, %v511
      %v768 = vadd.f32 %v640, %v512
      %v769 = vadd.f32 %v641, %v513
      %v770 = vadd.f32 %v642, %v514
      %v771 = vadd.f32 %v643, %v515
      %v772 = vadd.f32 %v644, %v516
      %v773 = vadd.f32 %v645, %v517
      %v774 = vadd.f32 %v646, %v518
      %v775 = vadd.f32 %v647, %v519
      %v776 = vadd.f32 %v648, %v520
      %v777 = vadd.f32 %v649, %v521
      %v778 = vadd.f32 %v650, %v522
      %v779 = vadd.f32 %v651, %v523
      %v780 = vadd.f32 %v652, %v524
      %v781 = vadd.f32 %v653, %v525
      %v782 = vadd.f32 %v654, %v526
      %v783 = vadd.f32 %v655, %v527
      %v784 = vadd.f32 %v656, %v528
      %v785 = vadd.f32 %v657, %v529
      %v786 = vadd.f32 %v658, %v530
      %v787 = vadd.f32 %v659, %v531
      %v788 = vadd.f32 %v660, %v532
      %v789 = vadd.f32 %v661, %v533
      %v790 = vadd.f32 %v662, %v534
      %v791 = vadd.f32 %v663, %v535
      %v792 = vadd.f32 %v664, %v536
      %v793 = vadd.f32 %v665, %v537
      %v794 = vadd.f32 %v666, %v538
      %v795 = vadd.f32 %v667, %v539
      %v796 = vadd.f32 %v668, %v540
      %v797 = vadd.f32 %v669, %v541
      %v798 = vadd.f32 %v670, %v542
      %v799 = vadd.f32 %v671, %v543
      %v800 = vadd.f32 %v672, %v544
      %v801 = vadd.f32 %v673, %v545
      %v802 = vadd.f32 %v674, %v546
      %v803 = vadd.f32 %v675, %v547
      %v804 = vadd.f32 %v676, %v548
      %v805 = vadd.f32 %v677, %v549
      %v806 = vadd.f32 %v678, %v550
      %v807 = vadd.f32 %v679, %v551
      %v808 = vadd.f32 %v680, %v552
      %v809 = vadd.f32 %v681, %v553
      %v810 = vadd.f32 %v682, %v554
      %v811 = vadd.f32 %v683, %v555
      %v812 = vadd.f32 %v684, %v556
      %v813 = vadd.f32 %v685, %v557
      %v814 = vadd.f32 %v686, %v558
      %v815 = vadd.f32 %v687, %v559
      %v816 = vadd.f32 %v688, %v560
      %v817 = vadd.f32 %v689, %v561
      %v818 = vadd.f32 %v690, %v562
      %v819 = vadd.f32 %v691, %v563
      %v820 = vadd.f32 %v692, %v564
      %v821 = vadd.f32 %v693, %v565
      %v822 = vadd.f32 %v694, %v566
      %v823 = vadd.f32 %v695, %v567
      %v824 = vadd.f32 %v696, %v568
      %v825 = vadd.f32 %v697, %v569
      %v826 = vadd.f32 %v698, %v570
      %v827 = vadd.f32 %v699, %v571
      %v828 = vadd.f32 %v700, %v572
      %v829 = vadd.f32 %v701, %v573
      %v830 = vadd.f32 %v702, %v574
      %v831 = vadd.f32 %v703, %v575
      %v832 = vadd.f32 %v704, %v576
      %v833 = vadd.f32 %v705, %v577
      %v834 = vadd.f32 %v706, %v578
      %v835 = vadd.f32 %v707, %v579
      %v836 = vadd.f32 %v708, %v580
      %v837 = vadd.f32 %v709, %v581
      %v838 = vadd.f32 %v710, %v582
      %v839 = vadd.f32 %v711, %v583
      %v840 = vadd.f32 %v712, %v584
      %v841 = vadd.f32 %v713, %v585
      %v842 = vadd.f32 %v714, %v586
      %v843 = vadd.f32 %v715, %v587
      %v844 = vadd.f32 %v716, %v588
      %v845 = vadd.f32 %v717, %v589
      %v846 = vadd.f32 %v718, %v590
      %v847 = vadd.f32 %v719, %v591
      %v848 = vadd.f32 %v720, %v592
      %v849 = vadd.f32 %v721, %v593
      %v850 = vadd.f32 %v722, %v594
      %v851 = vadd.f32 %v723, %v595
      %v852 = vadd.f32 %v724, %v596
      %v853 = vadd.f32 %v725, %v597
      %v854 = vadd.f32 %v726, %v598
      %v855 = vadd.f32 %v727, %v599
      %v856 = vadd.f32 %v728, %v600
      %v857 = vadd.f32 %v729, %v601
      %v858 = vadd.f32 %v730, %v602
      %v859 = vadd.f32 %v731, %v603
      %v860 = vadd.f32 %v732, %v604
      %v861 = vadd.f32 %v733, %v605
      %v862 = vadd.f32 %v734, %v606
      %v863 = vadd.f32 %v735, %v607
      %v864 = vadd.f32 %v736, %v608
      %v865 = vadd.f32 %v737, %v609
      %v866 = vadd.f32 %v738, %v610
      %v867 = vadd.f32 %v739, %v611
      %v868 = vadd.f32 %v740, %v612
      %v869 = vadd.f32 %v741, %v613
      %v870 = vadd.f32 %v742, %v614
      %v871 = vadd.f32 %v743, %v615
      %v872 = vadd.f32 %v744, %v616
      %v873 = vadd.f32 %v745, %v617
      %vm874 = vcmask 130048
      %875 = vst.msk [vmem:[#allocation2] sm:$0xff] %vm874, %v746
      %876 = vst.msk [vmem:[#allocation2 + $0x8] sm:$0xff] %vm874, %v747
      %877 = vst.msk [vmem:[#allocation2 + $0x10] sm:$0xff] %vm874, %v748
      %878 = vst.msk [vmem:[#allocation2 + $0x18] sm:$0xff] %vm874, %v749
      %879 = vst.msk [vmem:[#allocation2 + $0x20] sm:$0xff] %vm874, %v750
      %880 = vst.msk [vmem:[#allocation2 + $0x28] sm:$0xff] %vm874, %v751
      %881 = vst.msk [vmem:[#allocation2 + $0x30] sm:$0xff] %vm874, %v752
      %882 = vst.msk [vmem:[#allocation2 + $0x38] sm:$0xff] %vm874, %v753
      %883 = vst.msk [vmem:[#allocation2 + $0x40] sm:$0xff] %vm874, %v754
      %884 = vst.msk [vmem:[#allocation2 + $0x48] sm:$0xff] %vm874, %v755
      %885 = vst.msk [vmem:[#allocation2 + $0x50] sm:$0xff] %vm874, %v756
      %886 = vst.msk [vmem:[#allocation2 + $0x58] sm:$0xff] %vm874, %v757
      %887 = vst.msk [vmem:[#allocation2 + $0x60] sm:$0xff] %vm874, %v758
      %888 = vst.msk [vmem:[#allocation2 + $0x68] sm:$0xff] %vm874, %v759
      %889 = vst.msk [vmem:[#allocation2 + $0x70] sm:$0xff] %vm874, %v760
      %890 = vst.msk [vmem:[#allocation2 + $0x78] sm:$0xff] %vm874, %v761
      %891 = vst.msk [vmem:[#allocation2 + $0x80] sm:$0xff] %vm874, %v762
      %892 = vst.msk [vmem:[#allocation2 + $0x88] sm:$0xff] %vm874, %v763
      %893 = vst.msk [vmem:[#allocation2 + $0x90] sm:$0xff] %vm874, %v764
      %894 = vst.msk [vmem:[#allocation2 + $0x98] sm:$0xff] %vm874, %v765
      %895 = vst.msk [vmem:[#allocation2 + $0xa0] sm:$0xff] %vm874, %v766
      %896 = vst.msk [vmem:[#allocation2 + $0xa8] sm:$0xff] %vm874, %v767
      %897 = vst.msk [vmem:[#allocation2 + $0xb0] sm:$0xff] %vm874, %v768
      %898 = vst.msk [vmem:[#allocation2 + $0xb8] sm:$0xff] %vm874, %v769
      %899 = vst.msk [vmem:[#allocation2 + $0xc0] sm:$0xff] %vm874, %v770
      %900 = vst.msk [vmem:[#allocation2 + $0xc8] sm:$0xff] %vm874, %v771
      %901 = vst.msk [vmem:[#allocation2 + $0xd0] sm:$0xff] %vm874, %v772
      %902 = vst.msk [vmem:[#allocation2 + $0xd8] sm:$0xff] %vm874, %v773
      %903 = vst.msk [vmem:[#allocation2 + $0xe0] sm:$0xff] %vm874, %v774
      %904 = vst.msk [vmem:[#allocation2 + $0xe8] sm:$0xff] %vm874, %v775
      %905 = vst.msk [vmem:[#allocation2 + $0xf0] sm:$0xff] %vm874, %v776
      %906 = vst.msk [vmem:[#allocation2 + $0xf8] sm:$0xff] %vm874, %v777
      %907 = vst.msk [vmem:[#allocation2 + $0x100] sm:$0xff] %vm874, %v778
      %908 = vst.msk [vmem:[#allocation2 + $0x108] sm:$0xff] %vm874, %v779
      %909 = vst.msk [vmem:[#allocation2 + $0x110] sm:$0xff] %vm874, %v780
      %910 = vst.msk [vmem:[#allocation2 + $0x118] sm:$0xff] %vm874, %v781
      %911 = vst.msk [vmem:[#allocation2 + $0x120] sm:$0xff] %vm874, %v782
      %912 = vst.msk [vmem:[#allocation2 + $0x128] sm:$0xff] %vm874, %v783
      %913 = vst.msk [vmem:[#allocation2 + $0x130] sm:$0xff] %vm874, %v784
      %914 = vst.msk [vmem:[#allocation2 + $0x138] sm:$0xff] %vm874, %v785
      %915 = vst.msk [vmem:[#allocation2 + $0x140] sm:$0xff] %vm874, %v786
      %916 = vst.msk [vmem:[#allocation2 + $0x148] sm:$0xff] %vm874, %v787
      %917 = vst.msk [vmem:[#allocation2 + $0x150] sm:$0xff] %vm874, %v788
      %918 = vst.msk [vmem:[#allocation2 + $0x158] sm:$0xff] %vm874, %v789
      %919 = vst.msk [vmem:[#allocation2 + $0x160] sm:$0xff] %vm874, %v790
      %920 = vst.msk [vmem:[#allocation2 + $0x168] sm:$0xff] %vm874, %v791
      %921 = vst.msk [vmem:[#allocation2 + $0x170] sm:$0xff] %vm874, %v792
      %922 = vst.msk [vmem:[#allocation2 + $0x178] sm:$0xff] %vm874, %v793
      %923 = vst.msk [vmem:[#allocation2 + $0x180] sm:$0xff] %vm874, %v794
      %924 = vst.msk [vmem:[#allocation2 + $0x188] sm:$0xff] %vm874, %v795
      %925 = vst.msk [vmem:[#allocation2 + $0x190] sm:$0xff] %vm874, %v796
      %926 = vst.msk [vmem:[#allocation2 + $0x198] sm:$0xff] %vm874, %v797
      %927 = vst.msk [vmem:[#allocation2 + $0x1a0] sm:$0xff] %vm874, %v798
      %928 = vst.msk [vmem:[#allocation2 + $0x1a8] sm:$0xff] %vm874, %v799
      %929 = vst.msk [vmem:[#allocation2 + $0x1b0] sm:$0xff] %vm874, %v800
      %930 = vst.msk [vmem:[#allocation2 + $0x1b8] sm:$0xff] %vm874, %v801
      %931 = vst.msk [vmem:[#allocation2 + $0x1c0] sm:$0xff] %vm874, %v802
      %932 = vst.msk [vmem:[#allocation2 + $0x1c8] sm:$0xff] %vm874, %v803
      %933 = vst.msk [vmem:[#allocation2 + $0x1d0] sm:$0xff] %vm874, %v804
      %934 = vst.msk [vmem:[#allocation2 + $0x1d8] sm:$0xff] %vm874, %v805
      %935 = vst.msk [vmem:[#allocation2 + $0x1e0] sm:$0xff] %vm874, %v806
      %936 = vst.msk [vmem:[#allocation2 + $0x1e8] sm:$0xff] %vm874, %v807
      %937 = vst.msk [vmem:[#allocation2 + $0x1f0] sm:$0xff] %vm874, %v808
      %938 = vst.msk [vmem:[#allocation2 + $0x1f8] sm:$0xff] %vm874, %v809
      %939 = vst.msk [vmem:[#allocation2 + $0x200] sm:$0xff] %vm874, %v810
      %940 = vst.msk [vmem:[#allocation2 + $0x208] sm:$0xff] %vm874, %v811
      %941 = vst.msk [vmem:[#allocation2 + $0x210] sm:$0xff] %vm874, %v812
      %942 = vst.msk [vmem:[#allocation2 + $0x218] sm:$0xff] %vm874, %v813
      %943 = vst.msk [vmem:[#allocation2 + $0x220] sm:$0xff] %vm874, %v814
      %944 = vst.msk [vmem:[#allocation2 + $0x228] sm:$0xff] %vm874, %v815
      %945 = vst.msk [vmem:[#allocation2 + $0x230] sm:$0xff] %vm874, %v816
      %946 = vst.msk [vmem:[#allocation2 + $0x238] sm:$0xff] %vm874, %v817
      %947 = vst.msk [vmem:[#allocation2 + $0x240] sm:$0xff] %vm874, %v818
      %948 = vst.msk [vmem:[#allocation2 + $0x248] sm:$0xff] %vm874, %v819
      %949 = vst.msk [vmem:[#allocation2 + $0x250] sm:$0xff] %vm874, %v820
      %950 = vst.msk [vmem:[#allocation2 + $0x258] sm:$0xff] %vm874, %v821
      %951 = vst.msk [vmem:[#allocation2 + $0x260] sm:$0xff] %vm874, %v822
      %952 = vst.msk [vmem:[#allocation2 + $0x268] sm:$0xff] %vm874, %v823
      %953 = vst.msk [vmem:[#allocation2 + $0x270] sm:$0xff] %vm874, %v824
      %954 = vst.msk [vmem:[#allocation2 + $0x278] sm:$0xff] %vm874, %v825
      %955 = vst.msk [vmem:[#allocation2 + $0x280] sm:$0xff] %vm874, %v826
      %956 = vst.msk [vmem:[#allocation2 + $0x288] sm:$0xff] %vm874, %v827
      %957 = vst.msk [vmem:[#allocation2 + $0x290] sm:$0xff] %vm874, %v828
      %958 = vst.msk [vmem:[#allocation2 + $0x298] sm:$0xff] %vm874, %v829
      %959 = vst.msk [vmem:[#allocation2 + $0x2a0] sm:$0xff] %vm874, %v830
      %960 = vst.msk [vmem:[#allocation2 + $0x2a8] sm:$0xff] %vm874, %v831
      %961 = vst.msk [vmem:[#allocation2 + $0x2b0] sm:$0xff] %vm874, %v832
      %962 = vst.msk [vmem:[#allocation2 + $0x2b8] sm:$0xff] %vm874, %v833
      %963 = vst.msk [vmem:[#allocation2 + $0x2c0] sm:$0xff] %vm874, %v834
      %964 = vst.msk [vmem:[#allocation2 + $0x2c8] sm:$0xff] %vm874, %v835
      %965 = vst.msk [vmem:[#allocation2 + $0x2d0] sm:$0xff] %vm874, %v836
      %966 = vst.msk [vmem:[#allocation2 + $0x2d8] sm:$0xff] %vm874, %v837
      %967 = vst.msk [vmem:[#allocation2 + $0x2e0] sm:$0xff] %vm874, %v838
      %968 = vst.msk [vmem:[#allocation2 + $0x2e8] sm:$0xff] %vm874, %v839
      %969 = vst.msk [vmem:[#allocation2 + $0x2f0] sm:$0xff] %vm874, %v840
      %970 = vst.msk [vmem:[#allocation2 + $0x2f8] sm:$0xff] %vm874, %v841
      %971 = vst.msk [vmem:[#allocation2 + $0x300] sm:$0xff] %vm874, %v842
      %972 = vst.msk [vmem:[#allocation2 + $0x308] sm:$0xff] %vm874, %v843
      %973 = vst.msk [vmem:[#allocation2 + $0x310] sm:$0xff] %vm874, %v844
      %974 = vst.msk [vmem:[#allocation2 + $0x318] sm:$0xff] %vm874, %v845
      %975 = vst.msk [vmem:[#allocation2 + $0x320] sm:$0xff] %vm874, %v846
      %976 = vst.msk [vmem:[#allocation2 + $0x328] sm:$0xff] %vm874, %v847
      %977 = vst.msk [vmem:[#allocation2 + $0x330] sm:$0xff] %vm874, %v848
      %978 = vst.msk [vmem:[#allocation2 + $0x338] sm:$0xff] %vm874, %v849
      %979 = vst.msk [vmem:[#allocation2 + $0x340] sm:$0xff] %vm874, %v850
      %980 = vst.msk [vmem:[#allocation2 + $0x348] sm:$0xff] %vm874, %v851
      %981 = vst.msk [vmem:[#allocation2 + $0x350] sm:$0xff] %vm874, %v852
      %982 = vst.msk [vmem:[#allocation2 + $0x358] sm:$0xff] %vm874, %v853
      %983 = vst.msk [vmem:[#allocation2 + $0x360] sm:$0xff] %vm874, %v854
      %984 = vst.msk [vmem:[#allocation2 + $0x368] sm:$0xff] %vm874, %v855
      %985 = vst.msk [vmem:[#allocation2 + $0x370] sm:$0xff] %vm874, %v856
      %986 = vst.msk [vmem:[#allocation2 + $0x378] sm:$0xff] %vm874, %v857
      %987 = vst.msk [vmem:[#allocation2 + $0x380] sm:$0xff] %vm874, %v858
      %988 = vst.msk [vmem:[#allocation2 + $0x388] sm:$0xff] %vm874, %v859
      %989 = vst.msk [vmem:[#allocation2 + $0x390] sm:$0xff] %vm874, %v860
      %990 = vst.msk [vmem:[#allocation2 + $0x398] sm:$0xff] %vm874, %v861
      %991 = vst.msk [vmem:[#allocation2 + $0x3a0] sm:$0xff] %vm874, %v862
      %992 = vst.msk [vmem:[#allocation2 + $0x3a8] sm:$0xff] %vm874, %v863
      %993 = vst.msk [vmem:[#allocation2 + $0x3b0] sm:$0xff] %vm874, %v864
      %994 = vst.msk [vmem:[#allocation2 + $0x3b8] sm:$0xff] %vm874, %v865
      %995 = vst.msk [vmem:[#allocation2 + $0x3c0] sm:$0xff] %vm874, %v866
      %996 = vst.msk [vmem:[#allocation2 + $0x3c8] sm:$0xff] %vm874, %v867
      %997 = vst.msk [vmem:[#allocation2 + $0x3d0] sm:$0xff] %vm874, %v868
      %998 = vst.msk [vmem:[#allocation2 + $0x3d8] sm:$0xff] %vm874, %v869
      %999 = vst.msk [vmem:[#allocation2 + $0x3e0] sm:$0xff] %vm874, %v870
      %1000 = vst.msk [vmem:[#allocation2 + $0x3e8] sm:$0xff] %vm874, %v871
      %1001 = vst.msk [vmem:[#allocation2 + $0x3f0] sm:$0xff] %vm874, %v872
      %1002 = vst.msk [vmem:[#allocation2 + $0x3f8] sm:$0xff] %vm874, %v873
      %v1003 = vld [vmem:[#allocation3] sm:$0xff]
      %v1004 = vld [vmem:[#allocation3 + $0x8] sm:$0xff]
      %v1005 = vld [vmem:[#allocation3 + $0x10] sm:$0xff]
      %v1006 = vld [vmem:[#allocation3 + $0x18] sm:$0xff]
      %v1007 = vld [vmem:[#allocation3 + $0x20] sm:$0xff]
      %v1008 = vld [vmem:[#allocation3 + $0x28] sm:$0xff]
      %v1009 = vld [vmem:[#allocation3 + $0x30] sm:$0xff]
      %v1010 = vld [vmem:[#allocation3 + $0x38] sm:$0xff]
      %v1011 = vld [vmem:[#allocation3 + $0x40] sm:$0xff]
      %v1012 = vld [vmem:[#allocation3 + $0x48] sm:$0xff]
      %v1013 = vld [vmem:[#allocation3 + $0x50] sm:$0xff]
      %v1014 = vld [vmem:[#allocation3 + $0x58] sm:$0xff]
      %v1015 = vld [vmem:[#allocation3 + $0x60] sm:$0xff]
      %v1016 = vld [vmem:[#allocation3 + $0x68] sm:$0xff]
      %v1017 = vld [vmem:[#allocation3 + $0x70] sm:$0xff]
      %v1018 = vld [vmem:[#allocation3 + $0x78] sm:$0xff]
      %v1019 = vld [vmem:[#allocation3 + $0x80] sm:$0xff]
      %v1020 = vld [vmem:[#allocation3 + $0x88] sm:$0xff]
      %v1021 = vld [vmem:[#allocation3 + $0x90] sm:$0xff]
      %v1022 = vld [vmem:[#allocation3 + $0x98] sm:$0xff]
      %v1023 = vld [vmem:[#allocation3 + $0xa0] sm:$0xff]
      %v1024 = vld [vmem:[#allocation3 + $0xa8] sm:$0xff]
      %v1025 = vld [vmem:[#allocation3 + $0xb0] sm:$0xff]
      %v1026 = vld [vmem:[#allocation3 + $0xb8] sm:$0xff]
      %v1027 = vld [vmem:[#allocation3 + $0xc0] sm:$0xff]
      %v1028 = vld [vmem:[#allocation3 + $0xc8] sm:$0xff]
      %v1029 = vld [vmem:[#allocation3 + $0xd0] sm:$0xff]
      %v1030 = vld [vmem:[#allocation3 + $0xd8] sm:$0xff]
      %v1031 = vld [vmem:[#allocation3 + $0xe0] sm:$0xff]
      %v1032 = vld [vmem:[#allocation3 + $0xe8] sm:$0xff]
      %v1033 = vld [vmem:[#allocation3 + $0xf0] sm:$0xff]
      %v1034 = vld [vmem:[#allocation3 + $0xf8] sm:$0xff]
      %v1035 = vld [vmem:[#allocation3 + $0x100] sm:$0xff]
      %v1036 = vld [vmem:[#allocation3 + $0x108] sm:$0xff]
      %v1037 = vld [vmem:[#allocation3 + $0x110] sm:$0xff]
      %v1038 = vld [vmem:[#allocation3 + $0x118] sm:$0xff]
      %v1039 = vld [vmem:[#allocation3 + $0x120] sm:$0xff]
      %v1040 = vld [vmem:[#allocation3 + $0x128] sm:$0xff]
      %v1041 = vld [vmem:[#allocation3 + $0x130] sm:$0xff]
      %v1042 = vld [vmem:[#allocation3 + $0x138] sm:$0xff]
      %v1043 = vld [vmem:[#allocation3 + $0x140] sm:$0xff]
      %v1044 = vld [vmem:[#allocation3 + $0x148] sm:$0xff]
      %v1045 = vld [vmem:[#allocation3 + $0x150] sm:$0xff]
      %v1046 = vld [vmem:[#allocation3 + $0x158] sm:$0xff]
      %v1047 = vld [vmem:[#allocation3 + $0x160] sm:$0xff]
      %v1048 = vld [vmem:[#allocation3 + $0x168] sm:$0xff]
      %v1049 = vld [vmem:[#allocation3 + $0x170] sm:$0xff]
      %v1050 = vld [vmem:[#allocation3 + $0x178] sm:$0xff]
      %v1051 = vld [vmem:[#allocation3 + $0x180] sm:$0xff]
      %v1052 = vld [vmem:[#allocation3 + $0x188] sm:$0xff]
      %v1053 = vld [vmem:[#allocation3 + $0x190] sm:$0xff]
      %v1054 = vld [vmem:[#allocation3 + $0x198] sm:$0xff]
      %v1055 = vld [vmem:[#allocation3 + $0x1a0] sm:$0xff]
      %v1056 = vld [vmem:[#allocation3 + $0x1a8] sm:$0xff]
      %v1057 = vld [vmem:[#allocation3 + $0x1b0] sm:$0xff]
      %v1058 = vld [vmem:[#allocation3 + $0x1b8] sm:$0xff]
      %v1059 = vld [vmem:[#allocation3 + $0x1c0] sm:$0xff]
      %v1060 = vld [vmem:[#allocation3 + $0x1c8] sm:$0xff]
      %v1061 = vld [vmem:[#allocation3 + $0x1d0] sm:$0xff]
      %v1062 = vld [vmem:[#allocation3 + $0x1d8] sm:$0xff]
      %v1063 = vld [vmem:[#allocation3 + $0x1e0] sm:$0xff]
      %v1064 = vld [vmem:[#allocation3 + $0x1e8] sm:$0xff]
      %v1065 = vld [vmem:[#allocation3 + $0x1f0] sm:$0xff]
      %v1066 = vld [vmem:[#allocation3 + $0x1f8] sm:$0xff]
      %v1067 = vld [vmem:[#allocation3 + $0x200] sm:$0xff]
      %v1068 = vld [vmem:[#allocation3 + $0x208] sm:$0xff]
      %v1069 = vld [vmem:[#allocation3 + $0x210] sm:$0xff]
      %v1070 = vld [vmem:[#allocation3 + $0x218] sm:$0xff]
      %v1071 = vld [vmem:[#allocation3 + $0x220] sm:$0xff]
      %v1072 = vld [vmem:[#allocation3 + $0x228] sm:$0xff]
      %v1073 = vld [vmem:[#allocation3 + $0x230] sm:$0xff]
      %v1074 = vld [vmem:[#allocation3 + $0x238] sm:$0xff]
      %v1075 = vld [vmem:[#allocation3 + $0x240] sm:$0xff]
      %v1076 = vld [vmem:[#allocation3 + $0x248] sm:$0xff]
      %v1077 = vld [vmem:[#allocation3 + $0x250] sm:$0xff]
      %v1078 = vld [vmem:[#allocation3 + $0x258] sm:$0xff]
      %v1079 = vld [vmem:[#allocation3 + $0x260] sm:$0xff]
      %v1080 = vld [vmem:[#allocation3 + $0x268] sm:$0xff]
      %v1081 = vld [vmem:[#allocation3 + $0x270] sm:$0xff]
      %v1082 = vld [vmem:[#allocation3 + $0x278] sm:$0xff]
      %v1083 = vld [vmem:[#allocation3 + $0x280] sm:$0xff]
      %v1084 = vld [vmem:[#allocation3 + $0x288] sm:$0xff]
      %v1085 = vld [vmem:[#allocation3 + $0x290] sm:$0xff]
      %v1086 = vld [vmem:[#allocation3 + $0x298] sm:$0xff]
      %v1087 = vld [vmem:[#allocation3 + $0x2a0] sm:$0xff]
      %v1088 = vld [vmem:[#allocation3 + $0x2a8] sm:$0xff]
      %v1089 = vld [vmem:[#allocation3 + $0x2b0] sm:$0xff]
      %v1090 = vld [vmem:[#allocation3 + $0x2b8] sm:$0xff]
      %v1091 = vld [vmem:[#allocation3 + $0x2c0] sm:$0xff]
      %v1092 = vld [vmem:[#allocation3 + $0x2c8] sm:$0xff]
      %v1093 = vld [vmem:[#allocation3 + $0x2d0] sm:$0xff]
      %v1094 = vld [vmem:[#allocation3 + $0x2d8] sm:$0xff]
      %v1095 = vld [vmem:[#allocation3 + $0x2e0] sm:$0xff]
      %v1096 = vld [vmem:[#allocation3 + $0x2e8] sm:$0xff]
      %v1097 = vld [vmem:[#allocation3 + $0x2f0] sm:$0xff]
      %v1098 = vld [vmem:[#allocation3 + $0x2f8] sm:$0xff]
      %v1099 = vld [vmem:[#allocation3 + $0x300] sm:$0xff]
      %v1100 = vld [vmem:[#allocation3 + $0x308] sm:$0xff]
      %v1101 = vld [vmem:[#allocation3 + $0x310] sm:$0xff]
      %v1102 = vld [vmem:[#allocation3 + $0x318] sm:$0xff]
      %v1103 = vld [vmem:[#allocation3 + $0x320] sm:$0xff]
      %v1104 = vld [vmem:[#allocation3 + $0x328] sm:$0xff]
      %v1105 = vld [vmem:[#allocation3 + $0x330] sm:$0xff]
      %v1106 = vld [vmem:[#allocation3 + $0x338] sm:$0xff]
      %v1107 = vld [vmem:[#allocation3 + $0x340] sm:$0xff]
      %v1108 = vld [vmem:[#allocation3 + $0x348] sm:$0xff]
      %v1109 = vld [vmem:[#allocation3 + $0x350] sm:$0xff]
      %v1110 = vld [vmem:[#allocation3 + $0x358] sm:$0xff]
      %v1111 = vld [vmem:[#allocation3 + $0x360] sm:$0xff]
      %v1112 = vld [vmem:[#allocation3 + $0x368] sm:$0xff]
      %v1113 = vld [vmem:[#allocation3 + $0x370] sm:$0xff]
      %v1114 = vld [vmem:[#allocation3 + $0x378] sm:$0xff]
      %v1115 = vld [vmem:[#allocation3 + $0x380] sm:$0xff]
      %v1116 = vld [vmem:[#allocation3 + $0x388] sm:$0xff]
      %v1117 = vld [vmem:[#allocation3 + $0x390] sm:$0xff]
      %v1118 = vld [vmem:[#allocation3 + $0x398] sm:$0xff]
      %v1119 = vld [vmem:[#allocation3 + $0x3a0] sm:$0xff]
      %v1120 = vld [vmem:[#allocation3 + $0x3a8] sm:$0xff]
      %v1121 = vld [vmem:[#allocation3 + $0x3b0] sm:$0xff]
      %v1122 = vld [vmem:[#allocation3 + $0x3b8] sm:$0xff]
      %v1123 = vld [vmem:[#allocation3 + $0x3c0] sm:$0xff]
      %v1124 = vld [vmem:[#allocation3 + $0x3c8] sm:$0xff]
      %v1125 = vld [vmem:[#allocation3 + $0x3d0] sm:$0xff]
      %v1126 = vld [vmem:[#allocation3 + $0x3d8] sm:$0xff]
      %v1127 = vld [vmem:[#allocation3 + $0x3e0] sm:$0xff]
      %v1128 = vld [vmem:[#allocation3 + $0x3e8] sm:$0xff]
      %v1129 = vld [vmem:[#allocation3 + $0x3f0] sm:$0xff]
      %v1130 = vld [vmem:[#allocation3 + $0x3f8] sm:$0xff]
      %v1131 = vmax.f32 %v1003, %v490
      %v1132 = vmax.f32 %v1004, %v491
      %v1133 = vmax.f32 %v1005, %v492
      %v1134 = vmax.f32 %v1006, %v493
      %v1135 = vmax.f32 %v1007, %v494
      %v1136 = vmax.f32 %v1008, %v495
      %v1137 = vmax.f32 %v1009, %v496
      %v1138 = vmax.f32 %v1010, %v497
      %v1139 = vmax.f32 %v1011, %v498
      %v1140 = vmax.f32 %v1012, %v499
      %v1141 = vmax.f32 %v1013, %v500
      %v1142 = vmax.f32 %v1014, %v501
      %v1143 = vmax.f32 %v1015, %v502
      %v1144 = vmax.f32 %v1016, %v503
      %v1145 = vmax.f32 %v1017, %v504
      %v1146 = vmax.f32 %v1018, %v505
      %v1147 = vmax.f32 %v1019, %v506
      %v1148 = vmax.f32 %v1020, %v507
      %v1149 = vmax.f32 %v1021, %v508
      %v1150 = vmax.f32 %v1022, %v509
      %v1151 = vmax.f32 %v1023, %v510
      %v1152 = vmax.f32 %v1024, %v511
      %v1153 = vmax.f32 %v1025, %v512
      %v1154 = vmax.f32 %v1026, %v513
      %v1155 = vmax.f32 %v1027, %v514
      %v1156 = vmax.f32 %v1028, %v515
      %v1157 = vmax.f32 %v1029, %v516
      %v1158 = vmax.f32 %v1030, %v517
      %v1159 = vmax.f32 %v1031, %v518
      %v1160 = vmax.f32 %v1032, %v519
      %v1161 = vmax.f32 %v1033, %v520
      %v1162 = vmax.f32 %v1034, %v521
      %v1163 = vmax.f32 %v1035, %v522
      %v1164 = vmax.f32 %v1036, %v523
      %v1165 = vmax.f32 %v1037, %v524
      %v1166 = vmax.f32 %v1038, %v525
      %v1167 = vmax.f32 %v1039, %v526
      %v1168 = vmax.f32 %v1040, %v527
      %v1169 = vmax.f32 %v1041, %v528
      %v1170 = vmax.f32 %v1042, %v529
      %v1171 = vmax.f32 %v1043, %v530
      %v1172 = vmax.f32 %v1044, %v531
      %v1173 = vmax.f32 %v1045, %v532
      %v1174 = vmax.f32 %v1046, %v533
      %v1175 = vmax.f32 %v1047, %v534
      %v1176 = vmax.f32 %v1048, %v535
      %v1177 = vmax.f32 %v1049, %v536
      %v1178 = vmax.f32 %v1050, %v537
      %v1179 = vmax.f32 %v1051, %v538
      %v1180 = vmax.f32 %v1052, %v539
      %v1181 = vmax.f32 %v1053, %v540
      %v1182 = vmax.f32 %v1054, %v541
      %v1183 = vmax.f32 %v1055, %v542
      %v1184 = vmax.f32 %v1056, %v543
      %v1185 = vmax.f32 %v1057, %v544
      %v1186 = vmax.f32 %v1058, %v545
      %v1187 = vmax.f32 %v1059, %v546
      %v1188 = vmax.f32 %v1060, %v547
      %v1189 = vmax.f32 %v1061, %v548
      %v1190 = vmax.f32 %v1062, %v549
      %v1191 = vmax.f32 %v1063, %v550
      %v1192 = vmax.f32 %v1064, %v551
      %v1193 = vmax.f32 %v1065, %v552
      %v1194 = vmax.f32 %v1066, %v553
      %v1195 = vmax.f32 %v1067, %v554
      %v1196 = vmax.f32 %v1068, %v555
      %v1197 = vmax.f32 %v1069, %v556
      %v1198 = vmax.f32 %v1070, %v557
      %v1199 = vmax.f32 %v1071, %v558
      %v1200 = vmax.f32 %v1072, %v559
      %v1201 = vmax.f32 %v1073, %v560
      %v1202 = vmax.f32 %v1074, %v561
      %v1203 = vmax.f32 %v1075, %v562
      %v1204 = vmax.f32 %v1076, %v563
      %v1205 = vmax.f32 %v1077, %v564
      %v1206 = vmax.f32 %v1078, %v565
      %v1207 = vmax.f32 %v1079, %v566
      %v1208 = vmax.f32 %v1080, %v567
      %v1209 = vmax.f32 %v1081, %v568
      %v1210 = vmax.f32 %v1082, %v569
      %v1211 = vmax.f32 %v1083, %v570
      %v1212 = vmax.f32 %v1084, %v571
      %v1213 = vmax.f32 %v1085, %v572
      %v1214 = vmax.f32 %v1086, %v573
      %v1215 = vmax.f32 %v1087, %v574
      %v1216 = vmax.f32 %v1088, %v575
      %v1217 = vmax.f32 %v1089, %v576
      %v1218 = vmax.f32 %v1090, %v577
      %v1219 = vmax.f32 %v1091, %v578
      %v1220 = vmax.f32 %v1092, %v579
      %v1221 = vmax.f32 %v1093, %v580
      %v1222 = vmax.f32 %v1094, %v581
      %v1223 = vmax.f32 %v1095, %v582
      %v1224 = vmax.f32 %v1096, %v583
      %v1225 = vmax.f32 %v1097, %v584
      %v1226 = vmax.f32 %v1098, %v585
      %v1227 = vmax.f32 %v1099, %v586
      %v1228 = vmax.f32 %v1100, %v587
      %v1229 = vmax.f32 %v1101, %v588
      %v1230 = vmax.f32 %v1102, %v589
      %v1231 = vmax.f32 %v1103, %v590
      %v1232 = vmax.f32 %v1104, %v591
      %v1233 = vmax.f32 %v1105, %v592
      %v1234 = vmax.f32 %v1106, %v593
      %v1235 = vmax.f32 %v1107, %v594
      %v1236 = vmax.f32 %v1108, %v595
      %v1237 = vmax.f32 %v1109, %v596
      %v1238 = vmax.f32 %v1110, %v597
      %v1239 = vmax.f32 %v1111, %v598
      %v1240 = vmax.f32 %v1112, %v599
      %v1241 = vmax.f32 %v1113, %v600
      %v1242 = vmax.f32 %v1114, %v601
      %v1243 = vmax.f32 %v1115, %v602
      %v1244 = vmax.f32 %v1116, %v603
      %v1245 = vmax.f32 %v1117, %v604
      %v1246 = vmax.f32 %v1118, %v605
      %v1247 = vmax.f32 %v1119, %v606
      %v1248 = vmax.f32 %v1120, %v607
      %v1249 = vmax.f32 %v1121, %v608
      %v1250 = vmax.f32 %v1122, %v609
      %v1251 = vmax.f32 %v1123, %v610
      %v1252 = vmax.f32 %v1124, %v611
      %v1253 = vmax.f32 %v1125, %v612
      %v1254 = vmax.f32 %v1126, %v613
      %v1255 = vmax.f32 %v1127, %v614
      %v1256 = vmax.f32 %v1128, %v615
      %v1257 = vmax.f32 %v1129, %v616
      %v1258 = vmax.f32 %v1130, %v617
      %1259 = vst.msk [vmem:[#allocation3] sm:$0xff] %vm874, %v1131
      %1260 = vst.msk [vmem:[#allocation3 + $0x8] sm:$0xff] %vm874, %v1132
      %1261 = vst.msk [vmem:[#allocation3 + $0x10] sm:$0xff] %vm874, %v1133
      %1262 = vst.msk [vmem:[#allocation3 + $0x18] sm:$0xff] %vm874, %v1134
      %1263 = vst.msk [vmem:[#allocation3 + $0x20] sm:$0xff] %vm874, %v1135
      %1264 = vst.msk [vmem:[#allocation3 + $0x28] sm:$0xff] %vm874, %v1136
      %1265 = vst.msk [vmem:[#allocation3 + $0x30] sm:$0xff] %vm874, %v1137
      %1266 = vst.msk [vmem:[#allocation3 + $0x38] sm:$0xff] %vm874, %v1138
      %1267 = vst.msk [vmem:[#allocation3 + $0x40] sm:$0xff] %vm874, %v1139
      %1268 = vst.msk [vmem:[#allocation3 + $0x48] sm:$0xff] %vm874, %v1140
      %1269 = vst.msk [vmem:[#allocation3 + $0x50] sm:$0xff] %vm874, %v1141
      %1270 = vst.msk [vmem:[#allocation3 + $0x58] sm:$0xff] %vm874, %v1142
      %1271 = vst.msk [vmem:[#allocation3 + $0x60] sm:$0xff] %vm874, %v1143
      %1272 = vst.msk [vmem:[#allocation3 + $0x68] sm:$0xff] %vm874, %v1144
      %1273 = vst.msk [vmem:[#allocation3 + $0x70] sm:$0xff] %vm874, %v1145
      %1274 = vst.msk [vmem:[#allocation3 + $0x78] sm:$0xff] %vm874, %v1146
      %1275 = vst.msk [vmem:[#allocation3 + $0x80] sm:$0xff] %vm874, %v1147
      %1276 = vst.msk [vmem:[#allocation3 + $0x88] sm:$0xff] %vm874, %v1148
      %1277 = vst.msk [vmem:[#allocation3 + $0x90] sm:$0xff] %vm874, %v1149
      %1278 = vst.msk [vmem:[#allocation3 + $0x98] sm:$0xff] %vm874, %v1150
      %1279 = vst.msk [vmem:[#allocation3 + $0xa0] sm:$0xff] %vm874, %v1151
      %1280 = vst.msk [vmem:[#allocation3 + $0xa8] sm:$0xff] %vm874, %v1152
      %1281 = vst.msk [vmem:[#allocation3 + $0xb0] sm:$0xff] %vm874, %v1153
      %1282 = vst.msk [vmem:[#allocation3 + $0xb8] sm:$0xff] %vm874, %v1154
      %1283 = vst.msk [vmem:[#allocation3 + $0xc0] sm:$0xff] %vm874, %v1155
      %1284 = vst.msk [vmem:[#allocation3 + $0xc8] sm:$0xff] %vm874, %v1156
      %1285 = vst.msk [vmem:[#allocation3 + $0xd0] sm:$0xff] %vm874, %v1157
      %1286 = vst.msk [vmem:[#allocation3 + $0xd8] sm:$0xff] %vm874, %v1158
      %1287 = vst.msk [vmem:[#allocation3 + $0xe0] sm:$0xff] %vm874, %v1159
      %1288 = vst.msk [vmem:[#allocation3 + $0xe8] sm:$0xff] %vm874, %v1160
      %1289 = vst.msk [vmem:[#allocation3 + $0xf0] sm:$0xff] %vm874, %v1161
      %1290 = vst.msk [vmem:[#allocation3 + $0xf8] sm:$0xff] %vm874, %v1162
      %1291 = vst.msk [vmem:[#allocation3 + $0x100] sm:$0xff] %vm874, %v1163
      %1292 = vst.msk [vmem:[#allocation3 + $0x108] sm:$0xff] %vm874, %v1164
      %1293 = vst.msk [vmem:[#allocation3 + $0x110] sm:$0xff] %vm874, %v1165
      %1294 = vst.msk [vmem:[#allocation3 + $0x118] sm:$0xff] %vm874, %v1166
      %1295 = vst.msk [vmem:[#allocation3 + $0x120] sm:$0xff] %vm874, %v1167
      %1296 = vst.msk [vmem:[#allocation3 + $0x128] sm:$0xff] %vm874, %v1168
      %1297 = vst.msk [vmem:[#allocation3 + $0x130] sm:$0xff] %vm874, %v1169
      %1298 = vst.msk [vmem:[#allocation3 + $0x138] sm:$0xff] %vm874, %v1170
      %1299 = vst.msk [vmem:[#allocation3 + $0x140] sm:$0xff] %vm874, %v1171
      %1300 = vst.msk [vmem:[#allocation3 + $0x148] sm:$0xff] %vm874, %v1172
      %1301 = vst.msk [vmem:[#allocation3 + $0x150] sm:$0xff] %vm874, %v1173
      %1302 = vst.msk [vmem:[#allocation3 + $0x158] sm:$0xff] %vm874, %v1174
      %1303 = vst.msk [vmem:[#allocation3 + $0x160] sm:$0xff] %vm874, %v1175
      %1304 = vst.msk [vmem:[#allocation3 + $0x168] sm:$0xff] %vm874, %v1176
      %1305 = vst.msk [vmem:[#allocation3 + $0x170] sm:$0xff] %vm874, %v1177
      %1306 = vst.msk [vmem:[#allocation3 + $0x178] sm:$0xff] %vm874, %v1178
      %1307 = vst.msk [vmem:[#allocation3 + $0x180] sm:$0xff] %vm874, %v1179
      %1308 = vst.msk [vmem:[#allocation3 + $0x188] sm:$0xff] %vm874, %v1180
      %1309 = vst.msk [vmem:[#allocation3 + $0x190] sm:$0xff] %vm874, %v1181
      %1310 = vst.msk [vmem:[#allocation3 + $0x198] sm:$0xff] %vm874, %v1182
      %1311 = vst.msk [vmem:[#allocation3 + $0x1a0] sm:$0xff] %vm874, %v1183
      %1312 = vst.msk [vmem:[#allocation3 + $0x1a8] sm:$0xff] %vm874, %v1184
      %1313 = vst.msk [vmem:[#allocation3 + $0x1b0] sm:$0xff] %vm874, %v1185
      %1314 = vst.msk [vmem:[#allocation3 + $0x1b8] sm:$0xff] %vm874, %v1186
      %1315 = vst.msk [vmem:[#allocation3 + $0x1c0] sm:$0xff] %vm874, %v1187
      %1316 = vst.msk [vmem:[#allocation3 + $0x1c8] sm:$0xff] %vm874, %v1188
      %1317 = vst.msk [vmem:[#allocation3 + $0x1d0] sm:$0xff] %vm874, %v1189
      %1318 = vst.msk [vmem:[#allocation3 + $0x1d8] sm:$0xff] %vm874, %v1190
      %1319 = vst.msk [vmem:[#allocation3 + $0x1e0] sm:$0xff] %vm874, %v1191
      %1320 = vst.msk [vmem:[#allocation3 + $0x1e8] sm:$0xff] %vm874, %v1192
      %1321 = vst.msk [vmem:[#allocation3 + $0x1f0] sm:$0xff] %vm874, %v1193
      %1322 = vst.msk [vmem:[#allocation3 + $0x1f8] sm:$0xff] %vm874, %v1194
      %1323 = vst.msk [vmem:[#allocation3 + $0x200] sm:$0xff] %vm874, %v1195
      %1324 = vst.msk [vmem:[#allocation3 + $0x208] sm:$0xff] %vm874, %v1196
      %1325 = vst.msk [vmem:[#allocation3 + $0x210] sm:$0xff] %vm874, %v1197
      %1326 = vst.msk [vmem:[#allocation3 + $0x218] sm:$0xff] %vm874, %v1198
      %1327 = vst.msk [vmem:[#allocation3 + $0x220] sm:$0xff] %vm874, %v1199
      %1328 = vst.msk [vmem:[#allocation3 + $0x228] sm:$0xff] %vm874, %v1200
      %1329 = vst.msk [vmem:[#allocation3 + $0x230] sm:$0xff] %vm874, %v1201
      %1330 = vst.msk [vmem:[#allocation3 + $0x238] sm:$0xff] %vm874, %v1202
      %1331 = vst.msk [vmem:[#allocation3 + $0x240] sm:$0xff] %vm874, %v1203
      %1332 = vst.msk [vmem:[#allocation3 + $0x248] sm:$0xff] %vm874, %v1204
      %1333 = vst.msk [vmem:[#allocation3 + $0x250] sm:$0xff] %vm874, %v1205
      %1334 = vst.msk [vmem:[#allocation3 + $0x258] sm:$0xff] %vm874, %v1206
      %1335 = vst.msk [vmem:[#allocation3 + $0x260] sm:$0xff] %vm874, %v1207
      %1336 = vst.msk [vmem:[#allocation3 + $0x268] sm:$0xff] %vm874, %v1208
      %1337 = vst.msk [vmem:[#allocation3 + $0x270] sm:$0xff] %vm874, %v1209
      %1338 = vst.msk [vmem:[#allocation3 + $0x278] sm:$0xff] %vm874, %v1210
      %1339 = vst.msk [vmem:[#allocation3 + $0x280] sm:$0xff] %vm874, %v1211
      %1340 = vst.msk [vmem:[#allocation3 + $0x288] sm:$0xff] %vm874, %v1212
      %1341 = vst.msk [vmem:[#allocation3 + $0x290] sm:$0xff] %vm874, %v1213
      %1342 = vst.msk [vmem:[#allocation3 + $0x298] sm:$0xff] %vm874, %v1214
      %1343 = vst.msk [vmem:[#allocation3 + $0x2a0] sm:$0xff] %vm874, %v1215
      %1344 = vst.msk [vmem:[#allocation3 + $0x2a8] sm:$0xff] %vm874, %v1216
      %1345 = vst.msk [vmem:[#allocation3 + $0x2b0] sm:$0xff] %vm874, %v1217
      %1346 = vst.msk [vmem:[#allocation3 + $0x2b8] sm:$0xff] %vm874, %v1218
      %1347 = vst.msk [vmem:[#allocation3 + $0x2c0] sm:$0xff] %vm874, %v1219
      %1348 = vst.msk [vmem:[#allocation3 + $0x2c8] sm:$0xff] %vm874, %v1220
      %1349 = vst.msk [vmem:[#allocation3 + $0x2d0] sm:$0xff] %vm874, %v1221
      %1350 = vst.msk [vmem:[#allocation3 + $0x2d8] sm:$0xff] %vm874, %v1222
      %1351 = vst.msk [vmem:[#allocation3 + $0x2e0] sm:$0xff] %vm874, %v1223
      %1352 = vst.msk [vmem:[#allocation3 + $0x2e8] sm:$0xff] %vm874, %v1224
      %1353 = vst.msk [vmem:[#allocation3 + $0x2f0] sm:$0xff] %vm874, %v1225
      %1354 = vst.msk [vmem:[#allocation3 + $0x2f8] sm:$0xff] %vm874, %v1226
      %1355 = vst.msk [vmem:[#allocation3 + $0x300] sm:$0xff] %vm874, %v1227
      %1356 = vst.msk [vmem:[#allocation3 + $0x308] sm:$0xff] %vm874, %v1228
      %1357 = vst.msk [vmem:[#allocation3 + $0x310] sm:$0xff] %vm874, %v1229
      %1358 = vst.msk [vmem:[#allocation3 + $0x318] sm:$0xff] %vm874, %v1230
      %1359 = vst.msk [vmem:[#allocation3 + $0x320] sm:$0xff] %vm874, %v1231
      %1360 = vst.msk [vmem:[#allocation3 + $0x328] sm:$0xff] %vm874, %v1232
      %1361 = vst.msk [vmem:[#allocation3 + $0x330] sm:$0xff] %vm874, %v1233
      %1362 = vst.msk [vmem:[#allocation3 + $0x338] sm:$0xff] %vm874, %v1234
      %1363 = vst.msk [vmem:[#allocation3 + $0x340] sm:$0xff] %vm874, %v1235
      %1364 = vst.msk [vmem:[#allocation3 + $0x348] sm:$0xff] %vm874, %v1236
      %1365 = vst.msk [vmem:[#allocation3 + $0x350] sm:$0xff] %vm874, %v1237
      %1366 = vst.msk [vmem:[#allocation3 + $0x358] sm:$0xff] %vm874, %v1238
      %1367 = vst.msk [vmem:[#allocation3 + $0x360] sm:$0xff] %vm874, %v1239
      %1368 = vst.msk [vmem:[#allocation3 + $0x368] sm:$0xff] %vm874, %v1240
      %1369 = vst.msk [vmem:[#allocation3 + $0x370] sm:$0xff] %vm874, %v1241
      %1370 = vst.msk [vmem:[#allocation3 + $0x378] sm:$0xff] %vm874, %v1242
      %1371 = vst.msk [vmem:[#allocation3 + $0x380] sm:$0xff] %vm874, %v1243
      %1372 = vst.msk [vmem:[#allocation3 + $0x388] sm:$0xff] %vm874, %v1244
      %1373 = vst.msk [vmem:[#allocation3 + $0x390] sm:$0xff] %vm874, %v1245
      %1374 = vst.msk [vmem:[#allocation3 + $0x398] sm:$0xff] %vm874, %v1246
      %1375 = vst.msk [vmem:[#allocation3 + $0x3a0] sm:$0xff] %vm874, %v1247
      %1376 = vst.msk [vmem:[#allocation3 + $0x3a8] sm:$0xff] %vm874, %v1248
      %1377 = vst.msk [vmem:[#allocation3 + $0x3b0] sm:$0xff] %vm874, %v1249
      %1378 = vst.msk [vmem:[#allocation3 + $0x3b8] sm:$0xff] %vm874, %v1250
      %1379 = vst.msk [vmem:[#allocation3 + $0x3c0] sm:$0xff] %vm874, %v1251
      %1380 = vst.msk [vmem:[#allocation3 + $0x3c8] sm:$0xff] %vm874, %v1252
      %1381 = vst.msk [vmem:[#allocation3 + $0x3d0] sm:$0xff] %vm874, %v1253
      %1382 = vst.msk [vmem:[#allocation3 + $0x3d8] sm:$0xff] %vm874, %v1254
      %1383 = vst.msk [vmem:[#allocation3 + $0x3e0] sm:$0xff] %vm874, %v1255
      %1384 = vst.msk [vmem:[#allocation3 + $0x3e8] sm:$0xff] %vm874, %v1256
      %1385 = vst.msk [vmem:[#allocation3 + $0x3f0] sm:$0xff] %vm874, %v1257
      %1386 = vst.msk [vmem:[#allocation3 + $0x3f8] sm:$0xff] %vm874, %v1258
      // Predicated region
      $region29: #{tpu_custom_call.1} parent=23 // pred_check
        %p1387 = pneg %p229
      $region30: #{tpu_custom_call.1} parent=23 // pred_check_branch
        %1389 = sbr.rel (%p1387) target = $region32
      $region31: #{tpu_custom_call.1} parent=23 // pred_region
        %v1390 = vld [vmem:[#allocation2] sm:$0xff]
        %v1391 = vld [vmem:[#allocation2 + $0x8] sm:$0xff]
        %v1392 = vld [vmem:[#allocation2 + $0x10] sm:$0xff]
        %v1393 = vld [vmem:[#allocation2 + $0x18] sm:$0xff]
        %v1394 = vld [vmem:[#allocation2 + $0x20] sm:$0xff]
        %v1395 = vld [vmem:[#allocation2 + $0x28] sm:$0xff]
        %v1396 = vld [vmem:[#allocation2 + $0x30] sm:$0xff]
        %v1397 = vld [vmem:[#allocation2 + $0x38] sm:$0xff]
        %v1398 = vld [vmem:[#allocation2 + $0x40] sm:$0xff]
        %v1399 = vld [vmem:[#allocation2 + $0x48] sm:$0xff]
        %v1400 = vld [vmem:[#allocation2 + $0x50] sm:$0xff]
        %v1401 = vld [vmem:[#allocation2 + $0x58] sm:$0xff]
        %v1402 = vld [vmem:[#allocation2 + $0x60] sm:$0xff]
        %v1403 = vld [vmem:[#allocation2 + $0x68] sm:$0xff]
        %v1404 = vld [vmem:[#allocation2 + $0x70] sm:$0xff]
        %v1405 = vld [vmem:[#allocation2 + $0x78] sm:$0xff]
        %v1406 = vld [vmem:[#allocation2 + $0x80] sm:$0xff]
        %v1407 = vld [vmem:[#allocation2 + $0x88] sm:$0xff]
        %v1408 = vld [vmem:[#allocation2 + $0x90] sm:$0xff]
        %v1409 = vld [vmem:[#allocation2 + $0x98] sm:$0xff]
        %v1410 = vld [vmem:[#allocation2 + $0xa0] sm:$0xff]
        %v1411 = vld [vmem:[#allocation2 + $0xa8] sm:$0xff]
        %v1412 = vld [vmem:[#allocation2 + $0xb0] sm:$0xff]
        %v1413 = vld [vmem:[#allocation2 + $0xb8] sm:$0xff]
        %v1414 = vld [vmem:[#allocation2 + $0xc0] sm:$0xff]
        %v1415 = vld [vmem:[#allocation2 + $0xc8] sm:$0xff]
        %v1416 = vld [vmem:[#allocation2 + $0xd0] sm:$0xff]
        %v1417 = vld [vmem:[#allocation2 + $0xd8] sm:$0xff]
        %v1418 = vld [vmem:[#allocation2 + $0xe0] sm:$0xff]
        %v1419 = vld [vmem:[#allocation2 + $0xe8] sm:$0xff]
        %v1420 = vld [vmem:[#allocation2 + $0xf0] sm:$0xff]
        %v1421 = vld [vmem:[#allocation2 + $0xf8] sm:$0xff]
        %v1422 = vld [vmem:[#allocation2 + $0x100] sm:$0xff]
        %v1423 = vld [vmem:[#allocation2 + $0x108] sm:$0xff]
        %v1424 = vld [vmem:[#allocation2 + $0x110] sm:$0xff]
        %v1425 = vld [vmem:[#allocation2 + $0x118] sm:$0xff]
        %v1426 = vld [vmem:[#allocation2 + $0x120] sm:$0xff]
        %v1427 = vld [vmem:[#allocation2 + $0x128] sm:$0xff]
        %v1428 = vld [vmem:[#allocation2 + $0x130] sm:$0xff]
        %v1429 = vld [vmem:[#allocation2 + $0x138] sm:$0xff]
        %v1430 = vld [vmem:[#allocation2 + $0x140] sm:$0xff]
        %v1431 = vld [vmem:[#allocation2 + $0x148] sm:$0xff]
        %v1432 = vld [vmem:[#allocation2 + $0x150] sm:$0xff]
        %v1433 = vld [vmem:[#allocation2 + $0x158] sm:$0xff]
        %v1434 = vld [vmem:[#allocation2 + $0x160] sm:$0xff]
        %v1435 = vld [vmem:[#allocation2 + $0x168] sm:$0xff]
        %v1436 = vld [vmem:[#allocation2 + $0x170] sm:$0xff]
        %v1437 = vld [vmem:[#allocation2 + $0x178] sm:$0xff]
        %v1438 = vld [vmem:[#allocation2 + $0x180] sm:$0xff]
        %v1439 = vld [vmem:[#allocation2 + $0x188] sm:$0xff]
        %v1440 = vld [vmem:[#allocation2 + $0x190] sm:$0xff]
        %v1441 = vld [vmem:[#allocation2 + $0x198] sm:$0xff]
        %v1442 = vld [vmem:[#allocation2 + $0x1a0] sm:$0xff]
        %v1443 = vld [vmem:[#allocation2 + $0x1a8] sm:$0xff]
        %v1444 = vld [vmem:[#allocation2 + $0x1b0] sm:$0xff]
        %v1445 = vld [vmem:[#allocation2 + $0x1b8] sm:$0xff]
        %v1446 = vld [vmem:[#allocation2 + $0x1c0] sm:$0xff]
        %v1447 = vld [vmem:[#allocation2 + $0x1c8] sm:$0xff]
        %v1448 = vld [vmem:[#allocation2 + $0x1d0] sm:$0xff]
        %v1449 = vld [vmem:[#allocation2 + $0x1d8] sm:$0xff]
        %v1450 = vld [vmem:[#allocation2 + $0x1e0] sm:$0xff]
        %v1451 = vld [vmem:[#allocation2 + $0x1e8] sm:$0xff]
        %v1452 = vld [vmem:[#allocation2 + $0x1f0] sm:$0xff]
        %v1453 = vld [vmem:[#allocation2 + $0x1f8] sm:$0xff]
        %v1454 = vld [vmem:[#allocation2 + $0x200] sm:$0xff]
        %v1455 = vld [vmem:[#allocation2 + $0x208] sm:$0xff]
        %v1456 = vld [vmem:[#allocation2 + $0x210] sm:$0xff]
        %v1457 = vld [vmem:[#allocation2 + $0x218] sm:$0xff]
        %v1458 = vld [vmem:[#allocation2 + $0x220] sm:$0xff]
        %v1459 = vld [vmem:[#allocation2 + $0x228] sm:$0xff]
        %v1460 = vld [vmem:[#allocation2 + $0x230] sm:$0xff]
        %v1461 = vld [vmem:[#allocation2 + $0x238] sm:$0xff]
        %v1462 = vld [vmem:[#allocation2 + $0x240] sm:$0xff]
        %v1463 = vld [vmem:[#allocation2 + $0x248] sm:$0xff]
        %v1464 = vld [vmem:[#allocation2 + $0x250] sm:$0xff]
        %v1465 = vld [vmem:[#allocation2 + $0x258] sm:$0xff]
        %v1466 = vld [vmem:[#allocation2 + $0x260] sm:$0xff]
        %v1467 = vld [vmem:[#allocation2 + $0x268] sm:$0xff]
        %v1468 = vld [vmem:[#allocation2 + $0x270] sm:$0xff]
        %v1469 = vld [vmem:[#allocation2 + $0x278] sm:$0xff]
        %v1470 = vld [vmem:[#allocation2 + $0x280] sm:$0xff]
        %v1471 = vld [vmem:[#allocation2 + $0x288] sm:$0xff]
        %v1472 = vld [vmem:[#allocation2 + $0x290] sm:$0xff]
        %v1473 = vld [vmem:[#allocation2 + $0x298] sm:$0xff]
        %v1474 = vld [vmem:[#allocation2 + $0x2a0] sm:$0xff]
        %v1475 = vld [vmem:[#allocation2 + $0x2a8] sm:$0xff]
        %v1476 = vld [vmem:[#allocation2 + $0x2b0] sm:$0xff]
        %v1477 = vld [vmem:[#allocation2 + $0x2b8] sm:$0xff]
        %v1478 = vld [vmem:[#allocation2 + $0x2c0] sm:$0xff]
        %v1479 = vld [vmem:[#allocation2 + $0x2c8] sm:$0xff]
        %v1480 = vld [vmem:[#allocation2 + $0x2d0] sm:$0xff]
        %v1481 = vld [vmem:[#allocation2 + $0x2d8] sm:$0xff]
        %v1482 = vld [vmem:[#allocation2 + $0x2e0] sm:$0xff]
        %v1483 = vld [vmem:[#allocation2 + $0x2e8] sm:$0xff]
        %v1484 = vld [vmem:[#allocation2 + $0x2f0] sm:$0xff]
        %v1485 = vld [vmem:[#allocation2 + $0x2f8] sm:$0xff]
        %v1486 = vld [vmem:[#allocation2 + $0x300] sm:$0xff]
        %v1487 = vld [vmem:[#allocation2 + $0x308] sm:$0xff]
        %v1488 = vld [vmem:[#allocation2 + $0x310] sm:$0xff]
        %v1489 = vld [vmem:[#allocation2 + $0x318] sm:$0xff]
        %v1490 = vld [vmem:[#allocation2 + $0x320] sm:$0xff]
        %v1491 = vld [vmem:[#allocation2 + $0x328] sm:$0xff]
        %v1492 = vld [vmem:[#allocation2 + $0x330] sm:$0xff]
        %v1493 = vld [vmem:[#allocation2 + $0x338] sm:$0xff]
        %v1494 = vld [vmem:[#allocation2 + $0x340] sm:$0xff]
        %v1495 = vld [vmem:[#allocation2 + $0x348] sm:$0xff]
        %v1496 = vld [vmem:[#allocation2 + $0x350] sm:$0xff]
        %v1497 = vld [vmem:[#allocation2 + $0x358] sm:$0xff]
        %v1498 = vld [vmem:[#allocation2 + $0x360] sm:$0xff]
        %v1499 = vld [vmem:[#allocation2 + $0x368] sm:$0xff]
        %v1500 = vld [vmem:[#allocation2 + $0x370] sm:$0xff]
        %v1501 = vld [vmem:[#allocation2 + $0x378] sm:$0xff]
        %v1502 = vld [vmem:[#allocation2 + $0x380] sm:$0xff]
        %v1503 = vld [vmem:[#allocation2 + $0x388] sm:$0xff]
        %v1504 = vld [vmem:[#allocation2 + $0x390] sm:$0xff]
        %v1505 = vld [vmem:[#allocation2 + $0x398] sm:$0xff]
        %v1506 = vld [vmem:[#allocation2 + $0x3a0] sm:$0xff]
        %v1507 = vld [vmem:[#allocation2 + $0x3a8] sm:$0xff]
        %v1508 = vld [vmem:[#allocation2 + $0x3b0] sm:$0xff]
        %v1509 = vld [vmem:[#allocation2 + $0x3b8] sm:$0xff]
        %v1510 = vld [vmem:[#allocation2 + $0x3c0] sm:$0xff]
        %v1511 = vld [vmem:[#allocation2 + $0x3c8] sm:$0xff]
        %v1512 = vld [vmem:[#allocation2 + $0x3d0] sm:$0xff]
        %v1513 = vld [vmem:[#allocation2 + $0x3d8] sm:$0xff]
        %v1514 = vld [vmem:[#allocation2 + $0x3e0] sm:$0xff]
        %v1515 = vld [vmem:[#allocation2 + $0x3e8] sm:$0xff]
        %v1516 = vld [vmem:[#allocation2 + $0x3f0] sm:$0xff]
        %v1517 = vld [vmem:[#allocation2 + $0x3f8] sm:$0xff]
        %v1518 = vsel %vm874, %v1390, 0.0
        %1519 = vadd.xlane.f32.xlu0 %v1518
        %v1520 = vpop.xlane.xlu0 %1519
        %v1521 = vsel %vm874, %v1391, 0.0
        %1522 = vadd.xlane.f32.xlu0 %v1521
        %v1523 = vpop.xlane.xlu0 %1522
        %v1524 = vsel %vm874, %v1392, 0.0
        %1525 = vadd.xlane.f32.xlu0 %v1524
        %v1526 = vpop.xlane.xlu0 %1525
        %v1527 = vsel %vm874, %v1393, 0.0
        %1528 = vadd.xlane.f32.xlu0 %v1527
        %v1529 = vpop.xlane.xlu0 %1528
        %v1530 = vsel %vm874, %v1394, 0.0
        %1531 = vadd.xlane.f32.xlu0 %v1530
        %v1532 = vpop.xlane.xlu0 %1531
        %v1533 = vsel %vm874, %v1395, 0.0
        %1534 = vadd.xlane.f32.xlu0 %v1533
        %v1535 = vpop.xlane.xlu0 %1534
        %v1536 = vsel %vm874, %v1396, 0.0
        %1537 = vadd.xlane.f32.xlu0 %v1536
        %v1538 = vpop.xlane.xlu0 %1537
        %v1539 = vsel %vm874, %v1397, 0.0
        %1540 = vadd.xlane.f32.xlu0 %v1539
        %v1541 = vpop.xlane.xlu0 %1540
        %v1542 = vsel %vm874, %v1398, 0.0
        %1543 = vadd.xlane.f32.xlu0 %v1542
        %v1544 = vpop.xlane.xlu0 %1543
        %v1545 = vsel %vm874, %v1399, 0.0
        %1546 = vadd.xlane.f32.xlu0 %v1545
        %v1547 = vpop.xlane.xlu0 %1546
        %v1548 = vsel %vm874, %v1400, 0.0
        %1549 = vadd.xlane.f32.xlu0 %v1548
        %v1550 = vpop.xlane.xlu0 %1549
        %v1551 = vsel %vm874, %v1401, 0.0
        %1552 = vadd.xlane.f32.xlu0 %v1551
        %v1553 = vpop.xlane.xlu0 %1552
        %v1554 = vsel %vm874, %v1402, 0.0
        %1555 = vadd.xlane.f32.xlu0 %v1554
        %v1556 = vpop.xlane.xlu0 %1555
        %v1557 = vsel %vm874, %v1403, 0.0
        %1558 = vadd.xlane.f32.xlu0 %v1557
        %v1559 = vpop.xlane.xlu0 %1558
        %v1560 = vsel %vm874, %v1404, 0.0
        %1561 = vadd.xlane.f32.xlu0 %v1560
        %v1562 = vpop.xlane.xlu0 %1561
        %v1563 = vsel %vm874, %v1405, 0.0
        %1564 = vadd.xlane.f32.xlu0 %v1563
        %v1565 = vpop.xlane.xlu0 %1564
        %v1566 = vsel %vm874, %v1406, 0.0
        %1567 = vadd.xlane.f32.xlu0 %v1566
        %v1568 = vpop.xlane.xlu0 %1567
        %v1569 = vsel %vm874, %v1407, 0.0
        %1570 = vadd.xlane.f32.xlu0 %v1569
        %v1571 = vpop.xlane.xlu0 %1570
        %v1572 = vsel %vm874, %v1408, 0.0
        %1573 = vadd.xlane.f32.xlu0 %v1572
        %v1574 = vpop.xlane.xlu0 %1573
        %v1575 = vsel %vm874, %v1409, 0.0
        %1576 = vadd.xlane.f32.xlu0 %v1575
        %v1577 = vpop.xlane.xlu0 %1576
        %v1578 = vsel %vm874, %v1410, 0.0
        %1579 = vadd.xlane.f32.xlu0 %v1578
        %v1580 = vpop.xlane.xlu0 %1579
        %v1581 = vsel %vm874, %v1411, 0.0
        %1582 = vadd.xlane.f32.xlu0 %v1581
        %v1583 = vpop.xlane.xlu0 %1582
        %v1584 = vsel %vm874, %v1412, 0.0
        %1585 = vadd.xlane.f32.xlu0 %v1584
        %v1586 = vpop.xlane.xlu0 %1585
        %v1587 = vsel %vm874, %v1413, 0.0
        %1588 = vadd.xlane.f32.xlu0 %v1587
        %v1589 = vpop.xlane.xlu0 %1588
        %v1590 = vsel %vm874, %v1414, 0.0
        %1591 = vadd.xlane.f32.xlu0 %v1590
        %v1592 = vpop.xlane.xlu0 %1591
        %v1593 = vsel %vm874, %v1415, 0.0
        %1594 = vadd.xlane.f32.xlu0 %v1593
        %v1595 = vpop.xlane.xlu0 %1594
        %v1596 = vsel %vm874, %v1416, 0.0
        %1597 = vadd.xlane.f32.xlu0 %v1596
        %v1598 = vpop.xlane.xlu0 %1597
        %v1599 = vsel %vm874, %v1417, 0.0
        %1600 = vadd.xlane.f32.xlu0 %v1599
        %v1601 = vpop.xlane.xlu0 %1600
        %v1602 = vsel %vm874, %v1418, 0.0
        %1603 = vadd.xlane.f32.xlu0 %v1602
        %v1604 = vpop.xlane.xlu0 %1603
        %v1605 = vsel %vm874, %v1419, 0.0
        %1606 = vadd.xlane.f32.xlu0 %v1605
        %v1607 = vpop.xlane.xlu0 %1606
        %v1608 = vsel %vm874, %v1420, 0.0
        %1609 = vadd.xlane.f32.xlu0 %v1608
        %v1610 = vpop.xlane.xlu0 %1609
        %v1611 = vsel %vm874, %v1421, 0.0
        %1612 = vadd.xlane.f32.xlu0 %v1611
        %v1613 = vpop.xlane.xlu0 %1612
        %v1614 = vsel %vm874, %v1422, 0.0
        %1615 = vadd.xlane.f32.xlu0 %v1614
        %v1616 = vpop.xlane.xlu0 %1615
        %v1617 = vsel %vm874, %v1423, 0.0
        %1618 = vadd.xlane.f32.xlu0 %v1617
        %v1619 = vpop.xlane.xlu0 %1618
        %v1620 = vsel %vm874, %v1424, 0.0
        %1621 = vadd.xlane.f32.xlu0 %v1620
        %v1622 = vpop.xlane.xlu0 %1621
        %v1623 = vsel %vm874, %v1425, 0.0
        %1624 = vadd.xlane.f32.xlu0 %v1623
        %v1625 = vpop.xlane.xlu0 %1624
        %v1626 = vsel %vm874, %v1426, 0.0
        %1627 = vadd.xlane.f32.xlu0 %v1626
        %v1628 = vpop.xlane.xlu0 %1627
        %v1629 = vsel %vm874, %v1427, 0.0
        %1630 = vadd.xlane.f32.xlu0 %v1629
        %v1631 = vpop.xlane.xlu0 %1630
        %v1632 = vsel %vm874, %v1428, 0.0
        %1633 = vadd.xlane.f32.xlu0 %v1632
        %v1634 = vpop.xlane.xlu0 %1633
        %v1635 = vsel %vm874, %v1429, 0.0
        %1636 = vadd.xlane.f32.xlu0 %v1635
        %v1637 = vpop.xlane.xlu0 %1636
        %v1638 = vsel %vm874, %v1430, 0.0
        %1639 = vadd.xlane.f32.xlu0 %v1638
        %v1640 = vpop.xlane.xlu0 %1639
        %v1641 = vsel %vm874, %v1431, 0.0
        %1642 = vadd.xlane.f32.xlu0 %v1641
        %v1643 = vpop.xlane.xlu0 %1642
        %v1644 = vsel %vm874, %v1432, 0.0
        %1645 = vadd.xlane.f32.xlu0 %v1644
        %v1646 = vpop.xlane.xlu0 %1645
        %v1647 = vsel %vm874, %v1433, 0.0
        %1648 = vadd.xlane.f32.xlu0 %v1647
        %v1649 = vpop.xlane.xlu0 %1648
        %v1650 = vsel %vm874, %v1434, 0.0
        %1651 = vadd.xlane.f32.xlu0 %v1650
        %v1652 = vpop.xlane.xlu0 %1651
        %v1653 = vsel %vm874, %v1435, 0.0
        %1654 = vadd.xlane.f32.xlu0 %v1653
        %v1655 = vpop.xlane.xlu0 %1654
        %v1656 = vsel %vm874, %v1436, 0.0
        %1657 = vadd.xlane.f32.xlu0 %v1656
        %v1658 = vpop.xlane.xlu0 %1657
        %v1659 = vsel %vm874, %v1437, 0.0
        %1660 = vadd.xlane.f32.xlu0 %v1659
        %v1661 = vpop.xlane.xlu0 %1660
        %v1662 = vsel %vm874, %v1438, 0.0
        %1663 = vadd.xlane.f32.xlu0 %v1662
        %v1664 = vpop.xlane.xlu0 %1663
        %v1665 = vsel %vm874, %v1439, 0.0
        %1666 = vadd.xlane.f32.xlu0 %v1665
        %v1667 = vpop.xlane.xlu0 %1666
        %v1668 = vsel %vm874, %v1440, 0.0
        %1669 = vadd.xlane.f32.xlu0 %v1668
        %v1670 = vpop.xlane.xlu0 %1669
        %v1671 = vsel %vm874, %v1441, 0.0
        %1672 = vadd.xlane.f32.xlu0 %v1671
        %v1673 = vpop.xlane.xlu0 %1672
        %v1674 = vsel %vm874, %v1442, 0.0
        %1675 = vadd.xlane.f32.xlu0 %v1674
        %v1676 = vpop.xlane.xlu0 %1675
        %v1677 = vsel %vm874, %v1443, 0.0
        %1678 = vadd.xlane.f32.xlu0 %v1677
        %v1679 = vpop.xlane.xlu0 %1678
        %v1680 = vsel %vm874, %v1444, 0.0
        %1681 = vadd.xlane.f32.xlu0 %v1680
        %v1682 = vpop.xlane.xlu0 %1681
        %v1683 = vsel %vm874, %v1445, 0.0
        %1684 = vadd.xlane.f32.xlu0 %v1683
        %v1685 = vpop.xlane.xlu0 %1684
        %v1686 = vsel %vm874, %v1446, 0.0
        %1687 = vadd.xlane.f32.xlu0 %v1686
        %v1688 = vpop.xlane.xlu0 %1687
        %v1689 = vsel %vm874, %v1447, 0.0
        %1690 = vadd.xlane.f32.xlu0 %v1689
        %v1691 = vpop.xlane.xlu0 %1690
        %v1692 = vsel %vm874, %v1448, 0.0
        %1693 = vadd.xlane.f32.xlu0 %v1692
        %v1694 = vpop.xlane.xlu0 %1693
        %v1695 = vsel %vm874, %v1449, 0.0
        %1696 = vadd.xlane.f32.xlu0 %v1695
        %v1697 = vpop.xlane.xlu0 %1696
        %v1698 = vsel %vm874, %v1450, 0.0
        %1699 = vadd.xlane.f32.xlu0 %v1698
        %v1700 = vpop.xlane.xlu0 %1699
        %v1701 = vsel %vm874, %v1451, 0.0
        %1702 = vadd.xlane.f32.xlu0 %v1701
        %v1703 = vpop.xlane.xlu0 %1702
        %v1704 = vsel %vm874, %v1452, 0.0
        %1705 = vadd.xlane.f32.xlu0 %v1704
        %v1706 = vpop.xlane.xlu0 %1705
        %v1707 = vsel %vm874, %v1453, 0.0
        %1708 = vadd.xlane.f32.xlu0 %v1707
        %v1709 = vpop.xlane.xlu0 %1708
        %v1710 = vsel %vm874, %v1454, 0.0
        %1711 = vadd.xlane.f32.xlu0 %v1710
        %v1712 = vpop.xlane.xlu0 %1711
        %v1713 = vsel %vm874, %v1455, 0.0
        %1714 = vadd.xlane.f32.xlu0 %v1713
        %v1715 = vpop.xlane.xlu0 %1714
        %v1716 = vsel %vm874, %v1456, 0.0
        %1717 = vadd.xlane.f32.xlu0 %v1716
        %v1718 = vpop.xlane.xlu0 %1717
        %v1719 = vsel %vm874, %v1457, 0.0
        %1720 = vadd.xlane.f32.xlu0 %v1719
        %v1721 = vpop.xlane.xlu0 %1720
        %v1722 = vsel %vm874, %v1458, 0.0
        %1723 = vadd.xlane.f32.xlu0 %v1722
        %v1724 = vpop.xlane.xlu0 %1723
        %v1725 = vsel %vm874, %v1459, 0.0
        %1726 = vadd.xlane.f32.xlu0 %v1725
        %v1727 = vpop.xlane.xlu0 %1726
        %v1728 = vsel %vm874, %v1460, 0.0
        %1729 = vadd.xlane.f32.xlu0 %v1728
        %v1730 = vpop.xlane.xlu0 %1729
        %v1731 = vsel %vm874, %v1461, 0.0
        %1732 = vadd.xlane.f32.xlu0 %v1731
        %v1733 = vpop.xlane.xlu0 %1732
        %v1734 = vsel %vm874, %v1462, 0.0
        %1735 = vadd.xlane.f32.xlu0 %v1734
        %v1736 = vpop.xlane.xlu0 %1735
        %v1737 = vsel %vm874, %v1463, 0.0
        %1738 = vadd.xlane.f32.xlu0 %v1737
        %v1739 = vpop.xlane.xlu0 %1738
        %v1740 = vsel %vm874, %v1464, 0.0
        %1741 = vadd.xlane.f32.xlu0 %v1740
        %v1742 = vpop.xlane.xlu0 %1741
        %v1743 = vsel %vm874, %v1465, 0.0
        %1744 = vadd.xlane.f32.xlu0 %v1743
        %v1745 = vpop.xlane.xlu0 %1744
        %v1746 = vsel %vm874, %v1466, 0.0
        %1747 = vadd.xlane.f32.xlu0 %v1746
        %v1748 = vpop.xlane.xlu0 %1747
        %v1749 = vsel %vm874, %v1467, 0.0
        %1750 = vadd.xlane.f32.xlu0 %v1749
        %v1751 = vpop.xlane.xlu0 %1750
        %v1752 = vsel %vm874, %v1468, 0.0
        %1753 = vadd.xlane.f32.xlu0 %v1752
        %v1754 = vpop.xlane.xlu0 %1753
        %v1755 = vsel %vm874, %v1469, 0.0
        %1756 = vadd.xlane.f32.xlu0 %v1755
        %v1757 = vpop.xlane.xlu0 %1756
        %v1758 = vsel %vm874, %v1470, 0.0
        %1759 = vadd.xlane.f32.xlu0 %v1758
        %v1760 = vpop.xlane.xlu0 %1759
        %v1761 = vsel %vm874, %v1471, 0.0
        %1762 = vadd.xlane.f32.xlu0 %v1761
        %v1763 = vpop.xlane.xlu0 %1762
        %v1764 = vsel %vm874, %v1472, 0.0
        %1765 = vadd.xlane.f32.xlu0 %v1764
        %v1766 = vpop.xlane.xlu0 %1765
        %v1767 = vsel %vm874, %v1473, 0.0
        %1768 = vadd.xlane.f32.xlu0 %v1767
        %v1769 = vpop.xlane.xlu0 %1768
        %v1770 = vsel %vm874, %v1474, 0.0
        %1771 = vadd.xlane.f32.xlu0 %v1770
        %v1772 = vpop.xlane.xlu0 %1771
        %v1773 = vsel %vm874, %v1475, 0.0
        %1774 = vadd.xlane.f32.xlu0 %v1773
        %v1775 = vpop.xlane.xlu0 %1774
        %v1776 = vsel %vm874, %v1476, 0.0
        %1777 = vadd.xlane.f32.xlu0 %v1776
        %v1778 = vpop.xlane.xlu0 %1777
        %v1779 = vsel %vm874, %v1477, 0.0
        %1780 = vadd.xlane.f32.xlu0 %v1779
        %v1781 = vpop.xlane.xlu0 %1780
        %v1782 = vsel %vm874, %v1478, 0.0
        %1783 = vadd.xlane.f32.xlu0 %v1782
        %v1784 = vpop.xlane.xlu0 %1783
        %v1785 = vsel %vm874, %v1479, 0.0
        %1786 = vadd.xlane.f32.xlu0 %v1785
        %v1787 = vpop.xlane.xlu0 %1786
        %v1788 = vsel %vm874, %v1480, 0.0
        %1789 = vadd.xlane.f32.xlu0 %v1788
        %v1790 = vpop.xlane.xlu0 %1789
        %v1791 = vsel %vm874, %v1481, 0.0
        %1792 = vadd.xlane.f32.xlu0 %v1791
        %v1793 = vpop.xlane.xlu0 %1792
        %v1794 = vsel %vm874, %v1482, 0.0
        %1795 = vadd.xlane.f32.xlu0 %v1794
        %v1796 = vpop.xlane.xlu0 %1795
        %v1797 = vsel %vm874, %v1483, 0.0
        %1798 = vadd.xlane.f32.xlu0 %v1797
        %v1799 = vpop.xlane.xlu0 %1798
        %v1800 = vsel %vm874, %v1484, 0.0
        %1801 = vadd.xlane.f32.xlu0 %v1800
        %v1802 = vpop.xlane.xlu0 %1801
        %v1803 = vsel %vm874, %v1485, 0.0
        %1804 = vadd.xlane.f32.xlu0 %v1803
        %v1805 = vpop.xlane.xlu0 %1804
        %v1806 = vsel %vm874, %v1486, 0.0
        %1807 = vadd.xlane.f32.xlu0 %v1806
        %v1808 = vpop.xlane.xlu0 %1807
        %v1809 = vsel %vm874, %v1487, 0.0
        %1810 = vadd.xlane.f32.xlu0 %v1809
        %v1811 = vpop.xlane.xlu0 %1810
        %v1812 = vsel %vm874, %v1488, 0.0
        %1813 = vadd.xlane.f32.xlu0 %v1812
        %v1814 = vpop.xlane.xlu0 %1813
        %v1815 = vsel %vm874, %v1489, 0.0
        %1816 = vadd.xlane.f32.xlu0 %v1815
        %v1817 = vpop.xlane.xlu0 %1816
        %v1818 = vsel %vm874, %v1490, 0.0
        %1819 = vadd.xlane.f32.xlu0 %v1818
        %v1820 = vpop.xlane.xlu0 %1819
        %v1821 = vsel %vm874, %v1491, 0.0
        %1822 = vadd.xlane.f32.xlu0 %v1821
        %v1823 = vpop.xlane.xlu0 %1822
        %v1824 = vsel %vm874, %v1492, 0.0
        %1825 = vadd.xlane.f32.xlu0 %v1824
        %v1826 = vpop.xlane.xlu0 %1825
        %v1827 = vsel %vm874, %v1493, 0.0
        %1828 = vadd.xlane.f32.xlu0 %v1827
        %v1829 = vpop.xlane.xlu0 %1828
        %v1830 = vsel %vm874, %v1494, 0.0
        %1831 = vadd.xlane.f32.xlu0 %v1830
        %v1832 = vpop.xlane.xlu0 %1831
        %v1833 = vsel %vm874, %v1495, 0.0
        %1834 = vadd.xlane.f32.xlu0 %v1833
        %v1835 = vpop.xlane.xlu0 %1834
        %v1836 = vsel %vm874, %v1496, 0.0
        %1837 = vadd.xlane.f32.xlu0 %v1836
        %v1838 = vpop.xlane.xlu0 %1837
        %v1839 = vsel %vm874, %v1497, 0.0
        %1840 = vadd.xlane.f32.xlu0 %v1839
        %v1841 = vpop.xlane.xlu0 %1840
        %v1842 = vsel %vm874, %v1498, 0.0
        %1843 = vadd.xlane.f32.xlu0 %v1842
        %v1844 = vpop.xlane.xlu0 %1843
        %v1845 = vsel %vm874, %v1499, 0.0
        %1846 = vadd.xlane.f32.xlu0 %v1845
        %v1847 = vpop.xlane.xlu0 %1846
        %v1848 = vsel %vm874, %v1500, 0.0
        %1849 = vadd.xlane.f32.xlu0 %v1848
        %v1850 = vpop.xlane.xlu0 %1849
        %v1851 = vsel %vm874, %v1501, 0.0
        %1852 = vadd.xlane.f32.xlu0 %v1851
        %v1853 = vpop.xlane.xlu0 %1852
        %v1854 = vsel %vm874, %v1502, 0.0
        %1855 = vadd.xlane.f32.xlu0 %v1854
        %v1856 = vpop.xlane.xlu0 %1855
        %v1857 = vsel %vm874, %v1503, 0.0
        %1858 = vadd.xlane.f32.xlu0 %v1857
        %v1859 = vpop.xlane.xlu0 %1858
        %v1860 = vsel %vm874, %v1504, 0.0
        %1861 = vadd.xlane.f32.xlu0 %v1860
        %v1862 = vpop.xlane.xlu0 %1861
        %v1863 = vsel %vm874, %v1505, 0.0
        %1864 = vadd.xlane.f32.xlu0 %v1863
        %v1865 = vpop.xlane.xlu0 %1864
        %v1866 = vsel %vm874, %v1506, 0.0
        %1867 = vadd.xlane.f32.xlu0 %v1866
        %v1868 = vpop.xlane.xlu0 %1867
        %v1869 = vsel %vm874, %v1507, 0.0
        %1870 = vadd.xlane.f32.xlu0 %v1869
        %v1871 = vpop.xlane.xlu0 %1870
        %v1872 = vsel %vm874, %v1508, 0.0
        %1873 = vadd.xlane.f32.xlu0 %v1872
        %v1874 = vpop.xlane.xlu0 %1873
        %v1875 = vsel %vm874, %v1509, 0.0
        %1876 = vadd.xlane.f32.xlu0 %v1875
        %v1877 = vpop.xlane.xlu0 %1876
        %v1878 = vsel %vm874, %v1510, 0.0
        %1879 = vadd.xlane.f32.xlu0 %v1878
        %v1880 = vpop.xlane.xlu0 %1879
        %v1881 = vsel %vm874, %v1511, 0.0
        %1882 = vadd.xlane.f32.xlu0 %v1881
        %v1883 = vpop.xlane.xlu0 %1882
        %v1884 = vsel %vm874, %v1512, 0.0
        %1885 = vadd.xlane.f32.xlu0 %v1884
        %v1886 = vpop.xlane.xlu0 %1885
        %v1887 = vsel %vm874, %v1513, 0.0
        %1888 = vadd.xlane.f32.xlu0 %v1887
        %v1889 = vpop.xlane.xlu0 %1888
        %v1890 = vsel %vm874, %v1514, 0.0
        %1891 = vadd.xlane.f32.xlu0 %v1890
        %v1892 = vpop.xlane.xlu0 %1891
        %v1893 = vsel %vm874, %v1515, 0.0
        %1894 = vadd.xlane.f32.xlu0 %v1893
        %v1895 = vpop.xlane.xlu0 %1894
        %v1896 = vsel %vm874, %v1516, 0.0
        %1897 = vadd.xlane.f32.xlu0 %v1896
        %v1898 = vpop.xlane.xlu0 %1897
        %v1899 = vsel %vm874, %v1517, 0.0
        %1900 = vadd.xlane.f32.xlu0 %v1899
        %v1901 = vpop.xlane.xlu0 %1900
        %v1902 = vadd.f32 %v1520, %v1523
        %v1903 = vrot.slane %v1902, 4
        %v1904 = vadd.f32 %v1902, %v1903
        %v1905 = vrot.slane %v1904, 2
        %v1906 = vadd.f32 %v1904, %v1905
        %v1907 = vrot.slane %v1906, 1
        %v1908 = vadd.f32 %v1906, %v1907
        %v1909 = vadd.f32 %v1526, %v1529
        %v1910 = vrot.slane %v1909, 4
        %v1911 = vadd.f32 %v1909, %v1910
        %v1912 = vrot.slane %v1911, 2
        %v1913 = vadd.f32 %v1911, %v1912
        %v1914 = vrot.slane %v1913, 1
        %v1915 = vadd.f32 %v1913, %v1914
        %v1916 = vadd.f32 %v1532, %v1535
        %v1917 = vrot.slane %v1916, 4
        %v1918 = vadd.f32 %v1916, %v1917
        %v1919 = vrot.slane %v1918, 2
        %v1920 = vadd.f32 %v1918, %v1919
        %v1921 = vrot.slane %v1920, 1
        %v1922 = vadd.f32 %v1920, %v1921
        %v1923 = vadd.f32 %v1538, %v1541
        %v1924 = vrot.slane %v1923, 4
        %v1925 = vadd.f32 %v1923, %v1924
        %v1926 = vrot.slane %v1925, 2
        %v1927 = vadd.f32 %v1925, %v1926
        %v1928 = vrot.slane %v1927, 1
        %v1929 = vadd.f32 %v1927, %v1928
        %v1930 = vadd.f32 %v1544, %v1547
        %v1931 = vrot.slane %v1930, 4
        %v1932 = vadd.f32 %v1930, %v1931
        %v1933 = vrot.slane %v1932, 2
        %v1934 = vadd.f32 %v1932, %v1933
        %v1935 = vrot.slane %v1934, 1
        %v1936 = vadd.f32 %v1934, %v1935
        %v1937 = vadd.f32 %v1550, %v1553
        %v1938 = vrot.slane %v1937, 4
        %v1939 = vadd.f32 %v1937, %v1938
        %v1940 = vrot.slane %v1939, 2
        %v1941 = vadd.f32 %v1939, %v1940
        %v1942 = vrot.slane %v1941, 1
        %v1943 = vadd.f32 %v1941, %v1942
        %v1944 = vadd.f32 %v1556, %v1559
        %v1945 = vrot.slane %v1944, 4
        %v1946 = vadd.f32 %v1944, %v1945
        %v1947 = vrot.slane %v1946, 2
        %v1948 = vadd.f32 %v1946, %v1947
        %v1949 = vrot.slane %v1948, 1
        %v1950 = vadd.f32 %v1948, %v1949
        %v1951 = vadd.f32 %v1562, %v1565
        %v1952 = vrot.slane %v1951, 4
        %v1953 = vadd.f32 %v1951, %v1952
        %v1954 = vrot.slane %v1953, 2
        %v1955 = vadd.f32 %v1953, %v1954
        %v1956 = vrot.slane %v1955, 1
        %v1957 = vadd.f32 %v1955, %v1956
        %v1958 = vadd.f32 %v1568, %v1571
        %v1959 = vrot.slane %v1958, 4
        %v1960 = vadd.f32 %v1958, %v1959
        %v1961 = vrot.slane %v1960, 2
        %v1962 = vadd.f32 %v1960, %v1961
        %v1963 = vrot.slane %v1962, 1
        %v1964 = vadd.f32 %v1962, %v1963
        %v1965 = vadd.f32 %v1574, %v1577
        %v1966 = vrot.slane %v1965, 4
        %v1967 = vadd.f32 %v1965, %v1966
        %v1968 = vrot.slane %v1967, 2
        %v1969 = vadd.f32 %v1967, %v1968
        %v1970 = vrot.slane %v1969, 1
        %v1971 = vadd.f32 %v1969, %v1970
        %v1972 = vadd.f32 %v1580, %v1583
        %v1973 = vrot.slane %v1972, 4
        %v1974 = vadd.f32 %v1972, %v1973
        %v1975 = vrot.slane %v1974, 2
        %v1976 = vadd.f32 %v1974, %v1975
        %v1977 = vrot.slane %v1976, 1
        %v1978 = vadd.f32 %v1976, %v1977
        %v1979 = vadd.f32 %v1586, %v1589
        %v1980 = vrot.slane %v1979, 4
        %v1981 = vadd.f32 %v1979, %v1980
        %v1982 = vrot.slane %v1981, 2
        %v1983 = vadd.f32 %v1981, %v1982
        %v1984 = vrot.slane %v1983, 1
        %v1985 = vadd.f32 %v1983, %v1984
        %v1986 = vadd.f32 %v1592, %v1595
        %v1987 = vrot.slane %v1986, 4
        %v1988 = vadd.f32 %v1986, %v1987
        %v1989 = vrot.slane %v1988, 2
        %v1990 = vadd.f32 %v1988, %v1989
        %v1991 = vrot.slane %v1990, 1
        %v1992 = vadd.f32 %v1990, %v1991
        %v1993 = vadd.f32 %v1598, %v1601
        %v1994 = vrot.slane %v1993, 4
        %v1995 = vadd.f32 %v1993, %v1994
        %v1996 = vrot.slane %v1995, 2
        %v1997 = vadd.f32 %v1995, %v1996
        %v1998 = vrot.slane %v1997, 1
        %v1999 = vadd.f32 %v1997, %v1998
        %v2000 = vadd.f32 %v1604, %v1607
        %v2001 = vrot.slane %v2000, 4
        %v2002 = vadd.f32 %v2000, %v2001
        %v2003 = vrot.slane %v2002, 2
        %v2004 = vadd.f32 %v2002, %v2003
        %v2005 = vrot.slane %v2004, 1
        %v2006 = vadd.f32 %v2004, %v2005
        %v2007 = vadd.f32 %v1610, %v1613
        %v2008 = vrot.slane %v2007, 4
        %v2009 = vadd.f32 %v2007, %v2008
        %v2010 = vrot.slane %v2009, 2
        %v2011 = vadd.f32 %v2009, %v2010
        %v2012 = vrot.slane %v2011, 1
        %v2013 = vadd.f32 %v2011, %v2012
        %v2014 = vadd.f32 %v1616, %v1619
        %v2015 = vrot.slane %v2014, 4
        %v2016 = vadd.f32 %v2014, %v2015
        %v2017 = vrot.slane %v2016, 2
        %v2018 = vadd.f32 %v2016, %v2017
        %v2019 = vrot.slane %v2018, 1
        %v2020 = vadd.f32 %v2018, %v2019
        %v2021 = vadd.f32 %v1622, %v1625
        %v2022 = vrot.slane %v2021, 4
        %v2023 = vadd.f32 %v2021, %v2022
        %v2024 = vrot.slane %v2023, 2
        %v2025 = vadd.f32 %v2023, %v2024
        %v2026 = vrot.slane %v2025, 1
        %v2027 = vadd.f32 %v2025, %v2026
        %v2028 = vadd.f32 %v1628, %v1631
        %v2029 = vrot.slane %v2028, 4
        %v2030 = vadd.f32 %v2028, %v2029
        %v2031 = vrot.slane %v2030, 2
        %v2032 = vadd.f32 %v2030, %v2031
        %v2033 = vrot.slane %v2032, 1
        %v2034 = vadd.f32 %v2032, %v2033
        %v2035 = vadd.f32 %v1634, %v1637
        %v2036 = vrot.slane %v2035, 4
        %v2037 = vadd.f32 %v2035, %v2036
        %v2038 = vrot.slane %v2037, 2
        %v2039 = vadd.f32 %v2037, %v2038
        %v2040 = vrot.slane %v2039, 1
        %v2041 = vadd.f32 %v2039, %v2040
        %v2042 = vadd.f32 %v1640, %v1643
        %v2043 = vrot.slane %v2042, 4
        %v2044 = vadd.f32 %v2042, %v2043
        %v2045 = vrot.slane %v2044, 2
        %v2046 = vadd.f32 %v2044, %v2045
        %v2047 = vrot.slane %v2046, 1
        %v2048 = vadd.f32 %v2046, %v2047
        %v2049 = vadd.f32 %v1646, %v1649
        %v2050 = vrot.slane %v2049, 4
        %v2051 = vadd.f32 %v2049, %v2050
        %v2052 = vrot.slane %v2051, 2
        %v2053 = vadd.f32 %v2051, %v2052
        %v2054 = vrot.slane %v2053, 1
        %v2055 = vadd.f32 %v2053, %v2054
        %v2056 = vadd.f32 %v1652, %v1655
        %v2057 = vrot.slane %v2056, 4
        %v2058 = vadd.f32 %v2056, %v2057
        %v2059 = vrot.slane %v2058, 2
        %v2060 = vadd.f32 %v2058, %v2059
        %v2061 = vrot.slane %v2060, 1
        %v2062 = vadd.f32 %v2060, %v2061
        %v2063 = vadd.f32 %v1658, %v1661
        %v2064 = vrot.slane %v2063, 4
        %v2065 = vadd.f32 %v2063, %v2064
        %v2066 = vrot.slane %v2065, 2
        %v2067 = vadd.f32 %v2065, %v2066
        %v2068 = vrot.slane %v2067, 1
        %v2069 = vadd.f32 %v2067, %v2068
        %v2070 = vadd.f32 %v1664, %v1667
        %v2071 = vrot.slane %v2070, 4
        %v2072 = vadd.f32 %v2070, %v2071
        %v2073 = vrot.slane %v2072, 2
        %v2074 = vadd.f32 %v2072, %v2073
        %v2075 = vrot.slane %v2074, 1
        %v2076 = vadd.f32 %v2074, %v2075
        %v2077 = vadd.f32 %v1670, %v1673
        %v2078 = vrot.slane %v2077, 4
        %v2079 = vadd.f32 %v2077, %v2078
        %v2080 = vrot.slane %v2079, 2
        %v2081 = vadd.f32 %v2079, %v2080
        %v2082 = vrot.slane %v2081, 1
        %v2083 = vadd.f32 %v2081, %v2082
        %v2084 = vadd.f32 %v1676, %v1679
        %v2085 = vrot.slane %v2084, 4
        %v2086 = vadd.f32 %v2084, %v2085
        %v2087 = vrot.slane %v2086, 2
        %v2088 = vadd.f32 %v2086, %v2087
        %v2089 = vrot.slane %v2088, 1
        %v2090 = vadd.f32 %v2088, %v2089
        %v2091 = vadd.f32 %v1682, %v1685
        %v2092 = vrot.slane %v2091, 4
        %v2093 = vadd.f32 %v2091, %v2092
        %v2094 = vrot.slane %v2093, 2
        %v2095 = vadd.f32 %v2093, %v2094
        %v2096 = vrot.slane %v2095, 1
        %v2097 = vadd.f32 %v2095, %v2096
        %v2098 = vadd.f32 %v1688, %v1691
        %v2099 = vrot.slane %v2098, 4
        %v2100 = vadd.f32 %v2098, %v2099
        %v2101 = vrot.slane %v2100, 2
        %v2102 = vadd.f32 %v2100, %v2101
        %v2103 = vrot.slane %v2102, 1
        %v2104 = vadd.f32 %v2102, %v2103
        %v2105 = vadd.f32 %v1694, %v1697
        %v2106 = vrot.slane %v2105, 4
        %v2107 = vadd.f32 %v2105, %v2106
        %v2108 = vrot.slane %v2107, 2
        %v2109 = vadd.f32 %v2107, %v2108
        %v2110 = vrot.slane %v2109, 1
        %v2111 = vadd.f32 %v2109, %v2110
        %v2112 = vadd.f32 %v1700, %v1703
        %v2113 = vrot.slane %v2112, 4
        %v2114 = vadd.f32 %v2112, %v2113
        %v2115 = vrot.slane %v2114, 2
        %v2116 = vadd.f32 %v2114, %v2115
        %v2117 = vrot.slane %v2116, 1
        %v2118 = vadd.f32 %v2116, %v2117
        %v2119 = vadd.f32 %v1706, %v1709
        %v2120 = vrot.slane %v2119, 4
        %v2121 = vadd.f32 %v2119, %v2120
        %v2122 = vrot.slane %v2121, 2
        %v2123 = vadd.f32 %v2121, %v2122
        %v2124 = vrot.slane %v2123, 1
        %v2125 = vadd.f32 %v2123, %v2124
        %v2126 = vadd.f32 %v1712, %v1715
        %v2127 = vrot.slane %v2126, 4
        %v2128 = vadd.f32 %v2126, %v2127
        %v2129 = vrot.slane %v2128, 2
        %v2130 = vadd.f32 %v2128, %v2129
        %v2131 = vrot.slane %v2130, 1
        %v2132 = vadd.f32 %v2130, %v2131
        %v2133 = vadd.f32 %v1718, %v1721
        %v2134 = vrot.slane %v2133, 4
        %v2135 = vadd.f32 %v2133, %v2134
        %v2136 = vrot.slane %v2135, 2
        %v2137 = vadd.f32 %v2135, %v2136
        %v2138 = vrot.slane %v2137, 1
        %v2139 = vadd.f32 %v2137, %v2138
        %v2140 = vadd.f32 %v1724, %v1727
        %v2141 = vrot.slane %v2140, 4
        %v2142 = vadd.f32 %v2140, %v2141
        %v2143 = vrot.slane %v2142, 2
        %v2144 = vadd.f32 %v2142, %v2143
        %v2145 = vrot.slane %v2144, 1
        %v2146 = vadd.f32 %v2144, %v2145
        %v2147 = vadd.f32 %v1730, %v1733
        %v2148 = vrot.slane %v2147, 4
        %v2149 = vadd.f32 %v2147, %v2148
        %v2150 = vrot.slane %v2149, 2
        %v2151 = vadd.f32 %v2149, %v2150
        %v2152 = vrot.slane %v2151, 1
        %v2153 = vadd.f32 %v2151, %v2152
        %v2154 = vadd.f32 %v1736, %v1739
        %v2155 = vrot.slane %v2154, 4
        %v2156 = vadd.f32 %v2154, %v2155
        %v2157 = vrot.slane %v2156, 2
        %v2158 = vadd.f32 %v2156, %v2157
        %v2159 = vrot.slane %v2158, 1
        %v2160 = vadd.f32 %v2158, %v2159
        %v2161 = vadd.f32 %v1742, %v1745
        %v2162 = vrot.slane %v2161, 4
        %v2163 = vadd.f32 %v2161, %v2162
        %v2164 = vrot.slane %v2163, 2
        %v2165 = vadd.f32 %v2163, %v2164
        %v2166 = vrot.slane %v2165, 1
        %v2167 = vadd.f32 %v2165, %v2166
        %v2168 = vadd.f32 %v1748, %v1751
        %v2169 = vrot.slane %v2168, 4
        %v2170 = vadd.f32 %v2168, %v2169
        %v2171 = vrot.slane %v2170, 2
        %v2172 = vadd.f32 %v2170, %v2171
        %v2173 = vrot.slane %v2172, 1
        %v2174 = vadd.f32 %v2172, %v2173
        %v2175 = vadd.f32 %v1754, %v1757
        %v2176 = vrot.slane %v2175, 4
        %v2177 = vadd.f32 %v2175, %v2176
        %v2178 = vrot.slane %v2177, 2
        %v2179 = vadd.f32 %v2177, %v2178
        %v2180 = vrot.slane %v2179, 1
        %v2181 = vadd.f32 %v2179, %v2180
        %v2182 = vadd.f32 %v1760, %v1763
        %v2183 = vrot.slane %v2182, 4
        %v2184 = vadd.f32 %v2182, %v2183
        %v2185 = vrot.slane %v2184, 2
        %v2186 = vadd.f32 %v2184, %v2185
        %v2187 = vrot.slane %v2186, 1
        %v2188 = vadd.f32 %v2186, %v2187
        %v2189 = vadd.f32 %v1766, %v1769
        %v2190 = vrot.slane %v2189, 4
        %v2191 = vadd.f32 %v2189, %v2190
        %v2192 = vrot.slane %v2191, 2
        %v2193 = vadd.f32 %v2191, %v2192
        %v2194 = vrot.slane %v2193, 1
        %v2195 = vadd.f32 %v2193, %v2194
        %v2196 = vadd.f32 %v1772, %v1775
        %v2197 = vrot.slane %v2196, 4
        %v2198 = vadd.f32 %v2196, %v2197
        %v2199 = vrot.slane %v2198, 2
        %v2200 = vadd.f32 %v2198, %v2199
        %v2201 = vrot.slane %v2200, 1
        %v2202 = vadd.f32 %v2200, %v2201
        %v2203 = vadd.f32 %v1778, %v1781
        %v2204 = vrot.slane %v2203, 4
        %v2205 = vadd.f32 %v2203, %v2204
        %v2206 = vrot.slane %v2205, 2
        %v2207 = vadd.f32 %v2205, %v2206
        %v2208 = vrot.slane %v2207, 1
        %v2209 = vadd.f32 %v2207, %v2208
        %v2210 = vadd.f32 %v1784, %v1787
        %v2211 = vrot.slane %v2210, 4
        %v2212 = vadd.f32 %v2210, %v2211
        %v2213 = vrot.slane %v2212, 2
        %v2214 = vadd.f32 %v2212, %v2213
        %v2215 = vrot.slane %v2214, 1
        %v2216 = vadd.f32 %v2214, %v2215
        %v2217 = vadd.f32 %v1790, %v1793
        %v2218 = vrot.slane %v2217, 4
        %v2219 = vadd.f32 %v2217, %v2218
        %v2220 = vrot.slane %v2219, 2
        %v2221 = vadd.f32 %v2219, %v2220
        %v2222 = vrot.slane %v2221, 1
        %v2223 = vadd.f32 %v2221, %v2222
        %v2224 = vadd.f32 %v1796, %v1799
        %v2225 = vrot.slane %v2224, 4
        %v2226 = vadd.f32 %v2224, %v2225
        %v2227 = vrot.slane %v2226, 2
        %v2228 = vadd.f32 %v2226, %v2227
        %v2229 = vrot.slane %v2228, 1
        %v2230 = vadd.f32 %v2228, %v2229
        %v2231 = vadd.f32 %v1802, %v1805
        %v2232 = vrot.slane %v2231, 4
        %v2233 = vadd.f32 %v2231, %v2232
        %v2234 = vrot.slane %v2233, 2
        %v2235 = vadd.f32 %v2233, %v2234
        %v2236 = vrot.slane %v2235, 1
        %v2237 = vadd.f32 %v2235, %v2236
        %v2238 = vadd.f32 %v1808, %v1811
        %v2239 = vrot.slane %v2238, 4
        %v2240 = vadd.f32 %v2238, %v2239
        %v2241 = vrot.slane %v2240, 2
        %v2242 = vadd.f32 %v2240, %v2241
        %v2243 = vrot.slane %v2242, 1
        %v2244 = vadd.f32 %v2242, %v2243
        %v2245 = vadd.f32 %v1814, %v1817
        %v2246 = vrot.slane %v2245, 4
        %v2247 = vadd.f32 %v2245, %v2246
        %v2248 = vrot.slane %v2247, 2
        %v2249 = vadd.f32 %v2247, %v2248
        %v2250 = vrot.slane %v2249, 1
        %v2251 = vadd.f32 %v2249, %v2250
        %v2252 = vadd.f32 %v1820, %v1823
        %v2253 = vrot.slane %v2252, 4
        %v2254 = vadd.f32 %v2252, %v2253
        %v2255 = vrot.slane %v2254, 2
        %v2256 = vadd.f32 %v2254, %v2255
        %v2257 = vrot.slane %v2256, 1
        %v2258 = vadd.f32 %v2256, %v2257
        %v2259 = vadd.f32 %v1826, %v1829
        %v2260 = vrot.slane %v2259, 4
        %v2261 = vadd.f32 %v2259, %v2260
        %v2262 = vrot.slane %v2261, 2
        %v2263 = vadd.f32 %v2261, %v2262
        %v2264 = vrot.slane %v2263, 1
        %v2265 = vadd.f32 %v2263, %v2264
        %v2266 = vadd.f32 %v1832, %v1835
        %v2267 = vrot.slane %v2266, 4
        %v2268 = vadd.f32 %v2266, %v2267
        %v2269 = vrot.slane %v2268, 2
        %v2270 = vadd.f32 %v2268, %v2269
        %v2271 = vrot.slane %v2270, 1
        %v2272 = vadd.f32 %v2270, %v2271
        %v2273 = vadd.f32 %v1838, %v1841
        %v2274 = vrot.slane %v2273, 4
        %v2275 = vadd.f32 %v2273, %v2274
        %v2276 = vrot.slane %v2275, 2
        %v2277 = vadd.f32 %v2275, %v2276
        %v2278 = vrot.slane %v2277, 1
        %v2279 = vadd.f32 %v2277, %v2278
        %v2280 = vadd.f32 %v1844, %v1847
        %v2281 = vrot.slane %v2280, 4
        %v2282 = vadd.f32 %v2280, %v2281
        %v2283 = vrot.slane %v2282, 2
        %v2284 = vadd.f32 %v2282, %v2283
        %v2285 = vrot.slane %v2284, 1
        %v2286 = vadd.f32 %v2284, %v2285
        %v2287 = vadd.f32 %v1850, %v1853
        %v2288 = vrot.slane %v2287, 4
        %v2289 = vadd.f32 %v2287, %v2288
        %v2290 = vrot.slane %v2289, 2
        %v2291 = vadd.f32 %v2289, %v2290
        %v2292 = vrot.slane %v2291, 1
        %v2293 = vadd.f32 %v2291, %v2292
        %v2294 = vadd.f32 %v1856, %v1859
        %v2295 = vrot.slane %v2294, 4
        %v2296 = vadd.f32 %v2294, %v2295
        %v2297 = vrot.slane %v2296, 2
        %v2298 = vadd.f32 %v2296, %v2297
        %v2299 = vrot.slane %v2298, 1
        %v2300 = vadd.f32 %v2298, %v2299
        %v2301 = vadd.f32 %v1862, %v1865
        %v2302 = vrot.slane %v2301, 4
        %v2303 = vadd.f32 %v2301, %v2302
        %v2304 = vrot.slane %v2303, 2
        %v2305 = vadd.f32 %v2303, %v2304
        %v2306 = vrot.slane %v2305, 1
        %v2307 = vadd.f32 %v2305, %v2306
        %v2308 = vadd.f32 %v1868, %v1871
        %v2309 = vrot.slane %v2308, 4
        %v2310 = vadd.f32 %v2308, %v2309
        %v2311 = vrot.slane %v2310, 2
        %v2312 = vadd.f32 %v2310, %v2311
        %v2313 = vrot.slane %v2312, 1
        %v2314 = vadd.f32 %v2312, %v2313
        %v2315 = vadd.f32 %v1874, %v1877
        %v2316 = vrot.slane %v2315, 4
        %v2317 = vadd.f32 %v2315, %v2316
        %v2318 = vrot.slane %v2317, 2
        %v2319 = vadd.f32 %v2317, %v2318
        %v2320 = vrot.slane %v2319, 1
        %v2321 = vadd.f32 %v2319, %v2320
        %v2322 = vadd.f32 %v1880, %v1883
        %v2323 = vrot.slane %v2322, 4
        %v2324 = vadd.f32 %v2322, %v2323
        %v2325 = vrot.slane %v2324, 2
        %v2326 = vadd.f32 %v2324, %v2325
        %v2327 = vrot.slane %v2326, 1
        %v2328 = vadd.f32 %v2326, %v2327
        %v2329 = vadd.f32 %v1886, %v1889
        %v2330 = vrot.slane %v2329, 4
        %v2331 = vadd.f32 %v2329, %v2330
        %v2332 = vrot.slane %v2331, 2
        %v2333 = vadd.f32 %v2331, %v2332
        %v2334 = vrot.slane %v2333, 1
        %v2335 = vadd.f32 %v2333, %v2334
        %v2336 = vadd.f32 %v1892, %v1895
        %v2337 = vrot.slane %v2336, 4
        %v2338 = vadd.f32 %v2336, %v2337
        %v2339 = vrot.slane %v2338, 2
        %v2340 = vadd.f32 %v2338, %v2339
        %v2341 = vrot.slane %v2340, 1
        %v2342 = vadd.f32 %v2340, %v2341
        %v2343 = vadd.f32 %v1898, %v1901
        %v2344 = vrot.slane %v2343, 4
        %v2345 = vadd.f32 %v2343, %v2344
        %v2346 = vrot.slane %v2345, 2
        %v2347 = vadd.f32 %v2345, %v2346
        %v2348 = vrot.slane %v2347, 1
        %v2349 = vadd.f32 %v2347, %v2348
        %v2350 = vmul.f32 %v1908, 0.00390625
        %v2351 = vmul.f32 %v1915, 0.00390625
        %v2352 = vmul.f32 %v1922, 0.00390625
        %v2353 = vmul.f32 %v1929, 0.00390625
        %v2354 = vmul.f32 %v1936, 0.00390625
        %v2355 = vmul.f32 %v1943, 0.00390625
        %v2356 = vmul.f32 %v1950, 0.00390625
        %v2357 = vmul.f32 %v1957, 0.00390625
        %v2358 = vmul.f32 %v1964, 0.00390625
        %v2359 = vmul.f32 %v1971, 0.00390625
        %v2360 = vmul.f32 %v1978, 0.00390625
        %v2361 = vmul.f32 %v1985, 0.00390625
        %v2362 = vmul.f32 %v1992, 0.00390625
        %v2363 = vmul.f32 %v1999, 0.00390625
        %v2364 = vmul.f32 %v2006, 0.00390625
        %v2365 = vmul.f32 %v2013, 0.00390625
        %v2366 = vmul.f32 %v2020, 0.00390625
        %v2367 = vmul.f32 %v2027, 0.00390625
        %v2368 = vmul.f32 %v2034, 0.00390625
        %v2369 = vmul.f32 %v2041, 0.00390625
        %v2370 = vmul.f32 %v2048, 0.00390625
        %v2371 = vmul.f32 %v2055, 0.00390625
        %v2372 = vmul.f32 %v2062, 0.00390625
        %v2373 = vmul.f32 %v2069, 0.00390625
        %v2374 = vmul.f32 %v2076, 0.00390625
        %v2375 = vmul.f32 %v2083, 0.00390625
        %v2376 = vmul.f32 %v2090, 0.00390625
        %v2377 = vmul.f32 %v2097, 0.00390625
        %v2378 = vmul.f32 %v2104, 0.00390625
        %v2379 = vmul.f32 %v2111, 0.00390625
        %v2380 = vmul.f32 %v2118, 0.00390625
        %v2381 = vmul.f32 %v2125, 0.00390625
        %v2382 = vmul.f32 %v2132, 0.00390625
        %v2383 = vmul.f32 %v2139, 0.00390625
        %v2384 = vmul.f32 %v2146, 0.00390625
        %v2385 = vmul.f32 %v2153, 0.00390625
        %v2386 = vmul.f32 %v2160, 0.00390625
        %v2387 = vmul.f32 %v2167, 0.00390625
        %v2388 = vmul.f32 %v2174, 0.00390625
        %v2389 = vmul.f32 %v2181, 0.00390625
        %v2390 = vmul.f32 %v2188, 0.00390625
        %v2391 = vmul.f32 %v2195, 0.00390625
        %v2392 = vmul.f32 %v2202, 0.00390625
        %v2393 = vmul.f32 %v2209, 0.00390625
        %v2394 = vmul.f32 %v2216, 0.00390625
        %v2395 = vmul.f32 %v2223, 0.00390625
        %v2396 = vmul.f32 %v2230, 0.00390625
        %v2397 = vmul.f32 %v2237, 0.00390625
        %v2398 = vmul.f32 %v2244, 0.00390625
        %v2399 = vmul.f32 %v2251, 0.00390625
        %v2400 = vmul.f32 %v2258, 0.00390625
        %v2401 = vmul.f32 %v2265, 0.00390625
        %v2402 = vmul.f32 %v2272, 0.00390625
        %v2403 = vmul.f32 %v2279, 0.00390625
        %v2404 = vmul.f32 %v2286, 0.00390625
        %v2405 = vmul.f32 %v2293, 0.00390625
        %v2406 = vmul.f32 %v2300, 0.00390625
        %v2407 = vmul.f32 %v2307, 0.00390625
        %v2408 = vmul.f32 %v2314, 0.00390625
        %v2409 = vmul.f32 %v2321, 0.00390625
        %v2410 = vmul.f32 %v2328, 0.00390625
        %v2411 = vmul.f32 %v2335, 0.00390625
        %v2412 = vmul.f32 %v2342, 0.00390625
        %v2413 = vmul.f32 %v2349, 0.00390625
        %vm2414 = vcmask 0
        %2415 = vst.msk [vmem:[%s218] sm:$0x1] %vm2414, %v2350
        %2416 = vst.msk [vmem:[%s218 + $0x1] sm:$0x1] %vm2414, %v2351
        %2417 = vst.msk [vmem:[%s218 + $0x2] sm:$0x1] %vm2414, %v2352
        %2418 = vst.msk [vmem:[%s218 + $0x3] sm:$0x1] %vm2414, %v2353
        %2419 = vst.msk [vmem:[%s218 + $0x4] sm:$0x1] %vm2414, %v2354
        %2420 = vst.msk [vmem:[%s218 + $0x5] sm:$0x1] %vm2414, %v2355
        %2421 = vst.msk [vmem:[%s218 + $0x6] sm:$0x1] %vm2414, %v2356
        %2422 = vst.msk [vmem:[%s218 + $0x7] sm:$0x1] %vm2414, %v2357
        %2423 = vst.msk [vmem:[%s218 + $0x8] sm:$0x1] %vm2414, %v2358
        %2424 = vst.msk [vmem:[%s218 + $0x9] sm:$0x1] %vm2414, %v2359
        %2425 = vst.msk [vmem:[%s218 + $0xa] sm:$0x1] %vm2414, %v2360
        %2426 = vst.msk [vmem:[%s218 + $0xb] sm:$0x1] %vm2414, %v2361
        %2427 = vst.msk [vmem:[%s218 + $0xc] sm:$0x1] %vm2414, %v2362
        %2428 = vst.msk [vmem:[%s218 + $0xd] sm:$0x1] %vm2414, %v2363
        %2429 = vst.msk [vmem:[%s218 + $0xe] sm:$0x1] %vm2414, %v2364
        %2430 = vst.msk [vmem:[%s218 + $0xf] sm:$0x1] %vm2414, %v2365
        %2431 = vst.msk [vmem:[%s218 + $0x10] sm:$0x1] %vm2414, %v2366
        %2432 = vst.msk [vmem:[%s218 + $0x11] sm:$0x1] %vm2414, %v2367
        %2433 = vst.msk [vmem:[%s218 + $0x12] sm:$0x1] %vm2414, %v2368
        %2434 = vst.msk [vmem:[%s218 + $0x13] sm:$0x1] %vm2414, %v2369
        %2435 = vst.msk [vmem:[%s218 + $0x14] sm:$0x1] %vm2414, %v2370
        %2436 = vst.msk [vmem:[%s218 + $0x15] sm:$0x1] %vm2414, %v2371
        %2437 = vst.msk [vmem:[%s218 + $0x16] sm:$0x1] %vm2414, %v2372
        %2438 = vst.msk [vmem:[%s218 + $0x17] sm:$0x1] %vm2414, %v2373
        %2439 = vst.msk [vmem:[%s218 + $0x18] sm:$0x1] %vm2414, %v2374
        %2440 = vst.msk [vmem:[%s218 + $0x19] sm:$0x1] %vm2414, %v2375
        %2441 = vst.msk [vmem:[%s218 + $0x1a] sm:$0x1] %vm2414, %v2376
        %2442 = vst.msk [vmem:[%s218 + $0x1b] sm:$0x1] %vm2414, %v2377
        %2443 = vst.msk [vmem:[%s218 + $0x1c] sm:$0x1] %vm2414, %v2378
        %2444 = vst.msk [vmem:[%s218 + $0x1d] sm:$0x1] %vm2414, %v2379
        %2445 = vst.msk [vmem:[%s218 + $0x1e] sm:$0x1] %vm2414, %v2380
        %2446 = vst.msk [vmem:[%s218 + $0x1f] sm:$0x1] %vm2414, %v2381
        %2447 = vst.msk [vmem:[%s218 + $0x20] sm:$0x1] %vm2414, %v2382
        %2448 = vst.msk [vmem:[%s218 + $0x21] sm:$0x1] %vm2414, %v2383
        %2449 = vst.msk [vmem:[%s218 + $0x22] sm:$0x1] %vm2414, %v2384
        %2450 = vst.msk [vmem:[%s218 + $0x23] sm:$0x1] %vm2414, %v2385
        %2451 = vst.msk [vmem:[%s218 + $0x24] sm:$0x1] %vm2414, %v2386
        %2452 = vst.msk [vmem:[%s218 + $0x25] sm:$0x1] %vm2414, %v2387
        %2453 = vst.msk [vmem:[%s218 + $0x26] sm:$0x1] %vm2414, %v2388
        %2454 = vst.msk [vmem:[%s218 + $0x27] sm:$0x1] %vm2414, %v2389
        %2455 = vst.msk [vmem:[%s218 + $0x28] sm:$0x1] %vm2414, %v2390
        %2456 = vst.msk [vmem:[%s218 + $0x29] sm:$0x1] %vm2414, %v2391
        %2457 = vst.msk [vmem:[%s218 + $0x2a] sm:$0x1] %vm2414, %v2392
        %2458 = vst.msk [vmem:[%s218 + $0x2b] sm:$0x1] %vm2414, %v2393
        %2459 = vst.msk [vmem:[%s218 + $0x2c] sm:$0x1] %vm2414, %v2394
        %2460 = vst.msk [vmem:[%s218 + $0x2d] sm:$0x1] %vm2414, %v2395
        %2461 = vst.msk [vmem:[%s218 + $0x2e] sm:$0x1] %vm2414, %v2396
        %2462 = vst.msk [vmem:[%s218 + $0x2f] sm:$0x1] %vm2414, %v2397
        %2463 = vst.msk [vmem:[%s218 + $0x30] sm:$0x1] %vm2414, %v2398
        %2464 = vst.msk [vmem:[%s218 + $0x31] sm:$0x1] %vm2414, %v2399
        %2465 = vst.msk [vmem:[%s218 + $0x32] sm:$0x1] %vm2414, %v2400
        %2466 = vst.msk [vmem:[%s218 + $0x33] sm:$0x1] %vm2414, %v2401
        %2467 = vst.msk [vmem:[%s218 + $0x34] sm:$0x1] %vm2414, %v2402
        %2468 = vst.msk [vmem:[%s218 + $0x35] sm:$0x1] %vm2414, %v2403
        %2469 = vst.msk [vmem:[%s218 + $0x36] sm:$0x1] %vm2414, %v2404
        %2470 = vst.msk [vmem:[%s218 + $0x37] sm:$0x1] %vm2414, %v2405
        %2471 = vst.msk [vmem:[%s218 + $0x38] sm:$0x1] %vm2414, %v2406
        %2472 = vst.msk [vmem:[%s218 + $0x39] sm:$0x1] %vm2414, %v2407
        %2473 = vst.msk [vmem:[%s218 + $0x3a] sm:$0x1] %vm2414, %v2408
        %2474 = vst.msk [vmem:[%s218 + $0x3b] sm:$0x1] %vm2414, %v2409
        %2475 = vst.msk [vmem:[%s218 + $0x3c] sm:$0x1] %vm2414, %v2410
        %2476 = vst.msk [vmem:[%s218 + $0x3d] sm:$0x1] %vm2414, %v2411
        %2477 = vst.msk [vmem:[%s218 + $0x3e] sm:$0x1] %vm2414, %v2412
        %2478 = vst.msk [vmem:[%s218 + $0x3f] sm:$0x1] %vm2414, %v2413
        %v2479 = vld [vmem:[#allocation3] sm:$0xff]
        %v2480 = vld [vmem:[#allocation3 + $0x8] sm:$0xff]
        %v2481 = vld [vmem:[#allocation3 + $0x10] sm:$0xff]
        %v2482 = vld [vmem:[#allocation3 + $0x18] sm:$0xff]
        %v2483 = vld [vmem:[#allocation3 + $0x20] sm:$0xff]
        %v2484 = vld [vmem:[#allocation3 + $0x28] sm:$0xff]
        %v2485 = vld [vmem:[#allocation3 + $0x30] sm:$0xff]
        %v2486 = vld [vmem:[#allocation3 + $0x38] sm:$0xff]
        %v2487 = vld [vmem:[#allocation3 + $0x40] sm:$0xff]
        %v2488 = vld [vmem:[#allocation3 + $0x48] sm:$0xff]
        %v2489 = vld [vmem:[#allocation3 + $0x50] sm:$0xff]
        %v2490 = vld [vmem:[#allocation3 + $0x58] sm:$0xff]
        %v2491 = vld [vmem:[#allocation3 + $0x60] sm:$0xff]
        %v2492 = vld [vmem:[#allocation3 + $0x68] sm:$0xff]
        %v2493 = vld [vmem:[#allocation3 + $0x70] sm:$0xff]
        %v2494 = vld [vmem:[#allocation3 + $0x78] sm:$0xff]
        %v2495 = vld [vmem:[#allocation3 + $0x80] sm:$0xff]
        %v2496 = vld [vmem:[#allocation3 + $0x88] sm:$0xff]
        %v2497 = vld [vmem:[#allocation3 + $0x90] sm:$0xff]
        %v2498 = vld [vmem:[#allocation3 + $0x98] sm:$0xff]
        %v2499 = vld [vmem:[#allocation3 + $0xa0] sm:$0xff]
        %v2500 = vld [vmem:[#allocation3 + $0xa8] sm:$0xff]
        %v2501 = vld [vmem:[#allocation3 + $0xb0] sm:$0xff]
        %v2502 = vld [vmem:[#allocation3 + $0xb8] sm:$0xff]
        %v2503 = vld [vmem:[#allocation3 + $0xc0] sm:$0xff]
        %v2504 = vld [vmem:[#allocation3 + $0xc8] sm:$0xff]
        %v2505 = vld [vmem:[#allocation3 + $0xd0] sm:$0xff]
        %v2506 = vld [vmem:[#allocation3 + $0xd8] sm:$0xff]
        %v2507 = vld [vmem:[#allocation3 + $0xe0] sm:$0xff]
        %v2508 = vld [vmem:[#allocation3 + $0xe8] sm:$0xff]
        %v2509 = vld [vmem:[#allocation3 + $0xf0] sm:$0xff]
        %v2510 = vld [vmem:[#allocation3 + $0xf8] sm:$0xff]
        %v2511 = vld [vmem:[#allocation3 + $0x100] sm:$0xff]
        %v2512 = vld [vmem:[#allocation3 + $0x108] sm:$0xff]
        %v2513 = vld [vmem:[#allocation3 + $0x110] sm:$0xff]
        %v2514 = vld [vmem:[#allocation3 + $0x118] sm:$0xff]
        %v2515 = vld [vmem:[#allocation3 + $0x120] sm:$0xff]
        %v2516 = vld [vmem:[#allocation3 + $0x128] sm:$0xff]
        %v2517 = vld [vmem:[#allocation3 + $0x130] sm:$0xff]
        %v2518 = vld [vmem:[#allocation3 + $0x138] sm:$0xff]
        %v2519 = vld [vmem:[#allocation3 + $0x140] sm:$0xff]
        %v2520 = vld [vmem:[#allocation3 + $0x148] sm:$0xff]
        %v2521 = vld [vmem:[#allocation3 + $0x150] sm:$0xff]
        %v2522 = vld [vmem:[#allocation3 + $0x158] sm:$0xff]
        %v2523 = vld [vmem:[#allocation3 + $0x160] sm:$0xff]
        %v2524 = vld [vmem:[#allocation3 + $0x168] sm:$0xff]
        %v2525 = vld [vmem:[#allocation3 + $0x170] sm:$0xff]
        %v2526 = vld [vmem:[#allocation3 + $0x178] sm:$0xff]
        %v2527 = vld [vmem:[#allocation3 + $0x180] sm:$0xff]
        %v2528 = vld [vmem:[#allocation3 + $0x188] sm:$0xff]
        %v2529 = vld [vmem:[#allocation3 + $0x190] sm:$0xff]
        %v2530 = vld [vmem:[#allocation3 + $0x198] sm:$0xff]
        %v2531 = vld [vmem:[#allocation3 + $0x1a0] sm:$0xff]
        %v2532 = vld [vmem:[#allocation3 + $0x1a8] sm:$0xff]
        %v2533 = vld [vmem:[#allocation3 + $0x1b0] sm:$0xff]
        %v2534 = vld [vmem:[#allocation3 + $0x1b8] sm:$0xff]
        %v2535 = vld [vmem:[#allocation3 + $0x1c0] sm:$0xff]
        %v2536 = vld [vmem:[#allocation3 + $0x1c8] sm:$0xff]
        %v2537 = vld [vmem:[#allocation3 + $0x1d0] sm:$0xff]
        %v2538 = vld [vmem:[#allocation3 + $0x1d8] sm:$0xff]
        %v2539 = vld [vmem:[#allocation3 + $0x1e0] sm:$0xff]
        %v2540 = vld [vmem:[#allocation3 + $0x1e8] sm:$0xff]
        %v2541 = vld [vmem:[#allocation3 + $0x1f0] sm:$0xff]
        %v2542 = vld [vmem:[#allocation3 + $0x1f8] sm:$0xff]
        %v2543 = vld [vmem:[#allocation3 + $0x200] sm:$0xff]
        %v2544 = vld [vmem:[#allocation3 + $0x208] sm:$0xff]
        %v2545 = vld [vmem:[#allocation3 + $0x210] sm:$0xff]
        %v2546 = vld [vmem:[#allocation3 + $0x218] sm:$0xff]
        %v2547 = vld [vmem:[#allocation3 + $0x220] sm:$0xff]
        %v2548 = vld [vmem:[#allocation3 + $0x228] sm:$0xff]
        %v2549 = vld [vmem:[#allocation3 + $0x230] sm:$0xff]
        %v2550 = vld [vmem:[#allocation3 + $0x238] sm:$0xff]
        %v2551 = vld [vmem:[#allocation3 + $0x240] sm:$0xff]
        %v2552 = vld [vmem:[#allocation3 + $0x248] sm:$0xff]
        %v2553 = vld [vmem:[#allocation3 + $0x250] sm:$0xff]
        %v2554 = vld [vmem:[#allocation3 + $0x258] sm:$0xff]
        %v2555 = vld [vmem:[#allocation3 + $0x260] sm:$0xff]
        %v2556 = vld [vmem:[#allocation3 + $0x268] sm:$0xff]
        %v2557 = vld [vmem:[#allocation3 + $0x270] sm:$0xff]
        %v2558 = vld [vmem:[#allocation3 + $0x278] sm:$0xff]
        %v2559 = vld [vmem:[#allocation3 + $0x280] sm:$0xff]
        %v2560 = vld [vmem:[#allocation3 + $0x288] sm:$0xff]
        %v2561 = vld [vmem:[#allocation3 + $0x290] sm:$0xff]
        %v2562 = vld [vmem:[#allocation3 + $0x298] sm:$0xff]
        %v2563 = vld [vmem:[#allocation3 + $0x2a0] sm:$0xff]
        %v2564 = vld [vmem:[#allocation3 + $0x2a8] sm:$0xff]
        %v2565 = vld [vmem:[#allocation3 + $0x2b0] sm:$0xff]
        %v2566 = vld [vmem:[#allocation3 + $0x2b8] sm:$0xff]
        %v2567 = vld [vmem:[#allocation3 + $0x2c0] sm:$0xff]
        %v2568 = vld [vmem:[#allocation3 + $0x2c8] sm:$0xff]
        %v2569 = vld [vmem:[#allocation3 + $0x2d0] sm:$0xff]
        %v2570 = vld [vmem:[#allocation3 + $0x2d8] sm:$0xff]
        %v2571 = vld [vmem:[#allocation3 + $0x2e0] sm:$0xff]
        %v2572 = vld [vmem:[#allocation3 + $0x2e8] sm:$0xff]
        %v2573 = vld [vmem:[#allocation3 + $0x2f0] sm:$0xff]
        %v2574 = vld [vmem:[#allocation3 + $0x2f8] sm:$0xff]
        %v2575 = vld [vmem:[#allocation3 + $0x300] sm:$0xff]
        %v2576 = vld [vmem:[#allocation3 + $0x308] sm:$0xff]
        %v2577 = vld [vmem:[#allocation3 + $0x310] sm:$0xff]
        %v2578 = vld [vmem:[#allocation3 + $0x318] sm:$0xff]
        %v2579 = vld [vmem:[#allocation3 + $0x320] sm:$0xff]
        %v2580 = vld [vmem:[#allocation3 + $0x328] sm:$0xff]
        %v2581 = vld [vmem:[#allocation3 + $0x330] sm:$0xff]
        %v2582 = vld [vmem:[#allocation3 + $0x338] sm:$0xff]
        %v2583 = vld [vmem:[#allocation3 + $0x340] sm:$0xff]
        %v2584 = vld [vmem:[#allocation3 + $0x348] sm:$0xff]
        %v2585 = vld [vmem:[#allocation3 + $0x350] sm:$0xff]
        %v2586 = vld [vmem:[#allocation3 + $0x358] sm:$0xff]
        %v2587 = vld [vmem:[#allocation3 + $0x360] sm:$0xff]
        %v2588 = vld [vmem:[#allocation3 + $0x368] sm:$0xff]
        %v2589 = vld [vmem:[#allocation3 + $0x370] sm:$0xff]
        %v2590 = vld [vmem:[#allocation3 + $0x378] sm:$0xff]
        %v2591 = vld [vmem:[#allocation3 + $0x380] sm:$0xff]
        %v2592 = vld [vmem:[#allocation3 + $0x388] sm:$0xff]
        %v2593 = vld [vmem:[#allocation3 + $0x390] sm:$0xff]
        %v2594 = vld [vmem:[#allocation3 + $0x398] sm:$0xff]
        %v2595 = vld [vmem:[#allocation3 + $0x3a0] sm:$0xff]
        %v2596 = vld [vmem:[#allocation3 + $0x3a8] sm:$0xff]
        %v2597 = vld [vmem:[#allocation3 + $0x3b0] sm:$0xff]
        %v2598 = vld [vmem:[#allocation3 + $0x3b8] sm:$0xff]
        %v2599 = vld [vmem:[#allocation3 + $0x3c0] sm:$0xff]
        %v2600 = vld [vmem:[#allocation3 + $0x3c8] sm:$0xff]
        %v2601 = vld [vmem:[#allocation3 + $0x3d0] sm:$0xff]
        %v2602 = vld [vmem:[#allocation3 + $0x3d8] sm:$0xff]
        %v2603 = vld [vmem:[#allocation3 + $0x3e0] sm:$0xff]
        %v2604 = vld [vmem:[#allocation3 + $0x3e8] sm:$0xff]
        %v2605 = vld [vmem:[#allocation3 + $0x3f0] sm:$0xff]
        %v2606 = vld [vmem:[#allocation3 + $0x3f8] sm:$0xff]
        %v2607 = vsel %vm874, %v2479, -inf
        %2608 = vmax.xlane.f32.xlu0 %v2607
        %v2609 = vpop.xlane.xlu0 %2608
        %v2610 = vsel %vm874, %v2480, -inf
        %2611 = vmax.xlane.f32.xlu0 %v2610
        %v2612 = vpop.xlane.xlu0 %2611
        %v2613 = vsel %vm874, %v2481, -inf
        %2614 = vmax.xlane.f32.xlu0 %v2613
        %v2615 = vpop.xlane.xlu0 %2614
        %v2616 = vsel %vm874, %v2482, -inf
        %2617 = vmax.xlane.f32.xlu0 %v2616
        %v2618 = vpop.xlane.xlu0 %2617
        %v2619 = vsel %vm874, %v2483, -inf
        %2620 = vmax.xlane.f32.xlu0 %v2619
        %v2621 = vpop.xlane.xlu0 %2620
        %v2622 = vsel %vm874, %v2484, -inf
        %2623 = vmax.xlane.f32.xlu0 %v2622
        %v2624 = vpop.xlane.xlu0 %2623
        %v2625 = vsel %vm874, %v2485, -inf
        %2626 = vmax.xlane.f32.xlu0 %v2625
        %v2627 = vpop.xlane.xlu0 %2626
        %v2628 = vsel %vm874, %v2486, -inf
        %2629 = vmax.xlane.f32.xlu0 %v2628
        %v2630 = vpop.xlane.xlu0 %2629
        %v2631 = vsel %vm874, %v2487, -inf
        %2632 = vmax.xlane.f32.xlu0 %v2631
        %v2633 = vpop.xlane.xlu0 %2632
        %v2634 = vsel %vm874, %v2488, -inf
        %2635 = vmax.xlane.f32.xlu0 %v2634
        %v2636 = vpop.xlane.xlu0 %2635
        %v2637 = vsel %vm874, %v2489, -inf
        %2638 = vmax.xlane.f32.xlu0 %v2637
        %v2639 = vpop.xlane.xlu0 %2638
        %v2640 = vsel %vm874, %v2490, -inf
        %2641 = vmax.xlane.f32.xlu0 %v2640
        %v2642 = vpop.xlane.xlu0 %2641
        %v2643 = vsel %vm874, %v2491, -inf
        %2644 = vmax.xlane.f32.xlu0 %v2643
        %v2645 = vpop.xlane.xlu0 %2644
        %v2646 = vsel %vm874, %v2492, -inf
        %2647 = vmax.xlane.f32.xlu0 %v2646
        %v2648 = vpop.xlane.xlu0 %2647
        %v2649 = vsel %vm874, %v2493, -inf
        %2650 = vmax.xlane.f32.xlu0 %v2649
        %v2651 = vpop.xlane.xlu0 %2650
        %v2652 = vsel %vm874, %v2494, -inf
        %2653 = vmax.xlane.f32.xlu0 %v2652
        %v2654 = vpop.xlane.xlu0 %2653
        %v2655 = vsel %vm874, %v2495, -inf
        %2656 = vmax.xlane.f32.xlu0 %v2655
        %v2657 = vpop.xlane.xlu0 %2656
        %v2658 = vsel %vm874, %v2496, -inf
        %2659 = vmax.xlane.f32.xlu0 %v2658
        %v2660 = vpop.xlane.xlu0 %2659
        %v2661 = vsel %vm874, %v2497, -inf
        %2662 = vmax.xlane.f32.xlu0 %v2661
        %v2663 = vpop.xlane.xlu0 %2662
        %v2664 = vsel %vm874, %v2498, -inf
        %2665 = vmax.xlane.f32.xlu0 %v2664
        %v2666 = vpop.xlane.xlu0 %2665
        %v2667 = vsel %vm874, %v2499, -inf
        %2668 = vmax.xlane.f32.xlu0 %v2667
        %v2669 = vpop.xlane.xlu0 %2668
        %v2670 = vsel %vm874, %v2500, -inf
        %2671 = vmax.xlane.f32.xlu0 %v2670
        %v2672 = vpop.xlane.xlu0 %2671
        %v2673 = vsel %vm874, %v2501, -inf
        %2674 = vmax.xlane.f32.xlu0 %v2673
        %v2675 = vpop.xlane.xlu0 %2674
        %v2676 = vsel %vm874, %v2502, -inf
        %2677 = vmax.xlane.f32.xlu0 %v2676
        %v2678 = vpop.xlane.xlu0 %2677
        %v2679 = vsel %vm874, %v2503, -inf
        %2680 = vmax.xlane.f32.xlu0 %v2679
        %v2681 = vpop.xlane.xlu0 %2680
        %v2682 = vsel %vm874, %v2504, -inf
        %2683 = vmax.xlane.f32.xlu0 %v2682
        %v2684 = vpop.xlane.xlu0 %2683
        %v2685 = vsel %vm874, %v2505, -inf
        %2686 = vmax.xlane.f32.xlu0 %v2685
        %v2687 = vpop.xlane.xlu0 %2686
        %v2688 = vsel %vm874, %v2506, -inf
        %2689 = vmax.xlane.f32.xlu0 %v2688
        %v2690 = vpop.xlane.xlu0 %2689
        %v2691 = vsel %vm874, %v2507, -inf
        %2692 = vmax.xlane.f32.xlu0 %v2691
        %v2693 = vpop.xlane.xlu0 %2692
        %v2694 = vsel %vm874, %v2508, -inf
        %2695 = vmax.xlane.f32.xlu0 %v2694
        %v2696 = vpop.xlane.xlu0 %2695
        %v2697 = vsel %vm874, %v2509, -inf
        %2698 = vmax.xlane.f32.xlu0 %v2697
        %v2699 = vpop.xlane.xlu0 %2698
        %v2700 = vsel %vm874, %v2510, -inf
        %2701 = vmax.xlane.f32.xlu0 %v2700
        %v2702 = vpop.xlane.xlu0 %2701
        %v2703 = vsel %vm874, %v2511, -inf
        %2704 = vmax.xlane.f32.xlu0 %v2703
        %v2705 = vpop.xlane.xlu0 %2704
        %v2706 = vsel %vm874, %v2512, -inf
        %2707 = vmax.xlane.f32.xlu0 %v2706
        %v2708 = vpop.xlane.xlu0 %2707
        %v2709 = vsel %vm874, %v2513, -inf
        %2710 = vmax.xlane.f32.xlu0 %v2709
        %v2711 = vpop.xlane.xlu0 %2710
        %v2712 = vsel %vm874, %v2514, -inf
        %2713 = vmax.xlane.f32.xlu0 %v2712
        %v2714 = vpop.xlane.xlu0 %2713
        %v2715 = vsel %vm874, %v2515, -inf
        %2716 = vmax.xlane.f32.xlu0 %v2715
        %v2717 = vpop.xlane.xlu0 %2716
        %v2718 = vsel %vm874, %v2516, -inf
        %2719 = vmax.xlane.f32.xlu0 %v2718
        %v2720 = vpop.xlane.xlu0 %2719
        %v2721 = vsel %vm874, %v2517, -inf
        %2722 = vmax.xlane.f32.xlu0 %v2721
        %v2723 = vpop.xlane.xlu0 %2722
        %v2724 = vsel %vm874, %v2518, -inf
        %2725 = vmax.xlane.f32.xlu0 %v2724
        %v2726 = vpop.xlane.xlu0 %2725
        %v2727 = vsel %vm874, %v2519, -inf
        %2728 = vmax.xlane.f32.xlu0 %v2727
        %v2729 = vpop.xlane.xlu0 %2728
        %v2730 = vsel %vm874, %v2520, -inf
        %2731 = vmax.xlane.f32.xlu0 %v2730
        %v2732 = vpop.xlane.xlu0 %2731
        %v2733 = vsel %vm874, %v2521, -inf
        %2734 = vmax.xlane.f32.xlu0 %v2733
        %v2735 = vpop.xlane.xlu0 %2734
        %v2736 = vsel %vm874, %v2522, -inf
        %2737 = vmax.xlane.f32.xlu0 %v2736
        %v2738 = vpop.xlane.xlu0 %2737
        %v2739 = vsel %vm874, %v2523, -inf
        %2740 = vmax.xlane.f32.xlu0 %v2739
        %v2741 = vpop.xlane.xlu0 %2740
        %v2742 = vsel %vm874, %v2524, -inf
        %2743 = vmax.xlane.f32.xlu0 %v2742
        %v2744 = vpop.xlane.xlu0 %2743
        %v2745 = vsel %vm874, %v2525, -inf
        %2746 = vmax.xlane.f32.xlu0 %v2745
        %v2747 = vpop.xlane.xlu0 %2746
        %v2748 = vsel %vm874, %v2526, -inf
        %2749 = vmax.xlane.f32.xlu0 %v2748
        %v2750 = vpop.xlane.xlu0 %2749
        %v2751 = vsel %vm874, %v2527, -inf
        %2752 = vmax.xlane.f32.xlu0 %v2751
        %v2753 = vpop.xlane.xlu0 %2752
        %v2754 = vsel %vm874, %v2528, -inf
        %2755 = vmax.xlane.f32.xlu0 %v2754
        %v2756 = vpop.xlane.xlu0 %2755
        %v2757 = vsel %vm874, %v2529, -inf
        %2758 = vmax.xlane.f32.xlu0 %v2757
        %v2759 = vpop.xlane.xlu0 %2758
        %v2760 = vsel %vm874, %v2530, -inf
        %2761 = vmax.xlane.f32.xlu0 %v2760
        %v2762 = vpop.xlane.xlu0 %2761
        %v2763 = vsel %vm874, %v2531, -inf
        %2764 = vmax.xlane.f32.xlu0 %v2763
        %v2765 = vpop.xlane.xlu0 %2764
        %v2766 = vsel %vm874, %v2532, -inf
        %2767 = vmax.xlane.f32.xlu0 %v2766
        %v2768 = vpop.xlane.xlu0 %2767
        %v2769 = vsel %vm874, %v2533, -inf
        %2770 = vmax.xlane.f32.xlu0 %v2769
        %v2771 = vpop.xlane.xlu0 %2770
        %v2772 = vsel %vm874, %v2534, -inf
        %2773 = vmax.xlane.f32.xlu0 %v2772
        %v2774 = vpop.xlane.xlu0 %2773
        %v2775 = vsel %vm874, %v2535, -inf
        %2776 = vmax.xlane.f32.xlu0 %v2775
        %v2777 = vpop.xlane.xlu0 %2776
        %v2778 = vsel %vm874, %v2536, -inf
        %2779 = vmax.xlane.f32.xlu0 %v2778
        %v2780 = vpop.xlane.xlu0 %2779
        %v2781 = vsel %vm874, %v2537, -inf
        %2782 = vmax.xlane.f32.xlu0 %v2781
        %v2783 = vpop.xlane.xlu0 %2782
        %v2784 = vsel %vm874, %v2538, -inf
        %2785 = vmax.xlane.f32.xlu0 %v2784
        %v2786 = vpop.xlane.xlu0 %2785
        %v2787 = vsel %vm874, %v2539, -inf
        %2788 = vmax.xlane.f32.xlu0 %v2787
        %v2789 = vpop.xlane.xlu0 %2788
        %v2790 = vsel %vm874, %v2540, -inf
        %2791 = vmax.xlane.f32.xlu0 %v2790
        %v2792 = vpop.xlane.xlu0 %2791
        %v2793 = vsel %vm874, %v2541, -inf
        %2794 = vmax.xlane.f32.xlu0 %v2793
        %v2795 = vpop.xlane.xlu0 %2794
        %v2796 = vsel %vm874, %v2542, -inf
        %2797 = vmax.xlane.f32.xlu0 %v2796
        %v2798 = vpop.xlane.xlu0 %2797
        %v2799 = vsel %vm874, %v2543, -inf
        %2800 = vmax.xlane.f32.xlu0 %v2799
        %v2801 = vpop.xlane.xlu0 %2800
        %v2802 = vsel %vm874, %v2544, -inf
        %2803 = vmax.xlane.f32.xlu0 %v2802
        %v2804 = vpop.xlane.xlu0 %2803
        %v2805 = vsel %vm874, %v2545, -inf
        %2806 = vmax.xlane.f32.xlu0 %v2805
        %v2807 = vpop.xlane.xlu0 %2806
        %v2808 = vsel %vm874, %v2546, -inf
        %2809 = vmax.xlane.f32.xlu0 %v2808
        %v2810 = vpop.xlane.xlu0 %2809
        %v2811 = vsel %vm874, %v2547, -inf
        %2812 = vmax.xlane.f32.xlu0 %v2811
        %v2813 = vpop.xlane.xlu0 %2812
        %v2814 = vsel %vm874, %v2548, -inf
        %2815 = vmax.xlane.f32.xlu0 %v2814
        %v2816 = vpop.xlane.xlu0 %2815
        %v2817 = vsel %vm874, %v2549, -inf
        %2818 = vmax.xlane.f32.xlu0 %v2817
        %v2819 = vpop.xlane.xlu0 %2818
        %v2820 = vsel %vm874, %v2550, -inf
        %2821 = vmax.xlane.f32.xlu0 %v2820
        %v2822 = vpop.xlane.xlu0 %2821
        %v2823 = vsel %vm874, %v2551, -inf
        %2824 = vmax.xlane.f32.xlu0 %v2823
        %v2825 = vpop.xlane.xlu0 %2824
        %v2826 = vsel %vm874, %v2552, -inf
        %2827 = vmax.xlane.f32.xlu0 %v2826
        %v2828 = vpop.xlane.xlu0 %2827
        %v2829 = vsel %vm874, %v2553, -inf
        %2830 = vmax.xlane.f32.xlu0 %v2829
        %v2831 = vpop.xlane.xlu0 %2830
        %v2832 = vsel %vm874, %v2554, -inf
        %2833 = vmax.xlane.f32.xlu0 %v2832
        %v2834 = vpop.xlane.xlu0 %2833
        %v2835 = vsel %vm874, %v2555, -inf
        %2836 = vmax.xlane.f32.xlu0 %v2835
        %v2837 = vpop.xlane.xlu0 %2836
        %v2838 = vsel %vm874, %v2556, -inf
        %2839 = vmax.xlane.f32.xlu0 %v2838
        %v2840 = vpop.xlane.xlu0 %2839
        %v2841 = vsel %vm874, %v2557, -inf
        %2842 = vmax.xlane.f32.xlu0 %v2841
        %v2843 = vpop.xlane.xlu0 %2842
        %v2844 = vsel %vm874, %v2558, -inf
        %2845 = vmax.xlane.f32.xlu0 %v2844
        %v2846 = vpop.xlane.xlu0 %2845
        %v2847 = vsel %vm874, %v2559, -inf
        %2848 = vmax.xlane.f32.xlu0 %v2847
        %v2849 = vpop.xlane.xlu0 %2848
        %v2850 = vsel %vm874, %v2560, -inf
        %2851 = vmax.xlane.f32.xlu0 %v2850
        %v2852 = vpop.xlane.xlu0 %2851
        %v2853 = vsel %vm874, %v2561, -inf
        %2854 = vmax.xlane.f32.xlu0 %v2853
        %v2855 = vpop.xlane.xlu0 %2854
        %v2856 = vsel %vm874, %v2562, -inf
        %2857 = vmax.xlane.f32.xlu0 %v2856
        %v2858 = vpop.xlane.xlu0 %2857
        %v2859 = vsel %vm874, %v2563, -inf
        %2860 = vmax.xlane.f32.xlu0 %v2859
        %v2861 = vpop.xlane.xlu0 %2860
        %v2862 = vsel %vm874, %v2564, -inf
        %2863 = vmax.xlane.f32.xlu0 %v2862
        %v2864 = vpop.xlane.xlu0 %2863
        %v2865 = vsel %vm874, %v2565, -inf
        %2866 = vmax.xlane.f32.xlu0 %v2865
        %v2867 = vpop.xlane.xlu0 %2866
        %v2868 = vsel %vm874, %v2566, -inf
        %2869 = vmax.xlane.f32.xlu0 %v2868
        %v2870 = vpop.xlane.xlu0 %2869
        %v2871 = vsel %vm874, %v2567, -inf
        %2872 = vmax.xlane.f32.xlu0 %v2871
        %v2873 = vpop.xlane.xlu0 %2872
        %v2874 = vsel %vm874, %v2568, -inf
        %2875 = vmax.xlane.f32.xlu0 %v2874
        %v2876 = vpop.xlane.xlu0 %2875
        %v2877 = vsel %vm874, %v2569, -inf
        %2878 = vmax.xlane.f32.xlu0 %v2877
        %v2879 = vpop.xlane.xlu0 %2878
        %v2880 = vsel %vm874, %v2570, -inf
        %2881 = vmax.xlane.f32.xlu0 %v2880
        %v2882 = vpop.xlane.xlu0 %2881
        %v2883 = vsel %vm874, %v2571, -inf
        %2884 = vmax.xlane.f32.xlu0 %v2883
        %v2885 = vpop.xlane.xlu0 %2884
        %v2886 = vsel %vm874, %v2572, -inf
        %2887 = vmax.xlane.f32.xlu0 %v2886
        %v2888 = vpop.xlane.xlu0 %2887
        %v2889 = vsel %vm874, %v2573, -inf
        %2890 = vmax.xlane.f32.xlu0 %v2889
        %v2891 = vpop.xlane.xlu0 %2890
        %v2892 = vsel %vm874, %v2574, -inf
        %2893 = vmax.xlane.f32.xlu0 %v2892
        %v2894 = vpop.xlane.xlu0 %2893
        %v2895 = vsel %vm874, %v2575, -inf
        %2896 = vmax.xlane.f32.xlu0 %v2895
        %v2897 = vpop.xlane.xlu0 %2896
        %v2898 = vsel %vm874, %v2576, -inf
        %2899 = vmax.xlane.f32.xlu0 %v2898
        %v2900 = vpop.xlane.xlu0 %2899
        %v2901 = vsel %vm874, %v2577, -inf
        %2902 = vmax.xlane.f32.xlu0 %v2901
        %v2903 = vpop.xlane.xlu0 %2902
        %v2904 = vsel %vm874, %v2578, -inf
        %2905 = vmax.xlane.f32.xlu0 %v2904
        %v2906 = vpop.xlane.xlu0 %2905
        %v2907 = vsel %vm874, %v2579, -inf
        %2908 = vmax.xlane.f32.xlu0 %v2907
        %v2909 = vpop.xlane.xlu0 %2908
        %v2910 = vsel %vm874, %v2580, -inf
        %2911 = vmax.xlane.f32.xlu0 %v2910
        %v2912 = vpop.xlane.xlu0 %2911
        %v2913 = vsel %vm874, %v2581, -inf
        %2914 = vmax.xlane.f32.xlu0 %v2913
        %v2915 = vpop.xlane.xlu0 %2914
        %v2916 = vsel %vm874, %v2582, -inf
        %2917 = vmax.xlane.f32.xlu0 %v2916
        %v2918 = vpop.xlane.xlu0 %2917
        %v2919 = vsel %vm874, %v2583, -inf
        %2920 = vmax.xlane.f32.xlu0 %v2919
        %v2921 = vpop.xlane.xlu0 %2920
        %v2922 = vsel %vm874, %v2584, -inf
        %2923 = vmax.xlane.f32.xlu0 %v2922
        %v2924 = vpop.xlane.xlu0 %2923
        %v2925 = vsel %vm874, %v2585, -inf
        %2926 = vmax.xlane.f32.xlu0 %v2925
        %v2927 = vpop.xlane.xlu0 %2926
        %v2928 = vsel %vm874, %v2586, -inf
        %2929 = vmax.xlane.f32.xlu0 %v2928
        %v2930 = vpop.xlane.xlu0 %2929
        %v2931 = vsel %vm874, %v2587, -inf
        %2932 = vmax.xlane.f32.xlu0 %v2931
        %v2933 = vpop.xlane.xlu0 %2932
        %v2934 = vsel %vm874, %v2588, -inf
        %2935 = vmax.xlane.f32.xlu0 %v2934
        %v2936 = vpop.xlane.xlu0 %2935
        %v2937 = vsel %vm874, %v2589, -inf
        %2938 = vmax.xlane.f32.xlu0 %v2937
        %v2939 = vpop.xlane.xlu0 %2938
        %v2940 = vsel %vm874, %v2590, -inf
        %2941 = vmax.xlane.f32.xlu0 %v2940
        %v2942 = vpop.xlane.xlu0 %2941
        %v2943 = vsel %vm874, %v2591, -inf
        %2944 = vmax.xlane.f32.xlu0 %v2943
        %v2945 = vpop.xlane.xlu0 %2944
        %v2946 = vsel %vm874, %v2592, -inf
        %2947 = vmax.xlane.f32.xlu0 %v2946
        %v2948 = vpop.xlane.xlu0 %2947
        %v2949 = vsel %vm874, %v2593, -inf
        %2950 = vmax.xlane.f32.xlu0 %v2949
        %v2951 = vpop.xlane.xlu0 %2950
        %v2952 = vsel %vm874, %v2594, -inf
        %2953 = vmax.xlane.f32.xlu0 %v2952
        %v2954 = vpop.xlane.xlu0 %2953
        %v2955 = vsel %vm874, %v2595, -inf
        %2956 = vmax.xlane.f32.xlu0 %v2955
        %v2957 = vpop.xlane.xlu0 %2956
        %v2958 = vsel %vm874, %v2596, -inf
        %2959 = vmax.xlane.f32.xlu0 %v2958
        %v2960 = vpop.xlane.xlu0 %2959
        %v2961 = vsel %vm874, %v2597, -inf
        %2962 = vmax.xlane.f32.xlu0 %v2961
        %v2963 = vpop.xlane.xlu0 %2962
        %v2964 = vsel %vm874, %v2598, -inf
        %2965 = vmax.xlane.f32.xlu0 %v2964
        %v2966 = vpop.xlane.xlu0 %2965
        %v2967 = vsel %vm874, %v2599, -inf
        %2968 = vmax.xlane.f32.xlu0 %v2967
        %v2969 = vpop.xlane.xlu0 %2968
        %v2970 = vsel %vm874, %v2600, -inf
        %2971 = vmax.xlane.f32.xlu0 %v2970
        %v2972 = vpop.xlane.xlu0 %2971
        %v2973 = vsel %vm874, %v2601, -inf
        %2974 = vmax.xlane.f32.xlu0 %v2973
        %v2975 = vpop.xlane.xlu0 %2974
        %v2976 = vsel %vm874, %v2602, -inf
        %2977 = vmax.xlane.f32.xlu0 %v2976
        %v2978 = vpop.xlane.xlu0 %2977
        %v2979 = vsel %vm874, %v2603, -inf
        %2980 = vmax.xlane.f32.xlu0 %v2979
        %v2981 = vpop.xlane.xlu0 %2980
        %v2982 = vsel %vm874, %v2604, -inf
        %2983 = vmax.xlane.f32.xlu0 %v2982
        %v2984 = vpop.xlane.xlu0 %2983
        %v2985 = vsel %vm874, %v2605, -inf
        %2986 = vmax.xlane.f32.xlu0 %v2985
        %v2987 = vpop.xlane.xlu0 %2986
        %v2988 = vsel %vm874, %v2606, -inf
        %2989 = vmax.xlane.f32.xlu0 %v2988
        %v2990 = vpop.xlane.xlu0 %2989
        %v2991 = vmax.f32 %v2609, %v2612
        %v2992 = vrot.slane %v2991, 4
        %v2993 = vmax.f32 %v2991, %v2992
        %v2994 = vrot.slane %v2993, 2
        %v2995 = vmax.f32 %v2993, %v2994
        %v2996 = vrot.slane %v2995, 1
        %v2997 = vmax.f32 %v2995, %v2996
        %v2998 = vmax.f32 %v2615, %v2618
        %v2999 = vrot.slane %v2998, 4
        %v3000 = vmax.f32 %v2998, %v2999
        %v3001 = vrot.slane %v3000, 2
        %v3002 = vmax.f32 %v3000, %v3001
        %v3003 = vrot.slane %v3002, 1
        %v3004 = vmax.f32 %v3002, %v3003
        %v3005 = vmax.f32 %v2621, %v2624
        %v3006 = vrot.slane %v3005, 4
        %v3007 = vmax.f32 %v3005, %v3006
        %v3008 = vrot.slane %v3007, 2
        %v3009 = vmax.f32 %v3007, %v3008
        %v3010 = vrot.slane %v3009, 1
        %v3011 = vmax.f32 %v3009, %v3010
        %v3012 = vmax.f32 %v2627, %v2630
        %v3013 = vrot.slane %v3012, 4
        %v3014 = vmax.f32 %v3012, %v3013
        %v3015 = vrot.slane %v3014, 2
        %v3016 = vmax.f32 %v3014, %v3015
        %v3017 = vrot.slane %v3016, 1
        %v3018 = vmax.f32 %v3016, %v3017
        %v3019 = vmax.f32 %v2633, %v2636
        %v3020 = vrot.slane %v3019, 4
        %v3021 = vmax.f32 %v3019, %v3020
        %v3022 = vrot.slane %v3021, 2
        %v3023 = vmax.f32 %v3021, %v3022
        %v3024 = vrot.slane %v3023, 1
        %v3025 = vmax.f32 %v3023, %v3024
        %v3026 = vmax.f32 %v2639, %v2642
        %v3027 = vrot.slane %v3026, 4
        %v3028 = vmax.f32 %v3026, %v3027
        %v3029 = vrot.slane %v3028, 2
        %v3030 = vmax.f32 %v3028, %v3029
        %v3031 = vrot.slane %v3030, 1
        %v3032 = vmax.f32 %v3030, %v3031
        %v3033 = vmax.f32 %v2645, %v2648
        %v3034 = vrot.slane %v3033, 4
        %v3035 = vmax.f32 %v3033, %v3034
        %v3036 = vrot.slane %v3035, 2
        %v3037 = vmax.f32 %v3035, %v3036
        %v3038 = vrot.slane %v3037, 1
        %v3039 = vmax.f32 %v3037, %v3038
        %v3040 = vmax.f32 %v2651, %v2654
        %v3041 = vrot.slane %v3040, 4
        %v3042 = vmax.f32 %v3040, %v3041
        %v3043 = vrot.slane %v3042, 2
        %v3044 = vmax.f32 %v3042, %v3043
        %v3045 = vrot.slane %v3044, 1
        %v3046 = vmax.f32 %v3044, %v3045
        %v3047 = vmax.f32 %v2657, %v2660
        %v3048 = vrot.slane %v3047, 4
        %v3049 = vmax.f32 %v3047, %v3048
        %v3050 = vrot.slane %v3049, 2
        %v3051 = vmax.f32 %v3049, %v3050
        %v3052 = vrot.slane %v3051, 1
        %v3053 = vmax.f32 %v3051, %v3052
        %v3054 = vmax.f32 %v2663, %v2666
        %v3055 = vrot.slane %v3054, 4
        %v3056 = vmax.f32 %v3054, %v3055
        %v3057 = vrot.slane %v3056, 2
        %v3058 = vmax.f32 %v3056, %v3057
        %v3059 = vrot.slane %v3058, 1
        %v3060 = vmax.f32 %v3058, %v3059
        %v3061 = vmax.f32 %v2669, %v2672
        %v3062 = vrot.slane %v3061, 4
        %v3063 = vmax.f32 %v3061, %v3062
        %v3064 = vrot.slane %v3063, 2
        %v3065 = vmax.f32 %v3063, %v3064
        %v3066 = vrot.slane %v3065, 1
        %v3067 = vmax.f32 %v3065, %v3066
        %v3068 = vmax.f32 %v2675, %v2678
        %v3069 = vrot.slane %v3068, 4
        %v3070 = vmax.f32 %v3068, %v3069
        %v3071 = vrot.slane %v3070, 2
        %v3072 = vmax.f32 %v3070, %v3071
        %v3073 = vrot.slane %v3072, 1
        %v3074 = vmax.f32 %v3072, %v3073
        %v3075 = vmax.f32 %v2681, %v2684
        %v3076 = vrot.slane %v3075, 4
        %v3077 = vmax.f32 %v3075, %v3076
        %v3078 = vrot.slane %v3077, 2
        %v3079 = vmax.f32 %v3077, %v3078
        %v3080 = vrot.slane %v3079, 1
        %v3081 = vmax.f32 %v3079, %v3080
        %v3082 = vmax.f32 %v2687, %v2690
        %v3083 = vrot.slane %v3082, 4
        %v3084 = vmax.f32 %v3082, %v3083
        %v3085 = vrot.slane %v3084, 2
        %v3086 = vmax.f32 %v3084, %v3085
        %v3087 = vrot.slane %v3086, 1
        %v3088 = vmax.f32 %v3086, %v3087
        %v3089 = vmax.f32 %v2693, %v2696
        %v3090 = vrot.slane %v3089, 4
        %v3091 = vmax.f32 %v3089, %v3090
        %v3092 = vrot.slane %v3091, 2
        %v3093 = vmax.f32 %v3091, %v3092
        %v3094 = vrot.slane %v3093, 1
        %v3095 = vmax.f32 %v3093, %v3094
        %v3096 = vmax.f32 %v2699, %v2702
        %v3097 = vrot.slane %v3096, 4
        %v3098 = vmax.f32 %v3096, %v3097
        %v3099 = vrot.slane %v3098, 2
        %v3100 = vmax.f32 %v3098, %v3099
        %v3101 = vrot.slane %v3100, 1
        %v3102 = vmax.f32 %v3100, %v3101
        %v3103 = vmax.f32 %v2705, %v2708
        %v3104 = vrot.slane %v3103, 4
        %v3105 = vmax.f32 %v3103, %v3104
        %v3106 = vrot.slane %v3105, 2
        %v3107 = vmax.f32 %v3105, %v3106
        %v3108 = vrot.slane %v3107, 1
        %v3109 = vmax.f32 %v3107, %v3108
        %v3110 = vmax.f32 %v2711, %v2714
        %v3111 = vrot.slane %v3110, 4
        %v3112 = vmax.f32 %v3110, %v3111
        %v3113 = vrot.slane %v3112, 2
        %v3114 = vmax.f32 %v3112, %v3113
        %v3115 = vrot.slane %v3114, 1
        %v3116 = vmax.f32 %v3114, %v3115
        %v3117 = vmax.f32 %v2717, %v2720
        %v3118 = vrot.slane %v3117, 4
        %v3119 = vmax.f32 %v3117, %v3118
        %v3120 = vrot.slane %v3119, 2
        %v3121 = vmax.f32 %v3119, %v3120
        %v3122 = vrot.slane %v3121, 1
        %v3123 = vmax.f32 %v3121, %v3122
        %v3124 = vmax.f32 %v2723, %v2726
        %v3125 = vrot.slane %v3124, 4
        %v3126 = vmax.f32 %v3124, %v3125
        %v3127 = vrot.slane %v3126, 2
        %v3128 = vmax.f32 %v3126, %v3127
        %v3129 = vrot.slane %v3128, 1
        %v3130 = vmax.f32 %v3128, %v3129
        %v3131 = vmax.f32 %v2729, %v2732
        %v3132 = vrot.slane %v3131, 4
        %v3133 = vmax.f32 %v3131, %v3132
        %v3134 = vrot.slane %v3133, 2
        %v3135 = vmax.f32 %v3133, %v3134
        %v3136 = vrot.slane %v3135, 1
        %v3137 = vmax.f32 %v3135, %v3136
        %v3138 = vmax.f32 %v2735, %v2738
        %v3139 = vrot.slane %v3138, 4
        %v3140 = vmax.f32 %v3138, %v3139
        %v3141 = vrot.slane %v3140, 2
        %v3142 = vmax.f32 %v3140, %v3141
        %v3143 = vrot.slane %v3142, 1
        %v3144 = vmax.f32 %v3142, %v3143
        %v3145 = vmax.f32 %v2741, %v2744
        %v3146 = vrot.slane %v3145, 4
        %v3147 = vmax.f32 %v3145, %v3146
        %v3148 = vrot.slane %v3147, 2
        %v3149 = vmax.f32 %v3147, %v3148
        %v3150 = vrot.slane %v3149, 1
        %v3151 = vmax.f32 %v3149, %v3150
        %v3152 = vmax.f32 %v2747, %v2750
        %v3153 = vrot.slane %v3152, 4
        %v3154 = vmax.f32 %v3152, %v3153
        %v3155 = vrot.slane %v3154, 2
        %v3156 = vmax.f32 %v3154, %v3155
        %v3157 = vrot.slane %v3156, 1
        %v3158 = vmax.f32 %v3156, %v3157
        %v3159 = vmax.f32 %v2753, %v2756
        %v3160 = vrot.slane %v3159, 4
        %v3161 = vmax.f32 %v3159, %v3160
        %v3162 = vrot.slane %v3161, 2
        %v3163 = vmax.f32 %v3161, %v3162
        %v3164 = vrot.slane %v3163, 1
        %v3165 = vmax.f32 %v3163, %v3164
        %v3166 = vmax.f32 %v2759, %v2762
        %v3167 = vrot.slane %v3166, 4
        %v3168 = vmax.f32 %v3166, %v3167
        %v3169 = vrot.slane %v3168, 2
        %v3170 = vmax.f32 %v3168, %v3169
        %v3171 = vrot.slane %v3170, 1
        %v3172 = vmax.f32 %v3170, %v3171
        %v3173 = vmax.f32 %v2765, %v2768
        %v3174 = vrot.slane %v3173, 4
        %v3175 = vmax.f32 %v3173, %v3174
        %v3176 = vrot.slane %v3175, 2
        %v3177 = vmax.f32 %v3175, %v3176
        %v3178 = vrot.slane %v3177, 1
        %v3179 = vmax.f32 %v3177, %v3178
        %v3180 = vmax.f32 %v2771, %v2774
        %v3181 = vrot.slane %v3180, 4
        %v3182 = vmax.f32 %v3180, %v3181
        %v3183 = vrot.slane %v3182, 2
        %v3184 = vmax.f32 %v3182, %v3183
        %v3185 = vrot.slane %v3184, 1
        %v3186 = vmax.f32 %v3184, %v3185
        %v3187 = vmax.f32 %v2777, %v2780
        %v3188 = vrot.slane %v3187, 4
        %v3189 = vmax.f32 %v3187, %v3188
        %v3190 = vrot.slane %v3189, 2
        %v3191 = vmax.f32 %v3189, %v3190
        %v3192 = vrot.slane %v3191, 1
        %v3193 = vmax.f32 %v3191, %v3192
        %v3194 = vmax.f32 %v2783, %v2786
        %v3195 = vrot.slane %v3194, 4
        %v3196 = vmax.f32 %v3194, %v3195
        %v3197 = vrot.slane %v3196, 2
        %v3198 = vmax.f32 %v3196, %v3197
        %v3199 = vrot.slane %v3198, 1
        %v3200 = vmax.f32 %v3198, %v3199
        %v3201 = vmax.f32 %v2789, %v2792
        %v3202 = vrot.slane %v3201, 4
        %v3203 = vmax.f32 %v3201, %v3202
        %v3204 = vrot.slane %v3203, 2
        %v3205 = vmax.f32 %v3203, %v3204
        %v3206 = vrot.slane %v3205, 1
        %v3207 = vmax.f32 %v3205, %v3206
        %v3208 = vmax.f32 %v2795, %v2798
        %v3209 = vrot.slane %v3208, 4
        %v3210 = vmax.f32 %v3208, %v3209
        %v3211 = vrot.slane %v3210, 2
        %v3212 = vmax.f32 %v3210, %v3211
        %v3213 = vrot.slane %v3212, 1
        %v3214 = vmax.f32 %v3212, %v3213
        %v3215 = vmax.f32 %v2801, %v2804
        %v3216 = vrot.slane %v3215, 4
        %v3217 = vmax.f32 %v3215, %v3216
        %v3218 = vrot.slane %v3217, 2
        %v3219 = vmax.f32 %v3217, %v3218
        %v3220 = vrot.slane %v3219, 1
        %v3221 = vmax.f32 %v3219, %v3220
        %v3222 = vmax.f32 %v2807, %v2810
        %v3223 = vrot.slane %v3222, 4
        %v3224 = vmax.f32 %v3222, %v3223
        %v3225 = vrot.slane %v3224, 2
        %v3226 = vmax.f32 %v3224, %v3225
        %v3227 = vrot.slane %v3226, 1
        %v3228 = vmax.f32 %v3226, %v3227
        %v3229 = vmax.f32 %v2813, %v2816
        %v3230 = vrot.slane %v3229, 4
        %v3231 = vmax.f32 %v3229, %v3230
        %v3232 = vrot.slane %v3231, 2
        %v3233 = vmax.f32 %v3231, %v3232
        %v3234 = vrot.slane %v3233, 1
        %v3235 = vmax.f32 %v3233, %v3234
        %v3236 = vmax.f32 %v2819, %v2822
        %v3237 = vrot.slane %v3236, 4
        %v3238 = vmax.f32 %v3236, %v3237
        %v3239 = vrot.slane %v3238, 2
        %v3240 = vmax.f32 %v3238, %v3239
        %v3241 = vrot.slane %v3240, 1
        %v3242 = vmax.f32 %v3240, %v3241
        %v3243 = vmax.f32 %v2825, %v2828
        %v3244 = vrot.slane %v3243, 4
        %v3245 = vmax.f32 %v3243, %v3244
        %v3246 = vrot.slane %v3245, 2
        %v3247 = vmax.f32 %v3245, %v3246
        %v3248 = vrot.slane %v3247, 1
        %v3249 = vmax.f32 %v3247, %v3248
        %v3250 = vmax.f32 %v2831, %v2834
        %v3251 = vrot.slane %v3250, 4
        %v3252 = vmax.f32 %v3250, %v3251
        %v3253 = vrot.slane %v3252, 2
        %v3254 = vmax.f32 %v3252, %v3253
        %v3255 = vrot.slane %v3254, 1
        %v3256 = vmax.f32 %v3254, %v3255
        %v3257 = vmax.f32 %v2837, %v2840
        %v3258 = vrot.slane %v3257, 4
        %v3259 = vmax.f32 %v3257, %v3258
        %v3260 = vrot.slane %v3259, 2
        %v3261 = vmax.f32 %v3259, %v3260
        %v3262 = vrot.slane %v3261, 1
        %v3263 = vmax.f32 %v3261, %v3262
        %v3264 = vmax.f32 %v2843, %v2846
        %v3265 = vrot.slane %v3264, 4
        %v3266 = vmax.f32 %v3264, %v3265
        %v3267 = vrot.slane %v3266, 2
        %v3268 = vmax.f32 %v3266, %v3267
        %v3269 = vrot.slane %v3268, 1
        %v3270 = vmax.f32 %v3268, %v3269
        %v3271 = vmax.f32 %v2849, %v2852
        %v3272 = vrot.slane %v3271, 4
        %v3273 = vmax.f32 %v3271, %v3272
        %v3274 = vrot.slane %v3273, 2
        %v3275 = vmax.f32 %v3273, %v3274
        %v3276 = vrot.slane %v3275, 1
        %v3277 = vmax.f32 %v3275, %v3276
        %v3278 = vmax.f32 %v2855, %v2858
        %v3279 = vrot.slane %v3278, 4
        %v3280 = vmax.f32 %v3278, %v3279
        %v3281 = vrot.slane %v3280, 2
        %v3282 = vmax.f32 %v3280, %v3281
        %v3283 = vrot.slane %v3282, 1
        %v3284 = vmax.f32 %v3282, %v3283
        %v3285 = vmax.f32 %v2861, %v2864
        %v3286 = vrot.slane %v3285, 4
        %v3287 = vmax.f32 %v3285, %v3286
        %v3288 = vrot.slane %v3287, 2
        %v3289 = vmax.f32 %v3287, %v3288
        %v3290 = vrot.slane %v3289, 1
        %v3291 = vmax.f32 %v3289, %v3290
        %v3292 = vmax.f32 %v2867, %v2870
        %v3293 = vrot.slane %v3292, 4
        %v3294 = vmax.f32 %v3292, %v3293
        %v3295 = vrot.slane %v3294, 2
        %v3296 = vmax.f32 %v3294, %v3295
        %v3297 = vrot.slane %v3296, 1
        %v3298 = vmax.f32 %v3296, %v3297
        %v3299 = vmax.f32 %v2873, %v2876
        %v3300 = vrot.slane %v3299, 4
        %v3301 = vmax.f32 %v3299, %v3300
        %v3302 = vrot.slane %v3301, 2
        %v3303 = vmax.f32 %v3301, %v3302
        %v3304 = vrot.slane %v3303, 1
        %v3305 = vmax.f32 %v3303, %v3304
        %v3306 = vmax.f32 %v2879, %v2882
        %v3307 = vrot.slane %v3306, 4
        %v3308 = vmax.f32 %v3306, %v3307
        %v3309 = vrot.slane %v3308, 2
        %v3310 = vmax.f32 %v3308, %v3309
        %v3311 = vrot.slane %v3310, 1
        %v3312 = vmax.f32 %v3310, %v3311
        %v3313 = vmax.f32 %v2885, %v2888
        %v3314 = vrot.slane %v3313, 4
        %v3315 = vmax.f32 %v3313, %v3314
        %v3316 = vrot.slane %v3315, 2
        %v3317 = vmax.f32 %v3315, %v3316
        %v3318 = vrot.slane %v3317, 1
        %v3319 = vmax.f32 %v3317, %v3318
        %v3320 = vmax.f32 %v2891, %v2894
        %v3321 = vrot.slane %v3320, 4
        %v3322 = vmax.f32 %v3320, %v3321
        %v3323 = vrot.slane %v3322, 2
        %v3324 = vmax.f32 %v3322, %v3323
        %v3325 = vrot.slane %v3324, 1
        %v3326 = vmax.f32 %v3324, %v3325
        %v3327 = vmax.f32 %v2897, %v2900
        %v3328 = vrot.slane %v3327, 4
        %v3329 = vmax.f32 %v3327, %v3328
        %v3330 = vrot.slane %v3329, 2
        %v3331 = vmax.f32 %v3329, %v3330
        %v3332 = vrot.slane %v3331, 1
        %v3333 = vmax.f32 %v3331, %v3332
        %v3334 = vmax.f32 %v2903, %v2906
        %v3335 = vrot.slane %v3334, 4
        %v3336 = vmax.f32 %v3334, %v3335
        %v3337 = vrot.slane %v3336, 2
        %v3338 = vmax.f32 %v3336, %v3337
        %v3339 = vrot.slane %v3338, 1
        %v3340 = vmax.f32 %v3338, %v3339
        %v3341 = vmax.f32 %v2909, %v2912
        %v3342 = vrot.slane %v3341, 4
        %v3343 = vmax.f32 %v3341, %v3342
        %v3344 = vrot.slane %v3343, 2
        %v3345 = vmax.f32 %v3343, %v3344
        %v3346 = vrot.slane %v3345, 1
        %v3347 = vmax.f32 %v3345, %v3346
        %v3348 = vmax.f32 %v2915, %v2918
        %v3349 = vrot.slane %v3348, 4
        %v3350 = vmax.f32 %v3348, %v3349
        %v3351 = vrot.slane %v3350, 2
        %v3352 = vmax.f32 %v3350, %v3351
        %v3353 = vrot.slane %v3352, 1
        %v3354 = vmax.f32 %v3352, %v3353
        %v3355 = vmax.f32 %v2921, %v2924
        %v3356 = vrot.slane %v3355, 4
        %v3357 = vmax.f32 %v3355, %v3356
        %v3358 = vrot.slane %v3357, 2
        %v3359 = vmax.f32 %v3357, %v3358
        %v3360 = vrot.slane %v3359, 1
        %v3361 = vmax.f32 %v3359, %v3360
        %v3362 = vmax.f32 %v2927, %v2930
        %v3363 = vrot.slane %v3362, 4
        %v3364 = vmax.f32 %v3362, %v3363
        %v3365 = vrot.slane %v3364, 2
        %v3366 = vmax.f32 %v3364, %v3365
        %v3367 = vrot.slane %v3366, 1
        %v3368 = vmax.f32 %v3366, %v3367
        %v3369 = vmax.f32 %v2933, %v2936
        %v3370 = vrot.slane %v3369, 4
        %v3371 = vmax.f32 %v3369, %v3370
        %v3372 = vrot.slane %v3371, 2
        %v3373 = vmax.f32 %v3371, %v3372
        %v3374 = vrot.slane %v3373, 1
        %v3375 = vmax.f32 %v3373, %v3374
        %v3376 = vmax.f32 %v2939, %v2942
        %v3377 = vrot.slane %v3376, 4
        %v3378 = vmax.f32 %v3376, %v3377
        %v3379 = vrot.slane %v3378, 2
        %v3380 = vmax.f32 %v3378, %v3379
        %v3381 = vrot.slane %v3380, 1
        %v3382 = vmax.f32 %v3380, %v3381
        %v3383 = vmax.f32 %v2945, %v2948
        %v3384 = vrot.slane %v3383, 4
        %v3385 = vmax.f32 %v3383, %v3384
        %v3386 = vrot.slane %v3385, 2
        %v3387 = vmax.f32 %v3385, %v3386
        %v3388 = vrot.slane %v3387, 1
        %v3389 = vmax.f32 %v3387, %v3388
        %v3390 = vmax.f32 %v2951, %v2954
        %v3391 = vrot.slane %v3390, 4
        %v3392 = vmax.f32 %v3390, %v3391
        %v3393 = vrot.slane %v3392, 2
        %v3394 = vmax.f32 %v3392, %v3393
        %v3395 = vrot.slane %v3394, 1
        %v3396 = vmax.f32 %v3394, %v3395
        %v3397 = vmax.f32 %v2957, %v2960
        %v3398 = vrot.slane %v3397, 4
        %v3399 = vmax.f32 %v3397, %v3398
        %v3400 = vrot.slane %v3399, 2
        %v3401 = vmax.f32 %v3399, %v3400
        %v3402 = vrot.slane %v3401, 1
        %v3403 = vmax.f32 %v3401, %v3402
        %v3404 = vmax.f32 %v2963, %v2966
        %v3405 = vrot.slane %v3404, 4
        %v3406 = vmax.f32 %v3404, %v3405
        %v3407 = vrot.slane %v3406, 2
        %v3408 = vmax.f32 %v3406, %v3407
        %v3409 = vrot.slane %v3408, 1
        %v3410 = vmax.f32 %v3408, %v3409
        %v3411 = vmax.f32 %v2969, %v2972
        %v3412 = vrot.slane %v3411, 4
        %v3413 = vmax.f32 %v3411, %v3412
        %v3414 = vrot.slane %v3413, 2
        %v3415 = vmax.f32 %v3413, %v3414
        %v3416 = vrot.slane %v3415, 1
        %v3417 = vmax.f32 %v3415, %v3416
        %v3418 = vmax.f32 %v2975, %v2978
        %v3419 = vrot.slane %v3418, 4
        %v3420 = vmax.f32 %v3418, %v3419
        %v3421 = vrot.slane %v3420, 2
        %v3422 = vmax.f32 %v3420, %v3421
        %v3423 = vrot.slane %v3422, 1
        %v3424 = vmax.f32 %v3422, %v3423
        %v3425 = vmax.f32 %v2981, %v2984
        %v3426 = vrot.slane %v3425, 4
        %v3427 = vmax.f32 %v3425, %v3426
        %v3428 = vrot.slane %v3427, 2
        %v3429 = vmax.f32 %v3427, %v3428
        %v3430 = vrot.slane %v3429, 1
        %v3431 = vmax.f32 %v3429, %v3430
        %v3432 = vmax.f32 %v2987, %v2990
        %v3433 = vrot.slane %v3432, 4
        %v3434 = vmax.f32 %v3432, %v3433
        %v3435 = vrot.slane %v3434, 2
        %v3436 = vmax.f32 %v3434, %v3435
        %v3437 = vrot.slane %v3436, 1
        %v3438 = vmax.f32 %v3436, %v3437
        %3439 = vst.msk [vmem:[%s227] sm:$0x1] %vm2414, %v2997
        %3440 = vst.msk [vmem:[%s227 + $0x1] sm:$0x1] %vm2414, %v3004
        %3441 = vst.msk [vmem:[%s227 + $0x2] sm:$0x1] %vm2414, %v3011
        %3442 = vst.msk [vmem:[%s227 + $0x3] sm:$0x1] %vm2414, %v3018
        %3443 = vst.msk [vmem:[%s227 + $0x4] sm:$0x1] %vm2414, %v3025
        %3444 = vst.msk [vmem:[%s227 + $0x5] sm:$0x1] %vm2414, %v3032
        %3445 = vst.msk [vmem:[%s227 + $0x6] sm:$0x1] %vm2414, %v3039
        %3446 = vst.msk [vmem:[%s227 + $0x7] sm:$0x1] %vm2414, %v3046
        %3447 = vst.msk [vmem:[%s227 + $0x8] sm:$0x1] %vm2414, %v3053
        %3448 = vst.msk [vmem:[%s227 + $0x9] sm:$0x1] %vm2414, %v3060
        %3449 = vst.msk [vmem:[%s227 + $0xa] sm:$0x1] %vm2414, %v3067
        %3450 = vst.msk [vmem:[%s227 + $0xb] sm:$0x1] %vm2414, %v3074
        %3451 = vst.msk [vmem:[%s227 + $0xc] sm:$0x1] %vm2414, %v3081
        %3452 = vst.msk [vmem:[%s227 + $0xd] sm:$0x1] %vm2414, %v3088
        %3453 = vst.msk [vmem:[%s227 + $0xe] sm:$0x1] %vm2414, %v3095
        %3454 = vst.msk [vmem:[%s227 + $0xf] sm:$0x1] %vm2414, %v3102
        %3455 = vst.msk [vmem:[%s227 + $0x10] sm:$0x1] %vm2414, %v3109
        %3456 = vst.msk [vmem:[%s227 + $0x11] sm:$0x1] %vm2414, %v3116
        %3457 = vst.msk [vmem:[%s227 + $0x12] sm:$0x1] %vm2414, %v3123
        %3458 = vst.msk [vmem:[%s227 + $0x13] sm:$0x1] %vm2414, %v3130
        %3459 = vst.msk [vmem:[%s227 + $0x14] sm:$0x1] %vm2414, %v3137
        %3460 = vst.msk [vmem:[%s227 + $0x15] sm:$0x1] %vm2414, %v3144
        %3461 = vst.msk [vmem:[%s227 + $0x16] sm:$0x1] %vm2414, %v3151
        %3462 = vst.msk [vmem:[%s227 + $0x17] sm:$0x1] %vm2414, %v3158
        %3463 = vst.msk [vmem:[%s227 + $0x18] sm:$0x1] %vm2414, %v3165
        %3464 = vst.msk [vmem:[%s227 + $0x19] sm:$0x1] %vm2414, %v3172
        %3465 = vst.msk [vmem:[%s227 + $0x1a] sm:$0x1] %vm2414, %v3179
        %3466 = vst.msk [vmem:[%s227 + $0x1b] sm:$0x1] %vm2414, %v3186
        %3467 = vst.msk [vmem:[%s227 + $0x1c] sm:$0x1] %vm2414, %v3193
        %3468 = vst.msk [vmem:[%s227 + $0x1d] sm:$0x1] %vm2414, %v3200
        %3469 = vst.msk [vmem:[%s227 + $0x1e] sm:$0x1] %vm2414, %v3207
        %3470 = vst.msk [vmem:[%s227 + $0x1f] sm:$0x1] %vm2414, %v3214
        %3471 = vst.msk [vmem:[%s227 + $0x20] sm:$0x1] %vm2414, %v3221
        %3472 = vst.msk [vmem:[%s227 + $0x21] sm:$0x1] %vm2414, %v3228
        %3473 = vst.msk [vmem:[%s227 + $0x22] sm:$0x1] %vm2414, %v3235
        %3474 = vst.msk [vmem:[%s227 + $0x23] sm:$0x1] %vm2414, %v3242
        %3475 = vst.msk [vmem:[%s227 + $0x24] sm:$0x1] %vm2414, %v3249
        %3476 = vst.msk [vmem:[%s227 + $0x25] sm:$0x1] %vm2414, %v3256
        %3477 = vst.msk [vmem:[%s227 + $0x26] sm:$0x1] %vm2414, %v3263
        %3478 = vst.msk [vmem:[%s227 + $0x27] sm:$0x1] %vm2414, %v3270
        %3479 = vst.msk [vmem:[%s227 + $0x28] sm:$0x1] %vm2414, %v3277
        %3480 = vst.msk [vmem:[%s227 + $0x29] sm:$0x1] %vm2414, %v3284
        %3481 = vst.msk [vmem:[%s227 + $0x2a] sm:$0x1] %vm2414, %v3291
        %3482 = vst.msk [vmem:[%s227 + $0x2b] sm:$0x1] %vm2414, %v3298
        %3483 = vst.msk [vmem:[%s227 + $0x2c] sm:$0x1] %vm2414, %v3305
        %3484 = vst.msk [vmem:[%s227 + $0x2d] sm:$0x1] %vm2414, %v3312
        %3485 = vst.msk [vmem:[%s227 + $0x2e] sm:$0x1] %vm2414, %v3319
        %3486 = vst.msk [vmem:[%s227 + $0x2f] sm:$0x1] %vm2414, %v3326
        %3487 = vst.msk [vmem:[%s227 + $0x30] sm:$0x1] %vm2414, %v3333
        %3488 = vst.msk [vmem:[%s227 + $0x31] sm:$0x1] %vm2414, %v3340
        %3489 = vst.msk [vmem:[%s227 + $0x32] sm:$0x1] %vm2414, %v3347
        %3490 = vst.msk [vmem:[%s227 + $0x33] sm:$0x1] %vm2414, %v3354
        %3491 = vst.msk [vmem:[%s227 + $0x34] sm:$0x1] %vm2414, %v3361
        %3492 = vst.msk [vmem:[%s227 + $0x35] sm:$0x1] %vm2414, %v3368
        %3493 = vst.msk [vmem:[%s227 + $0x36] sm:$0x1] %vm2414, %v3375
        %3494 = vst.msk [vmem:[%s227 + $0x37] sm:$0x1] %vm2414, %v3382
        %3495 = vst.msk [vmem:[%s227 + $0x38] sm:$0x1] %vm2414, %v3389
        %3496 = vst.msk [vmem:[%s227 + $0x39] sm:$0x1] %vm2414, %v3396
        %3497 = vst.msk [vmem:[%s227 + $0x3a] sm:$0x1] %vm2414, %v3403
        %3498 = vst.msk [vmem:[%s227 + $0x3b] sm:$0x1] %vm2414, %v3410
        %3499 = vst.msk [vmem:[%s227 + $0x3c] sm:$0x1] %vm2414, %v3417
        %3500 = vst.msk [vmem:[%s227 + $0x3d] sm:$0x1] %vm2414, %v3424
        %3501 = vst.msk [vmem:[%s227 + $0x3e] sm:$0x1] %vm2414, %v3431
        %3502 = vst.msk [vmem:[%s227 + $0x3f] sm:$0x1] %vm2414, %v3438
      $region32: #{tpu_custom_call.1} parent=23 // pred_fallthru
        _
      %s3503 = smul.u32 64, %s20
      %p3504 = scmp.lt.s32.totalorder %s19, 1
      %s3505 = scalar_select %p3504, %s19, 1
      %p3506 = scmp.lt.s32.totalorder %s3503, 63
      %s3507 = scalar_select %p3506, %s3503, 63
      %s3508 = smul.addr %s3505, 64
      %s3509 = sadd.s32 %s3507, %s3508
      %s3510 = scalar_lea.vmem %s1, %s3509
      %s3511 = smul.u32 64, %s20
      %p3512 = scmp.lt.s32.totalorder %s19, 1
      %s3513 = scalar_select %p3512, %s19, 1
      %p3514 = scmp.lt.s32.totalorder %s3511, 63
      %s3515 = scalar_select %p3514, %s3511, 63
      %s3516 = smul.addr %s3513, 64
      %s3517 = sadd.s32 %s3515, %s3516
      %s3518 = scalar_lea.vmem %s2, %s3517
      // Predicated region
      $region33: #{tpu_custom_call.1} parent=23 // pred_check
        %p3519 = pneg %p83
      $region34: #{tpu_custom_call.1} parent=23 // pred_check_branch
        %3521 = sbr.rel (%p3519) target = $region36
      $region35: #{tpu_custom_call.1} parent=23 // pred_region
        %s3522 = smul.u32 64, %s20
      $region36: #{tpu_custom_call.1} parent=23 // pred_fallthru
        _
      // Predicated region
      $region37: #{tpu_custom_call.1} parent=23 // pred_check
        %p3523 = pneg %p111
      $region38: #{tpu_custom_call.1} parent=23 // pred_check_branch
        %3525 = sbr.rel (%p3523) target = $region40
      $region39: #{tpu_custom_call.1} parent=23 // pred_region
        %s3526 = smul.u32 64, %s20
      $region40: #{tpu_custom_call.1} parent=23 // pred_fallthru
        _
    $region24: #{tpu_custom_call.1} parent=5 // pred_fallthru
      _
    %p3527 = scmp.le.s32.totalorder 2, %s9
    // Predicated region
    $region41: #{tpu_custom_call.1} parent=5 // pred_check
      %p3528 = pneg %p3527
    $region42: #{tpu_custom_call.1} parent=5 // pred_check_branch
      %3530 = sbr.rel (%p3528) target = $region44
    $region43: #{tpu_custom_call.1} parent=5 // pred_region
      %s3531 = ssub.s32 %s9, 2
      // Predicated region
      $region45: #{tpu_custom_call.1} parent=43 // pred_check
        %p3532 = pneg %p89
      $region46: #{tpu_custom_call.1} parent=43 // pred_check_branch
        %3534 = sbr.rel (%p3532) target = $region48
      $region47: #{tpu_custom_call.1} parent=43 // pred_region
        %s3535 = smul.u32 64, %s23
        %p3536 = scmp.lt.s32.totalorder %s22, 1
        %s3537 = scalar_select %p3536, %s22, 1
        %p3538 = scmp.lt.s32.totalorder %s3535, 63
        %s3539 = scalar_select %p3538, %s3535, 63
        %s3540 = smul.addr %s3537, 64
        %s3541 = sadd.s32 %s3539, %s3540
        %s3542 = scalar_lea.vmem %s1, %s3541
      $region48: #{tpu_custom_call.1} parent=43 // pred_fallthru
        _
      // Predicated region
      $region49: #{tpu_custom_call.1} parent=43 // pred_check
        %p3543 = pneg %p117
      $region50: #{tpu_custom_call.1} parent=43 // pred_check_branch
        %3545 = sbr.rel (%p3543) target = $region52
      $region51: #{tpu_custom_call.1} parent=43 // pred_region
        %s3546 = smul.u32 64, %s23
        %p3547 = scmp.lt.s32.totalorder %s22, 1
        %s3548 = scalar_select %p3547, %s22, 1
        %p3549 = scmp.lt.s32.totalorder %s3546, 63
        %s3550 = scalar_select %p3549, %s3546, 63
        %s3551 = smul.addr %s3548, 64
        %s3552 = sadd.s32 %s3550, %s3551
        %s3553 = scalar_lea.vmem %s2, %s3552
      $region52: #{tpu_custom_call.1} parent=43 // pred_fallthru
        _
    $region44: #{tpu_custom_call.1} parent=5 // pred_fallthru
      _
  $region6: #{tpu_custom_call.1} parent=0 // loop_footer
    %s13 = sadd.s32 1, %s9
  $region7: #{tpu_custom_call.1} parent=0 // loop_footer_branch
    %8 = sbr.rel target = $region3
  $region8: #{tpu_custom_call.1} parent=0 // loop_exit
    _

</llo_original>
